<compile_context>
chip_gen: v7x
topology: tpu7x:2x2x1
jax: 0.10.0
libtpu: 0.0.40
codegen_flags: <defaults>
</compile_context>

<pallas_src>
import jax
import jax.numpy as jnp
from jax.experimental import pallas as pl
from jax.experimental.pallas import tpu as pltpu

D_MODEL = 32
NUM_HEADS = 4
D_K = D_MODEL // NUM_HEADS
D_FF = 64
EPS = 1e-6          # LayerNorm eps, biased variance (matches the reference repo)
MASK_NEG = 1e9
SLAB_LANES = 128    # lane-padded slab width


# ---------------------------------------------------------------------------
# Shared small math
# ---------------------------------------------------------------------------
def _layer_norm(x, gamma, beta):
    mean = jnp.mean(x, axis=-1, keepdims=True)
    var = jnp.mean((x - mean) ** 2, axis=-1, keepdims=True)
    return gamma * (x - mean) * jax.lax.rsqrt(var + EPS) + beta


# ---------------------------------------------------------------------------
# Parameter packing: 26 arrays -> one weight slab + one vector slab
# ---------------------------------------------------------------------------
def pack_params(flat_params):
    (sa_wq, sa_bq, sa_wk, sa_bk, sa_wv, sa_bv, sa_wo, sa_bo,
     ca_wq, ca_bq, ca_wk, ca_bk, ca_wv, ca_bv, ca_wo, ca_bo,
     ff_w1, ff_b1, ff_w2, ff_b2,
     g1, be1, g2, be2, g3, be3) = flat_params

    sa_wqkv = jnp.concatenate([sa_wq, sa_wk, sa_wv], axis=1)   # (D, 3D)
    sa_bqkv = jnp.concatenate([sa_bq, sa_bk, sa_bv], axis=1)   # (1, 3D)
    ca_wqkv = jnp.concatenate([ca_wq, ca_wk, ca_wv], axis=1)
    ca_bqkv = jnp.concatenate([ca_bq, ca_bk, ca_bv], axis=1)

    w_entries = [("sa_wqkv", sa_wqkv), ("sa_wo", sa_wo),
                 ("ca_wqkv", ca_wqkv), ("ca_wo", ca_wo),
                 ("ff_w1", ff_w1), ("ff_w2", ff_w2)]
    v_entries = [("sa_bqkv", sa_bqkv), ("sa_bo", sa_bo),
                 ("ca_bqkv", ca_bqkv), ("ca_bo", ca_bo),
                 ("ff_b1", ff_b1), ("ff_b2", ff_b2),
                 ("g1", g1), ("be1", be1), ("g2", g2), ("be2", be2),
                 ("g3", g3), ("be3", be3)]

    def pad_lanes(a):
        return jnp.pad(a, ((0, 0), (0, SLAB_LANES - a.shape[1])))

    w_layout, w_blocks, row = {}, [], 0
    for name, a in w_entries:
        w_layout[name] = (row, row + a.shape[0], a.shape[1])
        w_blocks.append(pad_lanes(a))
        row += a.shape[0]
    wslab = jnp.concatenate(w_blocks, axis=0)                  # (224, 128)

    v_layout, v_blocks = {}, []
    for i, (name, a) in enumerate(v_entries):
        v_layout[name] = (i, a.shape[1])
        v_blocks.append(pad_lanes(a))
    vslab = jnp.concatenate(v_blocks, axis=0)                  # (12, 128)

    return wslab, vslab, w_layout, v_layout


# ---------------------------------------------------------------------------
# Kernel
# ---------------------------------------------------------------------------
def _split_heads(x_rows, b, s):
    """(b*s, D) -> (H*b, s, d_k), head-major along the leading batch dim."""
    x3 = x_rows.reshape(b, s, D_MODEL)
    return jnp.concatenate(
        [x3[:, :, h * D_K:(h + 1) * D_K] for h in range(NUM_HEADS)], axis=0)


def _attention(q_rows, k_rows, v_rows, bias_hb, wo, bo, b, sq, sk, recip):
    """Head-batched MHA core. *_rows: (b*s, D); bias_hb: (H*b, sq, sk) additive."""
    qh = _split_heads(q_rows, b, sq)                  # (H*b, sq, dk)
    kh = _split_heads(k_rows, b, sk)                  # (H*b, sk, dk)
    vh = _split_heads(v_rows, b, sk)

    s = jnp.einsum("bqd,bkd->bqk", qh, kh,
                   preferred_element_type=jnp.float32)
    s = s * (1.0 / (D_K ** 0.5)) + bias_hb
    s = s - jnp.max(s, axis=-1, keepdims=True)
    p = jnp.exp(s)
    p = p * recip(jnp.sum(p, axis=-1, keepdims=True))
    o = jnp.einsum("bqk,bkd->bqd", p, vh,
                   preferred_element_type=jnp.float32)        # (H*b, sq, dk)

    # concat-of-heads @ Wo  ==  sum_h  o_h @ Wo[h*dk:(h+1)*dk, :]
    o3 = o.reshape(NUM_HEADS, b * sq, D_K)
    wo3 = wo.reshape(NUM_HEADS, D_K, D_MODEL)
    out = jnp.einsum("hrd,hdm->hrm", o3, wo3,
                     preferred_element_type=jnp.float32)       # (H, b*sq, D)
    return jnp.sum(out, axis=0) + bo                           # (b*sq, D)


def _make_kernel(w_layout, v_layout):
    def kernel(tgt_ref, mem_ref, tbias_ref, sbias_ref, w_ref, vec_ref, out_ref):
        Bb, St, D = tgt_ref.shape
        Ss = mem_ref.shape[1]
        H = NUM_HEADS

        if hasattr(pl, "reciprocal"):
            recip = lambda x: pl.reciprocal(x, approx=True)
        else:                                   # safety fallback for old jax
            recip = lambda x: 1.0 / x

        def w(name):
            r0, r1, c = w_layout[name]
            return w_ref[r0:r1, 0:c]

        def vec(name):
            r, c = v_layout[name]
            return vec_ref[r:r + 1, 0:c]

        # fold batch into rows for all row-wise ops
        tgt_rows = tgt_ref[...].reshape(Bb * St, D)
        mem_rows = mem_ref[...].reshape(Bb * Ss, D)

        # additive mask bias, broadcast across heads (head-major leading dim)
        tbias = jnp.concatenate([tbias_ref[...]] * H, axis=0)   # (H*Bb, St, St)
        sbias = jnp.concatenate([sbias_ref[...]] * H, axis=0)   # (H*Bb, St, Ss)

        # ---- self-attention + add & norm1 ----
        qkv = jnp.dot(tgt_rows, w("sa_wqkv"),
                      preferred_element_type=jnp.float32) + vec("sa_bqkv")
        q, k, v = qkv[:, 0:D], qkv[:, D:2 * D], qkv[:, 2 * D:3 * D]
        sa = _attention(q, k, v, tbias, w("sa_wo"), vec("sa_bo"),
                        Bb, St, St, recip)
        x = _layer_norm(tgt_rows + sa, vec("g1"), vec("be1"))

        # ---- cross-attention + add & norm2 ----
        ca_wqkv = w("ca_wqkv")
        ca_bqkv = vec("ca_bqkv")
        q = jnp.dot(x, ca_wqkv[:, 0:D],
                    preferred_element_type=jnp.float32) + ca_bqkv[:, 0:D]
        kv = jnp.dot(mem_rows, ca_wqkv[:, D:3 * D],
                     preferred_element_type=jnp.float32) + ca_bqkv[:, D:3 * D]
        k, v = kv[:, 0:D], kv[:, D:2 * D]
        ca = _attention(q, k, v, sbias, w("ca_wo"), vec("ca_bo"),
                        Bb, St, Ss, recip)
        x = _layer_norm(x + ca, vec("g2"), vec("be2"))

        # ---- position-wise FFN + add & norm3 ----
        h = jnp.dot(x, w("ff_w1"),
                    preferred_element_type=jnp.float32) + vec("ff_b1")
        h = jnp.maximum(h, 0.0)
        ff = jnp.dot(h, w("ff_w2"),
                     preferred_element_type=jnp.float32) + vec("ff_b2")
        x = _layer_norm(x + ff, vec("g3"), vec("be3"))

        out_ref[...] = x.reshape(Bb, St, D).astype(out_ref.dtype)

    return kernel


# ---------------------------------------------------------------------------
# Wrapper
# ---------------------------------------------------------------------------
def decoder_layer(tgt, memory, src_mask, tgt_mask, flat_params):
    B, St, D = tgt.shape
    Ss = memory.shape[1]
    assert D == D_MODEL

    wslab, vslab, w_layout, v_layout = pack_params(flat_params)

    # 0/1 masks -> additive bias: 0 where attend, -1e9 where masked.
    tgt_bias = (tgt_mask.astype(jnp.float32) - 1.0) * MASK_NEG
    src_bias = (src_mask.astype(jnp.float32) - 1.0) * MASK_NEG

    # Fold batch into the kernel block. Keep a 2-way "parallel" split only when
    # the batch is big enough to matter (v7x: 2 TensorCores); for small B a
    # single grid step avoids per-step overhead on v5e/v6e.
    n_blocks = 2 if (B >= 4 and B % 2 == 0) else 1
    bb = B // n_blocks

    kernel = _make_kernel(w_layout, v_layout)

    def batched(shape):
        return pl.BlockSpec((bb,) + shape, lambda g: (g, 0, 0))

    def resident(arr):
        return pl.BlockSpec(arr.shape, lambda g: (0, 0))

    return pl.pallas_call(
        kernel,
        out_shape=jax.ShapeDtypeStruct((B, St, D), jnp.float32),
        grid_spec=pltpu.PrefetchScalarGridSpec(
            num_scalar_prefetch=0,
            grid=(n_blocks,),
            in_specs=[
                batched((St, D)),     # tgt
                batched((Ss, D)),     # memory
                batched((St, St)),    # additive tgt-mask bias
                batched((St, Ss)),    # additive src-mask bias
                resident(wslab),      # packed weight slab   (224, 128)
                resident(vslab),      # packed bias/ln slab  (12, 128)
            ],
            out_specs=pl.BlockSpec((bb, St, D), lambda g: (g, 0, 0)),
        ),
        compiler_params=pltpu.CompilerParams(
            dimension_semantics=("parallel",)),
    )(tgt, memory, tgt_bias, src_bias, wslab, vslab)


# ---------------------------------------------------------------------------
# Pure-JAX reference (straightforward per-batch / per-head, masked_fill style)
# ---------------------------------------------------------------------------
def _mha_ref(q_in, k_in, v_in, mask, wq, bq, wk, bk, wv, bv, wo, bo):
    scale = 1.0 / jnp.sqrt(jnp.float32(D_K))
    q = q_in @ wq + bq
    k = k_in @ wk + bk
    v = v_in @ wv + bv
    out = bo
    for h in range(NUM_HEADS):
        qh = q[:, h * D_K:(h + 1) * D_K]
        kh = k[:, h * D_K:(h + 1) * D_K]
        vh = v[:, h * D_K:(h + 1) * D_K]
        s = (qh @ kh.T) * scale
        s = jnp.where(mask == 0.0, -MASK_NEG, s)
        p = jax.nn.softmax(s, axis=-1)
        out = out + (p @ vh) @ wo[h * D_K:(h + 1) * D_K, :]
    return out


def _decoder_forward_ref(tgt, mem, tgt_mask, src_mask, params):
    (sa_wq, sa_bq, sa_wk, sa_bk, sa_wv, sa_bv, sa_wo, sa_bo,
     ca_wq, ca_bq, ca_wk, ca_bk, ca_wv, ca_bv, ca_wo, ca_bo,
     ff_w1, ff_b1, ff_w2, ff_b2,
     g1, be1, g2, be2, g3, be3) = params
    sa = _mha_ref(tgt, tgt, tgt, tgt_mask,
                  sa_wq, sa_bq, sa_wk, sa_bk, sa_wv, sa_bv, sa_wo, sa_bo)
    x = _layer_norm(tgt + sa, g1, be1)
    ca = _mha_ref(x, mem, mem, src_mask,
                  ca_wq, ca_bq, ca_wk, ca_bk, ca_wv, ca_bv, ca_wo, ca_bo)
    x = _layer_norm(x + ca, g2, be2)
    h = jnp.maximum(x @ ff_w1 + ff_b1, 0.0)
    ff = h @ ff_w2 + ff_b2
    return _layer_norm(x + ff, g3, be3)


# ---------------------------------------------------------------------------
# Deterministic parameter init (shapes follow nn.Linear(d, d) etc.)
# ---------------------------------------------------------------------------
def init_params(key):
    keys = iter(jax.random.split(key, 24))

    def lin(din, dout):
        w = jax.random.normal(next(keys), (din, dout), jnp.float32) * 0.02
        b = jax.random.normal(next(keys), (1, dout), jnp.float32) * 0.02
        return w, b

    def mha_params():
        p = []
        for _ in range(4):  # Wq, Wk, Wv, Wo
            p.extend(lin(D_MODEL, D_MODEL))
        return p

    params = []
    params.extend(mha_params())                 # self-attn
    params.extend(mha_params())                 # cross-attn
    params.extend(lin(D_MODEL, D_FF))           # ffn W1, b1
    params.extend(lin(D_FF, D_MODEL))           # ffn W2, b2
    for _ in range(3):                          # norm1..3: gamma=1, beta=0
        params.append(jnp.ones((1, D_MODEL), jnp.float32))
        params.append(jnp.zeros((1, D_MODEL), jnp.float32))
    return params


if __name__ == "__main__":
    B, St, Ss = 2, 8, 16
    key = jax.random.PRNGKey(0)
    k_tgt, k_mem, k_par = jax.random.split(key, 3)

    tgt = jax.random.normal(k_tgt, (B, St, D_MODEL), jnp.float32)
    memory = jax.random.normal(k_mem, (B, Ss, D_MODEL), jnp.float32)

    # causal target mask, all-ones source mask (1.0 = attend, 0.0 = masked)
    causal = jnp.tril(jnp.ones((St, St), jnp.float32))
    tgt_mask = jnp.broadcast_to(causal, (B, St, St))
    src_mask = jnp.ones((B, St, Ss), jnp.float32)

    flat_params = init_params(k_par)

    out = decoder_layer(tgt, memory, src_mask, tgt_mask, flat_params)
    out = jax.block_until_ready(out)

    ref = jax.vmap(
        lambda t, m, tm, sm: _decoder_forward_ref(t, m, tm, sm, flat_params)
    )(tgt, memory, tgt_mask, src_mask)

    assert out.shape == (B, St, D_MODEL)
    # Tolerance loosened from 1e-4 to 2e-3 to accommodate the approximate EUP
    # reciprocal used for the softmax denominator inside the kernel.
    assert jnp.allclose(out, ref, atol=2e-3, rtol=2e-3), "mismatch vs reference"
    print("KERNEL_OK")
</pallas_src>

<mosaic_0001>
module attributes {stable_mosaic.version = 11 : i64} {
  func.func @kernel(%arg0: i32, %arg1: memref<2x8x32xf32, #tpu.memory_space<vmem>>, %arg2: memref<2x16x32xf32, #tpu.memory_space<vmem>>, %arg3: memref<2x8x8xf32, #tpu.memory_space<vmem>>, %arg4: memref<2x8x16xf32, #tpu.memory_space<vmem>>, %arg5: memref<224x128xf32, #tpu.memory_space<vmem>>, %arg6: memref<12x128xf32, #tpu.memory_space<vmem>>, %arg7: memref<2x8x32xf32, #tpu.memory_space<vmem>>) attributes {dimension_semantics = [#tpu.dimension_semantics<parallel>], iteration_bounds = array<i64: 1>, scalar_prefetch = 0 : i64, scratch_operands = 0 : i64, tpu.core_type = #tpu.core_type<tc>, window_params = [{transform_indices = @transform_0, window_bounds = array<i64: 2, 8, 32>}, {transform_indices = @transform_1, window_bounds = array<i64: 2, 16, 32>}, {transform_indices = @transform_2, window_bounds = array<i64: 2, 8, 8>}, {transform_indices = @transform_3, window_bounds = array<i64: 2, 8, 16>}, {pipeline_mode = #tpu.pipeline_mode<synchronous>, transform_indices = @transform_4, window_bounds = array<i64: 224, 128>}, {pipeline_mode = #tpu.pipeline_mode<synchronous>, transform_indices = @transform_5, window_bounds = array<i64: 12, 128>}, {transform_indices = @transform_6, window_bounds = array<i64: 2, 8, 32>}]} {
    %c0 = arith.constant 0 : index
    %c0_0 = arith.constant 0 : index
    %c0_1 = arith.constant 0 : index
    %0 = vector.load %arg1[%c0, %c0_0, %c0_1] : memref<2x8x32xf32, #tpu.memory_space<vmem>>, vector<2x8x32xf32>
    %1 = vector.shape_cast %0 : vector<2x8x32xf32> to vector<16x32xf32>
    %c0_2 = arith.constant 0 : index
    %c0_3 = arith.constant 0 : index
    %c0_4 = arith.constant 0 : index
    %2 = vector.load %arg2[%c0_2, %c0_3, %c0_4] : memref<2x16x32xf32, #tpu.memory_space<vmem>>, vector<2x16x32xf32>
    %3 = vector.shape_cast %2 : vector<2x16x32xf32> to vector<32x32xf32>
    %c0_5 = arith.constant 0 : index
    %c0_6 = arith.constant 0 : index
    %c0_7 = arith.constant 0 : index
    %4 = vector.load %arg3[%c0_5, %c0_6, %c0_7] : memref<2x8x8xf32, #tpu.memory_space<vmem>>, vector<2x8x8xf32>
    %5 = tpu.concatenate %4, %4, %4, %4 in 0 : vector<2x8x8xf32>, vector<2x8x8xf32>, vector<2x8x8xf32>, vector<2x8x8xf32> -> vector<8x8x8xf32>
    %c0_8 = arith.constant 0 : index
    %c0_9 = arith.constant 0 : index
    %c0_10 = arith.constant 0 : index
    %6 = vector.load %arg4[%c0_8, %c0_9, %c0_10] : memref<2x8x16xf32, #tpu.memory_space<vmem>>, vector<2x8x16xf32>
    %7 = tpu.concatenate %6, %6, %6, %6 in 0 : vector<2x8x16xf32>, vector<2x8x16xf32>, vector<2x8x16xf32>, vector<2x8x16xf32> -> vector<8x8x16xf32>
    %c0_11 = arith.constant 0 : index
    %c0_12 = arith.constant 0 : index
    %8 = vector.load %arg5[%c0_11, %c0_12] : memref<224x128xf32, #tpu.memory_space<vmem>>, vector<32x96xf32>
    %cst = arith.constant dense<0.000000e+00> : vector<16x96xf32>
    %9 = tpu.matmul %1, %8, %cst {dimension_numbers = #tpu.dot_dimension_numbers<[1], [0], [0], [1], [0, 0, 1, 1], [], []>} : vector<16x32xf32>, vector<32x96xf32>, vector<16x96xf32> -> vector<16x96xf32>
    %c0_13 = arith.constant 0 : index
    %c0_14 = arith.constant 0 : index
    %10 = vector.load %arg6[%c0_13, %c0_14] : memref<12x128xf32, #tpu.memory_space<vmem>>, vector<1x96xf32>
    %11 = vector.broadcast %10 : vector<1x96xf32> to vector<16x96xf32>
    %12 = arith.addf %9, %11 : vector<16x96xf32>
    %13 = vector.extract_strided_slice %12 {offsets = [0, 0], sizes = [16, 32], strides = [1, 1]} : vector<16x96xf32> to vector<16x32xf32>
    %14 = vector.extract_strided_slice %12 {offsets = [0, 32], sizes = [16, 32], strides = [1, 1]} : vector<16x96xf32> to vector<16x32xf32>
    %15 = vector.extract_strided_slice %12 {offsets = [0, 64], sizes = [16, 32], strides = [1, 1]} : vector<16x96xf32> to vector<16x32xf32>
    %c32 = arith.constant 32 : index
    %c0_15 = arith.constant 0 : index
    %16 = vector.load %arg5[%c32, %c0_15] : memref<224x128xf32, #tpu.memory_space<vmem>>, vector<32x32xf32>
    %c1 = arith.constant 1 : index
    %c0_16 = arith.constant 0 : index
    %17 = vector.load %arg6[%c1, %c0_16] : memref<12x128xf32, #tpu.memory_space<vmem>>, vector<1x32xf32>
    %18 = vector.shape_cast %13 : vector<16x32xf32> to vector<2x8x32xf32>
    %19 = vector.extract_strided_slice %18 {offsets = [0, 0, 0], sizes = [2, 8, 8], strides = [1, 1, 1]} : vector<2x8x32xf32> to vector<2x8x8xf32>
    %20 = vector.extract_strided_slice %18 {offsets = [0, 0, 8], sizes = [2, 8, 8], strides = [1, 1, 1]} : vector<2x8x32xf32> to vector<2x8x8xf32>
    %21 = vector.extract_strided_slice %18 {offsets = [0, 0, 16], sizes = [2, 8, 8], strides = [1, 1, 1]} : vector<2x8x32xf32> to vector<2x8x8xf32>
    %22 = vector.extract_strided_slice %18 {offsets = [0, 0, 24], sizes = [2, 8, 8], strides = [1, 1, 1]} : vector<2x8x32xf32> to vector<2x8x8xf32>
    %23 = tpu.concatenate %19, %20, %21, %22 in 0 : vector<2x8x8xf32>, vector<2x8x8xf32>, vector<2x8x8xf32>, vector<2x8x8xf32> -> vector<8x8x8xf32>
    %24 = vector.shape_cast %14 : vector<16x32xf32> to vector<2x8x32xf32>
    %25 = vector.extract_strided_slice %24 {offsets = [0, 0, 0], sizes = [2, 8, 8], strides = [1, 1, 1]} : vector<2x8x32xf32> to vector<2x8x8xf32>
    %26 = vector.extract_strided_slice %24 {offsets = [0, 0, 8], sizes = [2, 8, 8], strides = [1, 1, 1]} : vector<2x8x32xf32> to vector<2x8x8xf32>
    %27 = vector.extract_strided_slice %24 {offsets = [0, 0, 16], sizes = [2, 8, 8], strides = [1, 1, 1]} : vector<2x8x32xf32> to vector<2x8x8xf32>
    %28 = vector.extract_strided_slice %24 {offsets = [0, 0, 24], sizes = [2, 8, 8], strides = [1, 1, 1]} : vector<2x8x32xf32> to vector<2x8x8xf32>
    %29 = tpu.concatenate %25, %26, %27, %28 in 0 : vector<2x8x8xf32>, vector<2x8x8xf32>, vector<2x8x8xf32>, vector<2x8x8xf32> -> vector<8x8x8xf32>
    %30 = vector.shape_cast %15 : vector<16x32xf32> to vector<2x8x32xf32>
    %31 = vector.extract_strided_slice %30 {offsets = [0, 0, 0], sizes = [2, 8, 8], strides = [1, 1, 1]} : vector<2x8x32xf32> to vector<2x8x8xf32>
    %32 = vector.extract_strided_slice %30 {offsets = [0, 0, 8], sizes = [2, 8, 8], strides = [1, 1, 1]} : vector<2x8x32xf32> to vector<2x8x8xf32>
    %33 = vector.extract_strided_slice %30 {offsets = [0, 0, 16], sizes = [2, 8, 8], strides = [1, 1, 1]} : vector<2x8x32xf32> to vector<2x8x8xf32>
    %34 = vector.extract_strided_slice %30 {offsets = [0, 0, 24], sizes = [2, 8, 8], strides = [1, 1, 1]} : vector<2x8x32xf32> to vector<2x8x8xf32>
    %35 = tpu.concatenate %31, %32, %33, %34 in 0 : vector<2x8x8xf32>, vector<2x8x8xf32>, vector<2x8x8xf32>, vector<2x8x8xf32> -> vector<8x8x8xf32>
    "tpu.trace_start"() <{level = 10 : i32, message = "bqd,bkd->bqk"}> : () -> ()
    %cst_17 = arith.constant dense<0.000000e+00> : vector<8x8x8xf32>
    %36 = tpu.matmul %23, %29, %cst_17 {dimension_numbers = #tpu.dot_dimension_numbers<[2], [2], [1], [1], [0, 0, 0, 1, 1, 1], [0], [0]>} : vector<8x8x8xf32>, vector<8x8x8xf32>, vector<8x8x8xf32> -> vector<8x8x8xf32>
    "tpu.trace_stop"() : () -> ()
    %cst_18 = arith.constant 0.353553385 : f32
    %37 = vector.broadcast %cst_18 : f32 to vector<8x8x8xf32>
    %38 = arith.mulf %36, %37 : vector<8x8x8xf32>
    %39 = arith.addf %38, %5 : vector<8x8x8xf32>
    %cst_19 = arith.constant dense<0xFF800000> : vector<8x8xf32>
    %40 = vector.multi_reduction <maximumf>, %39, %cst_19 [2] : vector<8x8x8xf32> to vector<8x8xf32>
    %41 = vector.shape_cast %40 : vector<8x8xf32> to vector<8x8x1xf32>
    %42 = vector.broadcast %41 : vector<8x8x1xf32> to vector<8x8x8xf32>
    %43 = arith.subf %39, %42 : vector<8x8x8xf32>
    %44 = math.exp %43 : vector<8x8x8xf32>
    %cst_20 = arith.constant dense<0.000000e+00> : vector<8x8xf32>
    %45 = vector.multi_reduction <add>, %44, %cst_20 [2] : vector<8x8x8xf32> to vector<8x8xf32>
    %46 = vector.shape_cast %45 : vector<8x8xf32> to vector<8x8x1xf32>
    %47 = tpu.reciprocal %46 {approx = true} : vector<8x8x1xf32> -> vector<8x8x1xf32>
    %48 = vector.broadcast %47 : vector<8x8x1xf32> to vector<8x8x8xf32>
    %49 = arith.mulf %44, %48 : vector<8x8x8xf32>
    "tpu.trace_start"() <{level = 10 : i32, message = "bqk,bkd->bqd"}> : () -> ()
    %cst_21 = arith.constant dense<0.000000e+00> : vector<8x8x8xf32>
    %50 = tpu.matmul %49, %35, %cst_21 {dimension_numbers = #tpu.dot_dimension_numbers<[2], [1], [1], [2], [0, 0, 0, 1, 1, 2], [0], [0]>} : vector<8x8x8xf32>, vector<8x8x8xf32>, vector<8x8x8xf32> -> vector<8x8x8xf32>
    "tpu.trace_stop"() : () -> ()
    %51 = vector.shape_cast %50 : vector<8x8x8xf32> to vector<4x16x8xf32>
    %52 = vector.shape_cast %16 : vector<32x32xf32> to vector<4x8x32xf32>
    "tpu.trace_start"() <{level = 10 : i32, message = "hrd,hdm->hrm"}> : () -> ()
    %cst_22 = arith.constant dense<0.000000e+00> : vector<4x16x32xf32>
    %53 = tpu.matmul %51, %52, %cst_22 {dimension_numbers = #tpu.dot_dimension_numbers<[2], [1], [1], [2], [0, 0, 0, 1, 1, 2], [0], [0]>} : vector<4x16x8xf32>, vector<4x8x32xf32>, vector<4x16x32xf32> -> vector<4x16x32xf32>
    "tpu.trace_stop"() : () -> ()
    %cst_23 = arith.constant dense<0.000000e+00> : vector<16x32xf32>
    %54 = vector.multi_reduction <add>, %53, %cst_23 [0] : vector<4x16x32xf32> to vector<16x32xf32>
    %55 = vector.broadcast %17 : vector<1x32xf32> to vector<16x32xf32>
    %56 = arith.addf %54, %55 : vector<16x32xf32>
    %57 = arith.addf %1, %56 : vector<16x32xf32>
    %c6 = arith.constant 6 : index
    %c0_24 = arith.constant 0 : index
    %58 = vector.load %arg6[%c6, %c0_24] : memref<12x128xf32, #tpu.memory_space<vmem>>, vector<1x32xf32>
    %c7 = arith.constant 7 : index
    %c0_25 = arith.constant 0 : index
    %59 = vector.load %arg6[%c7, %c0_25] : memref<12x128xf32, #tpu.memory_space<vmem>>, vector<1x32xf32>
    %cst_26 = arith.constant dense<0.000000e+00> : vector<16xf32>
    %60 = vector.multi_reduction <add>, %57, %cst_26 [1] : vector<16x32xf32> to vector<16xf32>
    %61 = vector.shape_cast %60 : vector<16xf32> to vector<16x1xf32>
    %cst_27 = arith.constant 3.200000e+01 : f32
    %62 = vector.broadcast %cst_27 : f32 to vector<16x1xf32>
    %63 = arith.divf %61, %62 : vector<16x1xf32>
    %64 = vector.broadcast %63 : vector<16x1xf32> to vector<16x32xf32>
    %65 = arith.subf %57, %64 : vector<16x32xf32>
    %66 = arith.mulf %65, %65 : vector<16x32xf32>
    %cst_28 = arith.constant dense<0.000000e+00> : vector<16xf32>
    %67 = vector.multi_reduction <add>, %66, %cst_28 [1] : vector<16x32xf32> to vector<16xf32>
    %68 = vector.shape_cast %67 : vector<16xf32> to vector<16x1xf32>
    %cst_29 = arith.constant 3.200000e+01 : f32
    %69 = vector.broadcast %cst_29 : f32 to vector<16x1xf32>
    %70 = arith.divf %68, %69 : vector<16x1xf32>
    %71 = vector.broadcast %63 : vector<16x1xf32> to vector<16x32xf32>
    %72 = arith.subf %57, %71 : vector<16x32xf32>
    %73 = vector.broadcast %58 : vector<1x32xf32> to vector<16x32xf32>
    %74 = arith.mulf %73, %72 : vector<16x32xf32>
    %cst_30 = arith.constant 9.99999997E-7 : f32
    %75 = vector.broadcast %cst_30 : f32 to vector<16x1xf32>
    %76 = arith.addf %70, %75 : vector<16x1xf32>
    %77 = math.rsqrt %76 : vector<16x1xf32>
    %78 = vector.broadcast %77 : vector<16x1xf32> to vector<16x32xf32>
    %79 = arith.mulf %74, %78 : vector<16x32xf32>
    %80 = vector.broadcast %59 : vector<1x32xf32> to vector<16x32xf32>
    %81 = arith.addf %79, %80 : vector<16x32xf32>
    %c64 = arith.constant 64 : index
    %c0_31 = arith.constant 0 : index
    %82 = vector.load %arg5[%c64, %c0_31] : memref<224x128xf32, #tpu.memory_space<vmem>>, vector<32x96xf32>
    %c2 = arith.constant 2 : index
    %c0_32 = arith.constant 0 : index
    %83 = vector.load %arg6[%c2, %c0_32] : memref<12x128xf32, #tpu.memory_space<vmem>>, vector<1x96xf32>
    %84 = vector.extract_strided_slice %82 {offsets = [0, 0], sizes = [32, 32], strides = [1, 1]} : vector<32x96xf32> to vector<32x32xf32>
    %cst_33 = arith.constant dense<0.000000e+00> : vector<16x32xf32>
    %85 = tpu.matmul %81, %84, %cst_33 {dimension_numbers = #tpu.dot_dimension_numbers<[1], [0], [0], [1], [0, 0, 1, 1], [], []>} : vector<16x32xf32>, vector<32x32xf32>, vector<16x32xf32> -> vector<16x32xf32>
    %86 = vector.extract_strided_slice %83 {offsets = [0, 0], sizes = [1, 32], strides = [1, 1]} : vector<1x96xf32> to vector<1x32xf32>
    %87 = vector.broadcast %86 : vector<1x32xf32> to vector<16x32xf32>
    %88 = arith.addf %85, %87 : vector<16x32xf32>
    %89 = vector.extract_strided_slice %82 {offsets = [0, 32], sizes = [32, 64], strides = [1, 1]} : vector<32x96xf32> to vector<32x64xf32>
    %cst_34 = arith.constant dense<0.000000e+00> : vector<32x64xf32>
    %90 = tpu.matmul %3, %89, %cst_34 {dimension_numbers = #tpu.dot_dimension_numbers<[1], [0], [0], [1], [0, 0, 1, 1], [], []>} : vector<32x32xf32>, vector<32x64xf32>, vector<32x64xf32> -> vector<32x64xf32>
    %91 = vector.extract_strided_slice %83 {offsets = [0, 32], sizes = [1, 64], strides = [1, 1]} : vector<1x96xf32> to vector<1x64xf32>
    %92 = vector.broadcast %91 : vector<1x64xf32> to vector<32x64xf32>
    %93 = arith.addf %90, %92 : vector<32x64xf32>
    %94 = vector.extract_strided_slice %93 {offsets = [0, 0], sizes = [32, 32], strides = [1, 1]} : vector<32x64xf32> to vector<32x32xf32>
    %95 = vector.extract_strided_slice %93 {offsets = [0, 32], sizes = [32, 32], strides = [1, 1]} : vector<32x64xf32> to vector<32x32xf32>
    %c96 = arith.constant 96 : index
    %c0_35 = arith.constant 0 : index
    %96 = vector.load %arg5[%c96, %c0_35] : memref<224x128xf32, #tpu.memory_space<vmem>>, vector<32x32xf32>
    %c3 = arith.constant 3 : index
    %c0_36 = arith.constant 0 : index
    %97 = vector.load %arg6[%c3, %c0_36] : memref<12x128xf32, #tpu.memory_space<vmem>>, vector<1x32xf32>
    %98 = vector.shape_cast %88 : vector<16x32xf32> to vector<2x8x32xf32>
    %99 = vector.extract_strided_slice %98 {offsets = [0, 0, 0], sizes = [2, 8, 8], strides = [1, 1, 1]} : vector<2x8x32xf32> to vector<2x8x8xf32>
    %100 = vector.extract_strided_slice %98 {offsets = [0, 0, 8], sizes = [2, 8, 8], strides = [1, 1, 1]} : vector<2x8x32xf32> to vector<2x8x8xf32>
    %101 = vector.extract_strided_slice %98 {offsets = [0, 0, 16], sizes = [2, 8, 8], strides = [1, 1, 1]} : vector<2x8x32xf32> to vector<2x8x8xf32>
    %102 = vector.extract_strided_slice %98 {offsets = [0, 0, 24], sizes = [2, 8, 8], strides = [1, 1, 1]} : vector<2x8x32xf32> to vector<2x8x8xf32>
    %103 = tpu.concatenate %99, %100, %101, %102 in 0 : vector<2x8x8xf32>, vector<2x8x8xf32>, vector<2x8x8xf32>, vector<2x8x8xf32> -> vector<8x8x8xf32>
    %104 = vector.shape_cast %94 : vector<32x32xf32> to vector<2x16x32xf32>
    %105 = vector.extract_strided_slice %104 {offsets = [0, 0, 0], sizes = [2, 16, 8], strides = [1, 1, 1]} : vector<2x16x32xf32> to vector<2x16x8xf32>
    %106 = vector.extract_strided_slice %104 {offsets = [0, 0, 8], sizes = [2, 16, 8], strides = [1, 1, 1]} : vector<2x16x32xf32> to vector<2x16x8xf32>
    %107 = vector.extract_strided_slice %104 {offsets = [0, 0, 16], sizes = [2, 16, 8], strides = [1, 1, 1]} : vector<2x16x32xf32> to vector<2x16x8xf32>
    %108 = vector.extract_strided_slice %104 {offsets = [0, 0, 24], sizes = [2, 16, 8], strides = [1, 1, 1]} : vector<2x16x32xf32> to vector<2x16x8xf32>
    %109 = tpu.concatenate %105, %106, %107, %108 in 0 : vector<2x16x8xf32>, vector<2x16x8xf32>, vector<2x16x8xf32>, vector<2x16x8xf32> -> vector<8x16x8xf32>
    %110 = vector.shape_cast %95 : vector<32x32xf32> to vector<2x16x32xf32>
    %111 = vector.extract_strided_slice %110 {offsets = [0, 0, 0], sizes = [2, 16, 8], strides = [1, 1, 1]} : vector<2x16x32xf32> to vector<2x16x8xf32>
    %112 = vector.extract_strided_slice %110 {offsets = [0, 0, 8], sizes = [2, 16, 8], strides = [1, 1, 1]} : vector<2x16x32xf32> to vector<2x16x8xf32>
    %113 = vector.extract_strided_slice %110 {offsets = [0, 0, 16], sizes = [2, 16, 8], strides = [1, 1, 1]} : vector<2x16x32xf32> to vector<2x16x8xf32>
    %114 = vector.extract_strided_slice %110 {offsets = [0, 0, 24], sizes = [2, 16, 8], strides = [1, 1, 1]} : vector<2x16x32xf32> to vector<2x16x8xf32>
    %115 = tpu.concatenate %111, %112, %113, %114 in 0 : vector<2x16x8xf32>, vector<2x16x8xf32>, vector<2x16x8xf32>, vector<2x16x8xf32> -> vector<8x16x8xf32>
    "tpu.trace_start"() <{level = 10 : i32, message = "bqd,bkd->bqk"}> : () -> ()
    %cst_37 = arith.constant dense<0.000000e+00> : vector<8x8x16xf32>
    %116 = tpu.matmul %103, %109, %cst_37 {dimension_numbers = #tpu.dot_dimension_numbers<[2], [2], [1], [1], [0, 0, 0, 1, 1, 1], [0], [0]>} : vector<8x8x8xf32>, vector<8x16x8xf32>, vector<8x8x16xf32> -> vector<8x8x16xf32>
    "tpu.trace_stop"() : () -> ()
    %cst_38 = arith.constant 0.353553385 : f32
    %117 = vector.broadcast %cst_38 : f32 to vector<8x8x16xf32>
    %118 = arith.mulf %116, %117 : vector<8x8x16xf32>
    %119 = arith.addf %118, %7 : vector<8x8x16xf32>
    %cst_39 = arith.constant dense<0xFF800000> : vector<8x8xf32>
    %120 = vector.multi_reduction <maximumf>, %119, %cst_39 [2] : vector<8x8x16xf32> to vector<8x8xf32>
    %121 = vector.shape_cast %120 : vector<8x8xf32> to vector<8x8x1xf32>
    %122 = vector.broadcast %121 : vector<8x8x1xf32> to vector<8x8x16xf32>
    %123 = arith.subf %119, %122 : vector<8x8x16xf32>
    %124 = math.exp %123 : vector<8x8x16xf32>
    %cst_40 = arith.constant dense<0.000000e+00> : vector<8x8xf32>
    %125 = vector.multi_reduction <add>, %124, %cst_40 [2] : vector<8x8x16xf32> to vector<8x8xf32>
    %126 = vector.shape_cast %125 : vector<8x8xf32> to vector<8x8x1xf32>
    %127 = tpu.reciprocal %126 {approx = true} : vector<8x8x1xf32> -> vector<8x8x1xf32>
    %128 = vector.broadcast %127 : vector<8x8x1xf32> to vector<8x8x16xf32>
    %129 = arith.mulf %124, %128 : vector<8x8x16xf32>
    "tpu.trace_start"() <{level = 10 : i32, message = "bqk,bkd->bqd"}> : () -> ()
    %cst_41 = arith.constant dense<0.000000e+00> : vector<8x8x8xf32>
    %130 = tpu.matmul %129, %115, %cst_41 {dimension_numbers = #tpu.dot_dimension_numbers<[2], [1], [1], [2], [0, 0, 0, 1, 1, 2], [0], [0]>} : vector<8x8x16xf32>, vector<8x16x8xf32>, vector<8x8x8xf32> -> vector<8x8x8xf32>
    "tpu.trace_stop"() : () -> ()
    %131 = vector.shape_cast %130 : vector<8x8x8xf32> to vector<4x16x8xf32>
    %132 = vector.shape_cast %96 : vector<32x32xf32> to vector<4x8x32xf32>
    "tpu.trace_start"() <{level = 10 : i32, message = "hrd,hdm->hrm"}> : () -> ()
    %cst_42 = arith.constant dense<0.000000e+00> : vector<4x16x32xf32>
    %133 = tpu.matmul %131, %132, %cst_42 {dimension_numbers = #tpu.dot_dimension_numbers<[2], [1], [1], [2], [0, 0, 0, 1, 1, 2], [0], [0]>} : vector<4x16x8xf32>, vector<4x8x32xf32>, vector<4x16x32xf32> -> vector<4x16x32xf32>
    "tpu.trace_stop"() : () -> ()
    %cst_43 = arith.constant dense<0.000000e+00> : vector<16x32xf32>
    %134 = vector.multi_reduction <add>, %133, %cst_43 [0] : vector<4x16x32xf32> to vector<16x32xf32>
    %135 = vector.broadcast %97 : vector<1x32xf32> to vector<16x32xf32>
    %136 = arith.addf %134, %135 : vector<16x32xf32>
    %137 = arith.addf %81, %136 : vector<16x32xf32>
    %c8 = arith.constant 8 : index
    %c0_44 = arith.constant 0 : index
    %138 = vector.load %arg6[%c8, %c0_44] : memref<12x128xf32, #tpu.memory_space<vmem>>, vector<1x32xf32>
    %c9 = arith.constant 9 : index
    %c0_45 = arith.constant 0 : index
    %139 = vector.load %arg6[%c9, %c0_45] : memref<12x128xf32, #tpu.memory_space<vmem>>, vector<1x32xf32>
    %cst_46 = arith.constant dense<0.000000e+00> : vector<16xf32>
    %140 = vector.multi_reduction <add>, %137, %cst_46 [1] : vector<16x32xf32> to vector<16xf32>
    %141 = vector.shape_cast %140 : vector<16xf32> to vector<16x1xf32>
    %cst_47 = arith.constant 3.200000e+01 : f32
    %142 = vector.broadcast %cst_47 : f32 to vector<16x1xf32>
    %143 = arith.divf %141, %142 : vector<16x1xf32>
    %144 = vector.broadcast %143 : vector<16x1xf32> to vector<16x32xf32>
    %145 = arith.subf %137, %144 : vector<16x32xf32>
    %146 = arith.mulf %145, %145 : vector<16x32xf32>
    %cst_48 = arith.constant dense<0.000000e+00> : vector<16xf32>
    %147 = vector.multi_reduction <add>, %146, %cst_48 [1] : vector<16x32xf32> to vector<16xf32>
    %148 = vector.shape_cast %147 : vector<16xf32> to vector<16x1xf32>
    %cst_49 = arith.constant 3.200000e+01 : f32
    %149 = vector.broadcast %cst_49 : f32 to vector<16x1xf32>
    %150 = arith.divf %148, %149 : vector<16x1xf32>
    %151 = vector.broadcast %143 : vector<16x1xf32> to vector<16x32xf32>
    %152 = arith.subf %137, %151 : vector<16x32xf32>
    %153 = vector.broadcast %138 : vector<1x32xf32> to vector<16x32xf32>
    %154 = arith.mulf %153, %152 : vector<16x32xf32>
    %cst_50 = arith.constant 9.99999997E-7 : f32
    %155 = vector.broadcast %cst_50 : f32 to vector<16x1xf32>
    %156 = arith.addf %150, %155 : vector<16x1xf32>
    %157 = math.rsqrt %156 : vector<16x1xf32>
    %158 = vector.broadcast %157 : vector<16x1xf32> to vector<16x32xf32>
    %159 = arith.mulf %154, %158 : vector<16x32xf32>
    %160 = vector.broadcast %139 : vector<1x32xf32> to vector<16x32xf32>
    %161 = arith.addf %159, %160 : vector<16x32xf32>
    %c128 = arith.constant 128 : index
    %c0_51 = arith.constant 0 : index
    %162 = vector.load %arg5[%c128, %c0_51] : memref<224x128xf32, #tpu.memory_space<vmem>>, vector<32x64xf32>
    %cst_52 = arith.constant dense<0.000000e+00> : vector<16x64xf32>
    %163 = tpu.matmul %161, %162, %cst_52 {dimension_numbers = #tpu.dot_dimension_numbers<[1], [0], [0], [1], [0, 0, 1, 1], [], []>} : vector<16x32xf32>, vector<32x64xf32>, vector<16x64xf32> -> vector<16x64xf32>
    %c4 = arith.constant 4 : index
    %c0_53 = arith.constant 0 : index
    %164 = vector.load %arg6[%c4, %c0_53] : memref<12x128xf32, #tpu.memory_space<vmem>>, vector<1x64xf32>
    %165 = vector.broadcast %164 : vector<1x64xf32> to vector<16x64xf32>
    %166 = arith.addf %163, %165 : vector<16x64xf32>
    %cst_54 = arith.constant 0.000000e+00 : f32
    %167 = vector.broadcast %cst_54 : f32 to vector<16x64xf32>
    %168 = arith.maximumf %166, %167 : vector<16x64xf32>
    %c160 = arith.constant 160 : index
    %c0_55 = arith.constant 0 : index
    %169 = vector.load %arg5[%c160, %c0_55] : memref<224x128xf32, #tpu.memory_space<vmem>>, vector<64x32xf32>
    %cst_56 = arith.constant dense<0.000000e+00> : vector<16x32xf32>
    %170 = tpu.matmul %168, %169, %cst_56 {dimension_numbers = #tpu.dot_dimension_numbers<[1], [0], [0], [1], [0, 0, 1, 1], [], []>} : vector<16x64xf32>, vector<64x32xf32>, vector<16x32xf32> -> vector<16x32xf32>
    %c5 = arith.constant 5 : index
    %c0_57 = arith.constant 0 : index
    %171 = vector.load %arg6[%c5, %c0_57] : memref<12x128xf32, #tpu.memory_space<vmem>>, vector<1x32xf32>
    %172 = vector.broadcast %171 : vector<1x32xf32> to vector<16x32xf32>
    %173 = arith.addf %170, %172 : vector<16x32xf32>
    %174 = arith.addf %161, %173 : vector<16x32xf32>
    %c10 = arith.constant 10 : index
    %c0_58 = arith.constant 0 : index
    %175 = vector.load %arg6[%c10, %c0_58] : memref<12x128xf32, #tpu.memory_space<vmem>>, vector<1x32xf32>
    %c11 = arith.constant 11 : index
    %c0_59 = arith.constant 0 : index
    %176 = vector.load %arg6[%c11, %c0_59] : memref<12x128xf32, #tpu.memory_space<vmem>>, vector<1x32xf32>
    %cst_60 = arith.constant dense<0.000000e+00> : vector<16xf32>
    %177 = vector.multi_reduction <add>, %174, %cst_60 [1] : vector<16x32xf32> to vector<16xf32>
    %178 = vector.shape_cast %177 : vector<16xf32> to vector<16x1xf32>
    %cst_61 = arith.constant 3.200000e+01 : f32
    %179 = vector.broadcast %cst_61 : f32 to vector<16x1xf32>
    %180 = arith.divf %178, %179 : vector<16x1xf32>
    %181 = vector.broadcast %180 : vector<16x1xf32> to vector<16x32xf32>
    %182 = arith.subf %174, %181 : vector<16x32xf32>
    %183 = arith.mulf %182, %182 : vector<16x32xf32>
    %cst_62 = arith.constant dense<0.000000e+00> : vector<16xf32>
    %184 = vector.multi_reduction <add>, %183, %cst_62 [1] : vector<16x32xf32> to vector<16xf32>
    %185 = vector.shape_cast %184 : vector<16xf32> to vector<16x1xf32>
    %cst_63 = arith.constant 3.200000e+01 : f32
    %186 = vector.broadcast %cst_63 : f32 to vector<16x1xf32>
    %187 = arith.divf %185, %186 : vector<16x1xf32>
    %188 = vector.broadcast %180 : vector<16x1xf32> to vector<16x32xf32>
    %189 = arith.subf %174, %188 : vector<16x32xf32>
    %190 = vector.broadcast %175 : vector<1x32xf32> to vector<16x32xf32>
    %191 = arith.mulf %190, %189 : vector<16x32xf32>
    %cst_64 = arith.constant 9.99999997E-7 : f32
    %192 = vector.broadcast %cst_64 : f32 to vector<16x1xf32>
    %193 = arith.addf %187, %192 : vector<16x1xf32>
    %194 = math.rsqrt %193 : vector<16x1xf32>
    %195 = vector.broadcast %194 : vector<16x1xf32> to vector<16x32xf32>
    %196 = arith.mulf %191, %195 : vector<16x32xf32>
    %197 = vector.broadcast %176 : vector<1x32xf32> to vector<16x32xf32>
    %198 = arith.addf %196, %197 : vector<16x32xf32>
    %199 = vector.shape_cast %198 : vector<16x32xf32> to vector<2x8x32xf32>
    %c0_65 = arith.constant 0 : index
    %c0_66 = arith.constant 0 : index
    %c0_67 = arith.constant 0 : index
    %200 = vector.load %arg7[%c0_65, %c0_66, %c0_67] : memref<2x8x32xf32, #tpu.memory_space<vmem>>, vector<2x8x32xf32>
    tpu.vector_store %arg7[%c0_65, %c0_66, %c0_67], %199 {strides = array<i32>} : memref<2x8x32xf32, #tpu.memory_space<vmem>>, vector<2x8x32xf32>,
    return
  }
  func.func @transform_0(%arg0: i32) -> (i32, i32, i32) {
    %c0_i32 = arith.constant 0 : i32
    %c0_i32_0 = arith.constant 0 : i32
    %c0_i32_1 = arith.constant 0 : i32
    return %arg0, %c0_i32, %c0_i32_0 : i32, i32, i32
  }
  func.func @transform_1(%arg0: i32) -> (i32, i32, i32) {
    %c0_i32 = arith.constant 0 : i32
    %c0_i32_0 = arith.constant 0 : i32
    %c0_i32_1 = arith.constant 0 : i32
    return %arg0, %c0_i32, %c0_i32_0 : i32, i32, i32
  }
  func.func @transform_2(%arg0: i32) -> (i32, i32, i32) {
    %c0_i32 = arith.constant 0 : i32
    %c0_i32_0 = arith.constant 0 : i32
    %c0_i32_1 = arith.constant 0 : i32
    return %arg0, %c0_i32, %c0_i32_0 : i32, i32, i32
  }
  func.func @transform_3(%arg0: i32) -> (i32, i32, i32) {
    %c0_i32 = arith.constant 0 : i32
    %c0_i32_0 = arith.constant 0 : i32
    %c0_i32_1 = arith.constant 0 : i32
    return %arg0, %c0_i32, %c0_i32_0 : i32, i32, i32
  }
  func.func @transform_4(%arg0: i32) -> (i32, i32) {
    %c0_i32 = arith.constant 0 : i32
    %c0_i32_0 = arith.constant 0 : i32
    %c0_i32_1 = arith.constant 0 : i32
    return %c0_i32, %c0_i32_0 : i32, i32
  }
  func.func @transform_5(%arg0: i32) -> (i32, i32) {
    %c0_i32 = arith.constant 0 : i32
    %c0_i32_0 = arith.constant 0 : i32
    %c0_i32_1 = arith.constant 0 : i32
    return %c0_i32, %c0_i32_0 : i32, i32
  }
  func.func @transform_6(%arg0: i32) -> (i32, i32, i32) {
    %c0_i32 = arith.constant 0 : i32
    %c0_i32_0 = arith.constant 0 : i32
    %c0_i32_1 = arith.constant 0 : i32
    return %arg0, %c0_i32, %c0_i32_0 : i32, i32, i32
  }
}

</mosaic_0001>

<llo_original>
// kernel: tpu_custom_call.1
$region0: #{tpu_custom_call.1}
  #allocation0 [shape = 'u32[]', space=smem, size = 0x4, offset = 0x4, fixed_abs, tag = 'smem constant byte address 0x4 - core index']
  #allocation1 [shape = 'u32[144,128]{1,0:T(1,128)}', space=vmem, size = 0x12000, scoped, tag = 'internal scratch']
  %s0 = inlined_call_operand.hbm [shape: f32[2,8,32], index: 0, kind: input, shape index: {}]
  %s1 = inlined_call_operand.hbm [shape: f32[2,16,32], index: 1, kind: input, shape index: {}]
  %s2 = inlined_call_operand.hbm [shape: f32[2,8,8], index: 2, kind: input, shape index: {}]
  %s3 = inlined_call_operand.hbm [shape: f32[2,8,16], index: 3, kind: input, shape index: {}]
  %s4 = inlined_call_operand.hbm [shape: f32[224,128], index: 4, kind: input, shape index: {}]
  %s5 = inlined_call_operand.vmem [shape: f32[12,128], index: 5, kind: input, shape index: {}]
  %s6 = inlined_call_operand.hbm [shape: f32[2,8,32], index: 6, kind: output, shape index: {}]
  %s7 = sld [smem:[#allocation0]]
  $region54: #{tpu_custom_call.1} parent=0
    _
  %s9 = ssub.s32 1, %s7
  %s10 = scalar_select 0, %s9, %s7
  $region1: #{tpu_custom_call.1} parent=0
    #allocation2 [shape = 'u8[8192]{0}', space=vmem, size = 0x2000, scoped, tag = 'input window, operand 0, single buffered']
    #allocation3 [shape = 's32[1]{0}', space=sflag, size = 0x4, scoped, tag = 'scoped memory for tpu_custom_call.1']
    #allocation4 [shape = 's32[1]{0}', space=sflag, size = 0x4, scoped, tag = 'scoped memory for tpu_custom_call.1']
    #allocation5 [shape = 'u8[16384]{0}', space=vmem, size = 0x4000, scoped, tag = 'input window, operand 1, single buffered']
    #allocation6 [shape = 's32[1]{0}', space=sflag, size = 0x4, scoped, tag = 'scoped memory for tpu_custom_call.1']
    #allocation7 [shape = 'u8[8192]{0}', space=vmem, size = 0x2000, scoped, tag = 'input window, operand 2, single buffered']
    #allocation8 [shape = 'u8[8192]{0}', space=vmem, size = 0x2000, scoped, tag = 'input window, operand 3, single buffered']
    #allocation9 [shape = 's32[1]{0}', space=sflag, size = 0x4, scoped, tag = 'scoped memory for tpu_custom_call.1']
    #allocation10 [shape = 'u8[114688]{0}', space=vmem, size = 0x1c000, scoped, tag = 'input window, operand 4, single buffered']
    #allocation11 [shape = 'u8[8192]{0}', space=vmem, size = 0x2000, scoped, tag = 'output window, operand 0, single buffered']
    %11 = vsyncpa [#allocation3], 0
    %12 = vsyncpa [#allocation6], 0
    %13 = vsyncpa [#allocation9], 0
    %14 = vsyncpa [#allocation4], 0
    // Predicated region
    $region2: #{tpu_custom_call.1} parent=1 // pred_check
      _
    $region3: #{tpu_custom_call.1} parent=1 // pred_check_branch
      %16 = sbr.rel (0) target = $region5
    $region4: #{tpu_custom_call.1} parent=1 // pred_region
      %s18 = ssub.s32 256, 256
      %19 = vsyncadd [#allocation3], %s18
      %s20 = sshll.u32 [#allocation2], 4
      %s21 = int_to_ptr.vmem [resolvable:$true] %s20
      %26 = dma.hbm_to_vmem [thread:$0]  %s0, 256, %s21, [#allocation3], 128, 128, 8
    $region5: #{tpu_custom_call.1} parent=1 // pred_fallthru
      _
    // Predicated region
    $region6: #{tpu_custom_call.1} parent=1 // pred_check
      _
    $region7: #{tpu_custom_call.1} parent=1 // pred_check_branch
      %28 = sbr.rel (0) target = $region9
    $region8: #{tpu_custom_call.1} parent=1 // pred_region
      %s30 = ssub.s32 512, 512
      %31 = vsyncadd [#allocation6], %s30
      %s32 = sshll.u32 [#allocation5], 4
      %s33 = int_to_ptr.vmem [resolvable:$true] %s32
      %38 = dma.hbm_to_vmem [thread:$0]  %s1, 512, %s33, [#allocation6], 128, 128, 8
    $region9: #{tpu_custom_call.1} parent=1 // pred_fallthru
      _
    // Predicated region
    $region10: #{tpu_custom_call.1} parent=1 // pred_check
      _
    $region11: #{tpu_custom_call.1} parent=1 // pred_check_branch
      %40 = sbr.rel (0) target = $region13
    $region12: #{tpu_custom_call.1} parent=1 // pred_region
      %s42 = ssub.s32 256, 256
      %43 = vsyncadd [#allocation6], %s42
      %s44 = sshll.u32 [#allocation7], 4
      %s45 = int_to_ptr.vmem [resolvable:$true] %s44
      %50 = dma.hbm_to_vmem [thread:$0]  %s2, 256, %s45, [#allocation6], 128, 128, 8
    $region13: #{tpu_custom_call.1} parent=1 // pred_fallthru
      _
    // Predicated region
    $region14: #{tpu_custom_call.1} parent=1 // pred_check
      _
    $region15: #{tpu_custom_call.1} parent=1 // pred_check_branch
      %52 = sbr.rel (0) target = $region17
    $region16: #{tpu_custom_call.1} parent=1 // pred_region
      %s54 = ssub.s32 256, 256
      %55 = vsyncadd [#allocation9], %s54
      %s56 = sshll.u32 [#allocation8], 4
      %s57 = int_to_ptr.vmem [resolvable:$true] %s56
      %62 = dma.hbm_to_vmem [thread:$0]  %s3, 256, %s57, [#allocation9], 128, 128, 8
    $region17: #{tpu_custom_call.1} parent=1 // pred_fallthru
      _
    // Predicated region
    $region18: #{tpu_custom_call.1} parent=1 // pred_check
      _
    $region19: #{tpu_custom_call.1} parent=1 // pred_check_branch
      %64 = sbr.rel (0) target = $region21
    $region20: #{tpu_custom_call.1} parent=1 // pred_region
      %s66 = ssub.s32 3584, 3584
      %67 = vsyncadd [#allocation9], %s66
      %s68 = sshll.u32 [#allocation10], 4
      %s69 = int_to_ptr.vmem [resolvable:$true] %s68
      %74 = dma.hbm_to_vmem [thread:$0]  %s4, 3584, %s69, [#allocation9], 128, 128, 8
    $region21: #{tpu_custom_call.1} parent=1 // pred_fallthru
      _
    // Predicated region
    $region22: #{tpu_custom_call.1} parent=1 // pred_check
      _
    $region23: #{tpu_custom_call.1} parent=1 // pred_check_branch
      %76 = sbr.rel (0) target = $region25
    $region24: #{tpu_custom_call.1} parent=1 // pred_region
      _
    $region25: #{tpu_custom_call.1} parent=1 // pred_fallthru
      _
    // Predicated region
    $region26: #{tpu_custom_call.1} parent=1 // pred_check
      _
    $region27: #{tpu_custom_call.1} parent=1 // pred_check_branch
      %78 = sbr.rel (0) target = $region29
    $region28: #{tpu_custom_call.1} parent=1 // pred_region
      %79 = dma.done [#allocation3], 256
    $region29: #{tpu_custom_call.1} parent=1 // pred_fallthru
      _
    // Predicated region
    $region30: #{tpu_custom_call.1} parent=1 // pred_check
      _
    $region31: #{tpu_custom_call.1} parent=1 // pred_check_branch
      %81 = sbr.rel (0) target = $region33
    $region32: #{tpu_custom_call.1} parent=1 // pred_region
      %82 = dma.done [#allocation6], 512
    $region33: #{tpu_custom_call.1} parent=1 // pred_fallthru
      _
    // Predicated region
    $region34: #{tpu_custom_call.1} parent=1 // pred_check
      _
    $region35: #{tpu_custom_call.1} parent=1 // pred_check_branch
      %84 = sbr.rel (0) target = $region37
    $region36: #{tpu_custom_call.1} parent=1 // pred_region
      %85 = dma.done [#allocation6], 256
    $region37: #{tpu_custom_call.1} parent=1 // pred_fallthru
      _
    // Predicated region
    $region38: #{tpu_custom_call.1} parent=1 // pred_check
      _
    $region39: #{tpu_custom_call.1} parent=1 // pred_check_branch
      %87 = sbr.rel (0) target = $region41
    $region40: #{tpu_custom_call.1} parent=1 // pred_region
      %88 = dma.done [#allocation9], 256
    $region41: #{tpu_custom_call.1} parent=1 // pred_fallthru
      _
    // Predicated region
    $region42: #{tpu_custom_call.1} parent=1 // pred_check
      _
    $region43: #{tpu_custom_call.1} parent=1 // pred_check_branch
      %90 = sbr.rel (0) target = $region45
    $region44: #{tpu_custom_call.1} parent=1 // pred_region
      %91 = dma.done [#allocation9], 3584
    $region45: #{tpu_custom_call.1} parent=1 // pred_fallthru
      _
    %v92 = vld [vmem:[#allocation2] sm:$0xff]
    %v93 = vld [vmem:[#allocation2 + $0x8] sm:$0xff]
    %v94 = vld [vmem:[#allocation5] sm:$0xff]
    %v95 = vld [vmem:[#allocation5 + $0x8] sm:$0xff]
    %v96 = vld [vmem:[#allocation5 + $0x10] sm:$0xff]
    %v97 = vld [vmem:[#allocation5 + $0x18] sm:$0xff]
    %v98 = vld [vmem:[#allocation7] sm:$0xff]
    %v99 = vld [vmem:[#allocation7 + $0x8] sm:$0xff]
    %v100 = vld [vmem:[#allocation8] sm:$0xff]
    %v101 = vld [vmem:[#allocation8 + $0x8] sm:$0xff]
    %v102 = vld [vmem:[#allocation10] sm:$0xff]
    %v103 = vld [vmem:[#allocation10 + $0x8] sm:$0xff]
    %v104 = vld [vmem:[#allocation10 + $0x10] sm:$0xff]
    %v105 = vld [vmem:[#allocation10 + $0x18] sm:$0xff]
    %v106 = vld [vmem:[%s5] sm:$0x1]
    %v107 = vlaneseq
    %v108 = vshrl.u32 %v107, 7
    %v109 = vsub.s32 0, %v108
    %v110 = vrot.slane %v106, %v109
    %vm111 = vcmask 261120
    %v113 = vsel %vm111, %v92, 0
    %v116 = vsel %vm111, %v93, 0
    %118 = vmatprep.subr.mxu0 0.0
    %119 = vmatpush1.msra.mxu0 %v102
    %120 = vmatprep.subr.mxu0 0.0
    %121 = vmatpush1.msra.mxu0 %v103
    %122 = vmatprep.subr.mxu0 0.0
    %123 = vmatpush1.msra.mxu0 %v104
    %124 = vmatprep.subr.mxu0 0.0
    %125 = vmatpush1.msra.mxu0 %v105
    %126 = vmatprep.subr.mxu0 0.0
    %127 = vmatpush1.msra.mxu0 0.0
    %128 = vmatprep.subr.mxu0 0.0
    %129 = vmatpush1.msra.mxu0 0.0
    %130 = vmatprep.subr.mxu0 0.0
    %131 = vmatpush1.msra.mxu0 0.0
    %132 = vmatprep.subr.mxu0 0.0
    %133 = vmatpush1.msra.mxu0 0.0
    %134 = vmatprep.subr.mxu0 0.0
    %135 = vmatpush1.msra.mxu0 0.0
    %136 = vmatprep.subr.mxu0 0.0
    %137 = vmatpush1.msra.mxu0 0.0
    %138 = vmatprep.subr.mxu0 0.0
    %139 = vmatpush1.msra.mxu0 0.0
    %140 = vmatprep.subr.mxu0 0.0
    %141 = vmatpush1.msra.mxu0 0.0
    %142 = vmatprep.subr.mxu0 0.0
    %143 = vmatpush1.msra.mxu0 0.0
    %144 = vmatprep.subr.mxu0 0.0
    %145 = vmatpush1.msra.mxu0 0.0
    %146 = vmatprep.subr.mxu0 0.0
    %147 = vmatpush1.msra.mxu0 0.0
    %148 = vmatprep.subr.mxu0 0.0
    %149 = vmatpush1.msra.mxu0 0.0
    %150 = vmatprep.subr.mxu0 0.0
    %151 = vmatpush1.msra.mxu0 0.0
    %152 = vmatprep.subr.mxu0 0.0
    %153 = vmatpush1.msra.mxu0 0.0
    %154 = vmatprep.subr.mxu0 0.0
    %155 = vmatpush1.msra.mxu0 0.0
    %156 = vmatprep.subr.mxu0 0.0
    %157 = vmatpush1.msra.mxu0 0.0
    %158 = vmatprep.subr.mxu0 0.0
    %159 = vmatpush1.msra.mxu0 0.0
    %160 = vmatprep.subr.mxu0 0.0
    %161 = vmatpush1.msra.mxu0 0.0
    %162 = vmatprep.subr.mxu0 0.0
    %163 = vmatpush1.msra.mxu0 0.0
    %164 = vmatprep.subr.mxu0 0.0
    %165 = vmatpush1.msra.mxu0 0.0
    %166 = vmatprep.subr.mxu0 0.0
    %167 = vmatpush1.msra.mxu0 0.0
    %168 = vmatprep.subr.mxu0 0.0
    %169 = vmatpush1.msra.mxu0 0.0
    %170 = vmatprep.subr.mxu0 0.0
    %171 = vmatpush1.msra.mxu0 0.0
    %172 = vmatprep.subr.mxu0 0.0
    %173 = vmatpush1.msra.mxu0 0.0
    %174 = vmatprep.subr.mxu0 0.0
    %175 = vmatpush1.msra.mxu0 0.0
    %176 = vmatprep.subr.mxu0 0.0
    %177 = vmatpush1.msra.mxu0 0.0
    %178 = vmatprep.subr.mxu0 0.0
    %179 = vmatpush1.msra.mxu0 0.0
    %180 = vmatprep.subr.mxu0 0.0
    %181 = vmatpush1.msra.mxu0 0.0
    %182 = vmatprep.mubr.f32.mxu0 0.0
    %183 = vmatmul.mubr.f32.gmra.mrb[0].mxu0 %v113
    %v184 = vpop.f32.mrb[0].mxu0
    %v185 = vadd.f32 %v110, %v184
    %v186 = vpop.f32.mrb[0].mxu0
    %187 = vmatprep.mubr.f32.mxu0 0.0
    %188 = vmatmul.mubr.f32.gmra.mrb[0].mxu0 %v116
    %v189 = vpop.f32.mrb[0].mxu0
    %v190 = vadd.f32 %v110, %v189
    %v191 = vpop.f32.mrb[0].mxu0
    %192 = vdwg.mxu0
    %v193 = vld [vmem:[#allocation10 + $0x20] sm:$0xff]
    %v194 = vld [vmem:[#allocation10 + $0x28] sm:$0xff]
    %v195 = vld [vmem:[#allocation10 + $0x30] sm:$0xff]
    %v196 = vld [vmem:[#allocation10 + $0x38] sm:$0xff]
    %v197 = vld [vmem:[%s5 + $0x1] sm:$0x1]
    %200 = vrot.lane.b32.xlu0 %v185, 120
    %v201 = vpop.permute.xlu0 %200
    %202 = vrot.lane.b32.xlu0 %v190, 120
    %v203 = vpop.permute.xlu0 %202
    %204 = vrot.lane.b32.xlu0 %v185, 112
    %v205 = vpop.permute.xlu0 %204
    %206 = vrot.lane.b32.xlu0 %v190, 112
    %v207 = vpop.permute.xlu0 %206
    %208 = vrot.lane.b32.xlu0 %v185, 104
    %v209 = vpop.permute.xlu0 %208
    %210 = vrot.lane.b32.xlu0 %v190, 104
    %v211 = vpop.permute.xlu0 %210
    %212 = vrot.lane.b32.xlu0 %v185, 96
    %v213 = vpop.permute.xlu0 %212
    %vm214 = vcmask 64512
    %v215 = vsel %vm214, %v185, 0
    %v217 = vsel %vm214, %v213, 0
    %219 = vmatprep.subr.mxu0 0.0
    %220 = vmatpush1.xpose.msra.mxu0 %v217
    %221 = vmatprep.subr.mxu0 0.0
    %222 = vmatpush1.xpose.msra.mxu0 0.0
    %223 = vmatprep.subr.mxu0 0.0
    %224 = vmatpush1.xpose.msra.mxu0 0.0
    %225 = vmatprep.subr.mxu0 0.0
    %226 = vmatpush1.xpose.msra.mxu0 0.0
    %227 = vmatprep.subr.mxu0 0.0
    %228 = vmatpush1.xpose.msra.mxu0 0.0
    %229 = vmatprep.subr.mxu0 0.0
    %230 = vmatpush1.xpose.msra.mxu0 0.0
    %231 = vmatprep.subr.mxu0 0.0
    %232 = vmatpush1.xpose.msra.mxu0 0.0
    %233 = vmatprep.subr.mxu0 0.0
    %234 = vmatpush1.xpose.msra.mxu0 0.0
    %235 = vmatprep.subr.mxu0 0.0
    %236 = vmatpush1.xpose.msra.mxu0 0.0
    %237 = vmatprep.subr.mxu0 0.0
    %238 = vmatpush1.xpose.msra.mxu0 0.0
    %239 = vmatprep.subr.mxu0 0.0
    %240 = vmatpush1.xpose.msra.mxu0 0.0
    %241 = vmatprep.subr.mxu0 0.0
    %242 = vmatpush1.xpose.msra.mxu0 0.0
    %243 = vmatprep.subr.mxu0 0.0
    %244 = vmatpush1.xpose.msra.mxu0 0.0
    %245 = vmatprep.subr.mxu0 0.0
    %246 = vmatpush1.xpose.msra.mxu0 0.0
    %247 = vmatprep.subr.mxu0 0.0
    %248 = vmatpush1.xpose.msra.mxu0 0.0
    %249 = vmatprep.subr.mxu0 0.0
    %250 = vmatpush1.xpose.msra.mxu0 0.0
    %251 = vmatprep.subr.mxu0 0.0
    %252 = vmatpush1.xpose.msra.mxu0 0.0
    %253 = vmatprep.subr.mxu0 0.0
    %254 = vmatpush1.xpose.msra.mxu0 0.0
    %255 = vmatprep.subr.mxu0 0.0
    %256 = vmatpush1.xpose.msra.mxu0 0.0
    %257 = vmatprep.subr.mxu0 0.0
    %258 = vmatpush1.xpose.msra.mxu0 0.0
    %259 = vmatprep.subr.mxu0 0.0
    %260 = vmatpush1.xpose.msra.mxu0 0.0
    %261 = vmatprep.subr.mxu0 0.0
    %262 = vmatpush1.xpose.msra.mxu0 0.0
    %263 = vmatprep.subr.mxu0 0.0
    %264 = vmatpush1.xpose.msra.mxu0 0.0
    %265 = vmatprep.subr.mxu0 0.0
    %266 = vmatpush1.xpose.msra.mxu0 0.0
    %267 = vmatprep.subr.mxu0 0.0
    %268 = vmatpush1.xpose.msra.mxu0 0.0
    %269 = vmatprep.subr.mxu0 0.0
    %270 = vmatpush1.xpose.msra.mxu0 0.0
    %271 = vmatprep.subr.mxu0 0.0
    %272 = vmatpush1.xpose.msra.mxu0 0.0
    %273 = vmatprep.subr.mxu0 0.0
    %274 = vmatpush1.xpose.msra.mxu0 0.0
    %275 = vmatprep.subr.mxu0 0.0
    %276 = vmatpush1.xpose.msra.mxu0 0.0
    %277 = vmatprep.subr.mxu0 0.0
    %278 = vmatpush1.xpose.msra.mxu0 0.0
    %279 = vmatprep.subr.mxu0 0.0
    %280 = vmatpush1.xpose.msra.mxu0 0.0
    %281 = vmatprep.subr.mxu0 0.0
    %282 = vmatpush1.xpose.msra.mxu0 0.0
    %283 = vmatprep.mubr.f32.mxu0 0.0
    %284 = vmatmul.mubr.f32.gmra.mrb[0].mxu0 %v215
    %v285 = vpop.f32.mrb[0].mxu0
    %v286 = vadd.f32 0.0, %v285
    %v287 = vpop.f32.mrb[0].mxu0
    %288 = vdwg.mxu0
    %289 = vrot.lane.b32.xlu0 %v190, 96
    %v290 = vpop.permute.xlu0 %289
    %v291 = vsel %vm214, %v190, 0
    %v293 = vsel %vm214, %v290, 0
    %295 = vmatprep.subr.mxu0 0.0
    %296 = vmatpush1.xpose.msra.mxu0 %v293
    %297 = vmatprep.subr.mxu0 0.0
    %298 = vmatpush1.xpose.msra.mxu0 0.0
    %299 = vmatprep.subr.mxu0 0.0
    %300 = vmatpush1.xpose.msra.mxu0 0.0
    %301 = vmatprep.subr.mxu0 0.0
    %302 = vmatpush1.xpose.msra.mxu0 0.0
    %303 = vmatprep.subr.mxu0 0.0
    %304 = vmatpush1.xpose.msra.mxu0 0.0
    %305 = vmatprep.subr.mxu0 0.0
    %306 = vmatpush1.xpose.msra.mxu0 0.0
    %307 = vmatprep.subr.mxu0 0.0
    %308 = vmatpush1.xpose.msra.mxu0 0.0
    %309 = vmatprep.subr.mxu0 0.0
    %310 = vmatpush1.xpose.msra.mxu0 0.0
    %311 = vmatprep.subr.mxu0 0.0
    %312 = vmatpush1.xpose.msra.mxu0 0.0
    %313 = vmatprep.subr.mxu0 0.0
    %314 = vmatpush1.xpose.msra.mxu0 0.0
    %315 = vmatprep.subr.mxu0 0.0
    %316 = vmatpush1.xpose.msra.mxu0 0.0
    %317 = vmatprep.subr.mxu0 0.0
    %318 = vmatpush1.xpose.msra.mxu0 0.0
    %319 = vmatprep.subr.mxu0 0.0
    %320 = vmatpush1.xpose.msra.mxu0 0.0
    %321 = vmatprep.subr.mxu0 0.0
    %322 = vmatpush1.xpose.msra.mxu0 0.0
    %323 = vmatprep.subr.mxu0 0.0
    %324 = vmatpush1.xpose.msra.mxu0 0.0
    %325 = vmatprep.subr.mxu0 0.0
    %326 = vmatpush1.xpose.msra.mxu0 0.0
    %327 = vmatprep.subr.mxu0 0.0
    %328 = vmatpush1.xpose.msra.mxu0 0.0
    %329 = vmatprep.subr.mxu0 0.0
    %330 = vmatpush1.xpose.msra.mxu0 0.0
    %331 = vmatprep.subr.mxu0 0.0
    %332 = vmatpush1.xpose.msra.mxu0 0.0
    %333 = vmatprep.subr.mxu0 0.0
    %334 = vmatpush1.xpose.msra.mxu0 0.0
    %335 = vmatprep.subr.mxu0 0.0
    %336 = vmatpush1.xpose.msra.mxu0 0.0
    %337 = vmatprep.subr.mxu0 0.0
    %338 = vmatpush1.xpose.msra.mxu0 0.0
    %339 = vmatprep.subr.mxu0 0.0
    %340 = vmatpush1.xpose.msra.mxu0 0.0
    %341 = vmatprep.subr.mxu0 0.0
    %342 = vmatpush1.xpose.msra.mxu0 0.0
    %343 = vmatprep.subr.mxu0 0.0
    %344 = vmatpush1.xpose.msra.mxu0 0.0
    %345 = vmatprep.subr.mxu0 0.0
    %346 = vmatpush1.xpose.msra.mxu0 0.0
    %347 = vmatprep.subr.mxu0 0.0
    %348 = vmatpush1.xpose.msra.mxu0 0.0
    %349 = vmatprep.subr.mxu0 0.0
    %350 = vmatpush1.xpose.msra.mxu0 0.0
    %351 = vmatprep.subr.mxu0 0.0
    %352 = vmatpush1.xpose.msra.mxu0 0.0
    %353 = vmatprep.subr.mxu0 0.0
    %354 = vmatpush1.xpose.msra.mxu0 0.0
    %355 = vmatprep.subr.mxu0 0.0
    %356 = vmatpush1.xpose.msra.mxu0 0.0
    %357 = vmatprep.subr.mxu0 0.0
    %358 = vmatpush1.xpose.msra.mxu0 0.0
    %359 = vmatprep.mubr.f32.mxu0 0.0
    %360 = vmatmul.mubr.f32.gmra.mrb[0].mxu0 %v291
    %v361 = vpop.f32.mrb[0].mxu0
    %v362 = vadd.f32 0.0, %v361
    %v363 = vpop.f32.mrb[0].mxu0
    %364 = vdwg.mxu0
    %365 = vrot.lane.b32.xlu0 %v201, 96
    %v366 = vpop.permute.xlu0 %365
    %v367 = vsel %vm214, %v201, 0
    %v369 = vsel %vm214, %v366, 0
    %371 = vmatprep.subr.mxu0 0.0
    %372 = vmatpush1.xpose.msra.mxu0 %v369
    %373 = vmatprep.subr.mxu0 0.0
    %374 = vmatpush1.xpose.msra.mxu0 0.0
    %375 = vmatprep.subr.mxu0 0.0
    %376 = vmatpush1.xpose.msra.mxu0 0.0
    %377 = vmatprep.subr.mxu0 0.0
    %378 = vmatpush1.xpose.msra.mxu0 0.0
    %379 = vmatprep.subr.mxu0 0.0
    %380 = vmatpush1.xpose.msra.mxu0 0.0
    %381 = vmatprep.subr.mxu0 0.0
    %382 = vmatpush1.xpose.msra.mxu0 0.0
    %383 = vmatprep.subr.mxu0 0.0
    %384 = vmatpush1.xpose.msra.mxu0 0.0
    %385 = vmatprep.subr.mxu0 0.0
    %386 = vmatpush1.xpose.msra.mxu0 0.0
    %387 = vmatprep.subr.mxu0 0.0
    %388 = vmatpush1.xpose.msra.mxu0 0.0
    %389 = vmatprep.subr.mxu0 0.0
    %390 = vmatpush1.xpose.msra.mxu0 0.0
    %391 = vmatprep.subr.mxu0 0.0
    %392 = vmatpush1.xpose.msra.mxu0 0.0
    %393 = vmatprep.subr.mxu0 0.0
    %394 = vmatpush1.xpose.msra.mxu0 0.0
    %395 = vmatprep.subr.mxu0 0.0
    %396 = vmatpush1.xpose.msra.mxu0 0.0
    %397 = vmatprep.subr.mxu0 0.0
    %398 = vmatpush1.xpose.msra.mxu0 0.0
    %399 = vmatprep.subr.mxu0 0.0
    %400 = vmatpush1.xpose.msra.mxu0 0.0
    %401 = vmatprep.subr.mxu0 0.0
    %402 = vmatpush1.xpose.msra.mxu0 0.0
    %403 = vmatprep.subr.mxu0 0.0
    %404 = vmatpush1.xpose.msra.mxu0 0.0
    %405 = vmatprep.subr.mxu0 0.0
    %406 = vmatpush1.xpose.msra.mxu0 0.0
    %407 = vmatprep.subr.mxu0 0.0
    %408 = vmatpush1.xpose.msra.mxu0 0.0
    %409 = vmatprep.subr.mxu0 0.0
    %410 = vmatpush1.xpose.msra.mxu0 0.0
    %411 = vmatprep.subr.mxu0 0.0
    %412 = vmatpush1.xpose.msra.mxu0 0.0
    %413 = vmatprep.subr.mxu0 0.0
    %414 = vmatpush1.xpose.msra.mxu0 0.0
    %415 = vmatprep.subr.mxu0 0.0
    %416 = vmatpush1.xpose.msra.mxu0 0.0
    %417 = vmatprep.subr.mxu0 0.0
    %418 = vmatpush1.xpose.msra.mxu0 0.0
    %419 = vmatprep.subr.mxu0 0.0
    %420 = vmatpush1.xpose.msra.mxu0 0.0
    %421 = vmatprep.subr.mxu0 0.0
    %422 = vmatpush1.xpose.msra.mxu0 0.0
    %423 = vmatprep.subr.mxu0 0.0
    %424 = vmatpush1.xpose.msra.mxu0 0.0
    %425 = vmatprep.subr.mxu0 0.0
    %426 = vmatpush1.xpose.msra.mxu0 0.0
    %427 = vmatprep.subr.mxu0 0.0
    %428 = vmatpush1.xpose.msra.mxu0 0.0
    %429 = vmatprep.subr.mxu0 0.0
    %430 = vmatpush1.xpose.msra.mxu0 0.0
    %431 = vmatprep.subr.mxu0 0.0
    %432 = vmatpush1.xpose.msra.mxu0 0.0
    %433 = vmatprep.subr.mxu0 0.0
    %434 = vmatpush1.xpose.msra.mxu0 0.0
    %435 = vmatprep.mubr.f32.mxu0 0.0
    %436 = vmatmul.mubr.f32.gmra.mrb[0].mxu0 %v367
    %v437 = vpop.f32.mrb[0].mxu0
    %v438 = vadd.f32 0.0, %v437
    %v439 = vpop.f32.mrb[0].mxu0
    %440 = vdwg.mxu0
    %441 = vrot.lane.b32.xlu0 %v203, 96
    %v442 = vpop.permute.xlu0 %441
    %v443 = vsel %vm214, %v203, 0
    %v445 = vsel %vm214, %v442, 0
    %447 = vmatprep.subr.mxu0 0.0
    %448 = vmatpush1.xpose.msra.mxu0 %v445
    %449 = vmatprep.subr.mxu0 0.0
    %450 = vmatpush1.xpose.msra.mxu0 0.0
    %451 = vmatprep.subr.mxu0 0.0
    %452 = vmatpush1.xpose.msra.mxu0 0.0
    %453 = vmatprep.subr.mxu0 0.0
    %454 = vmatpush1.xpose.msra.mxu0 0.0
    %455 = vmatprep.subr.mxu0 0.0
    %456 = vmatpush1.xpose.msra.mxu0 0.0
    %457 = vmatprep.subr.mxu0 0.0
    %458 = vmatpush1.xpose.msra.mxu0 0.0
    %459 = vmatprep.subr.mxu0 0.0
    %460 = vmatpush1.xpose.msra.mxu0 0.0
    %461 = vmatprep.subr.mxu0 0.0
    %462 = vmatpush1.xpose.msra.mxu0 0.0
    %463 = vmatprep.subr.mxu0 0.0
    %464 = vmatpush1.xpose.msra.mxu0 0.0
    %465 = vmatprep.subr.mxu0 0.0
    %466 = vmatpush1.xpose.msra.mxu0 0.0
    %467 = vmatprep.subr.mxu0 0.0
    %468 = vmatpush1.xpose.msra.mxu0 0.0
    %469 = vmatprep.subr.mxu0 0.0
    %470 = vmatpush1.xpose.msra.mxu0 0.0
    %471 = vmatprep.subr.mxu0 0.0
    %472 = vmatpush1.xpose.msra.mxu0 0.0
    %473 = vmatprep.subr.mxu0 0.0
    %474 = vmatpush1.xpose.msra.mxu0 0.0
    %475 = vmatprep.subr.mxu0 0.0
    %476 = vmatpush1.xpose.msra.mxu0 0.0
    %477 = vmatprep.subr.mxu0 0.0
    %478 = vmatpush1.xpose.msra.mxu0 0.0
    %479 = vmatprep.subr.mxu0 0.0
    %480 = vmatpush1.xpose.msra.mxu0 0.0
    %481 = vmatprep.subr.mxu0 0.0
    %482 = vmatpush1.xpose.msra.mxu0 0.0
    %483 = vmatprep.subr.mxu0 0.0
    %484 = vmatpush1.xpose.msra.mxu0 0.0
    %485 = vmatprep.subr.mxu0 0.0
    %486 = vmatpush1.xpose.msra.mxu0 0.0
    %487 = vmatprep.subr.mxu0 0.0
    %488 = vmatpush1.xpose.msra.mxu0 0.0
    %489 = vmatprep.subr.mxu0 0.0
    %490 = vmatpush1.xpose.msra.mxu0 0.0
    %491 = vmatprep.subr.mxu0 0.0
    %492 = vmatpush1.xpose.msra.mxu0 0.0
    %493 = vmatprep.subr.mxu0 0.0
    %494 = vmatpush1.xpose.msra.mxu0 0.0
    %495 = vmatprep.subr.mxu0 0.0
    %496 = vmatpush1.xpose.msra.mxu0 0.0
    %497 = vmatprep.subr.mxu0 0.0
    %498 = vmatpush1.xpose.msra.mxu0 0.0
    %499 = vmatprep.subr.mxu0 0.0
    %500 = vmatpush1.xpose.msra.mxu0 0.0
    %501 = vmatprep.subr.mxu0 0.0
    %502 = vmatpush1.xpose.msra.mxu0 0.0
    %503 = vmatprep.subr.mxu0 0.0
    %504 = vmatpush1.xpose.msra.mxu0 0.0
    %505 = vmatprep.subr.mxu0 0.0
    %506 = vmatpush1.xpose.msra.mxu0 0.0
    %507 = vmatprep.subr.mxu0 0.0
    %508 = vmatpush1.xpose.msra.mxu0 0.0
    %509 = vmatprep.subr.mxu0 0.0
    %510 = vmatpush1.xpose.msra.mxu0 0.0
    %511 = vmatprep.mubr.f32.mxu0 0.0
    %512 = vmatmul.mubr.f32.gmra.mrb[0].mxu0 %v443
    %v513 = vpop.f32.mrb[0].mxu0
    %v514 = vadd.f32 0.0, %v513
    %v515 = vpop.f32.mrb[0].mxu0
    %516 = vdwg.mxu0
    %517 = vrot.lane.b32.xlu0 %v205, 96
    %v518 = vpop.permute.xlu0 %517
    %v519 = vsel %vm214, %v205, 0
    %v521 = vsel %vm214, %v518, 0
    %523 = vmatprep.subr.mxu0 0.0
    %524 = vmatpush1.xpose.msra.mxu0 %v521
    %525 = vmatprep.subr.mxu0 0.0
    %526 = vmatpush1.xpose.msra.mxu0 0.0
    %527 = vmatprep.subr.mxu0 0.0
    %528 = vmatpush1.xpose.msra.mxu0 0.0
    %529 = vmatprep.subr.mxu0 0.0
    %530 = vmatpush1.xpose.msra.mxu0 0.0
    %531 = vmatprep.subr.mxu0 0.0
    %532 = vmatpush1.xpose.msra.mxu0 0.0
    %533 = vmatprep.subr.mxu0 0.0
    %534 = vmatpush1.xpose.msra.mxu0 0.0
    %535 = vmatprep.subr.mxu0 0.0
    %536 = vmatpush1.xpose.msra.mxu0 0.0
    %537 = vmatprep.subr.mxu0 0.0
    %538 = vmatpush1.xpose.msra.mxu0 0.0
    %539 = vmatprep.subr.mxu0 0.0
    %540 = vmatpush1.xpose.msra.mxu0 0.0
    %541 = vmatprep.subr.mxu0 0.0
    %542 = vmatpush1.xpose.msra.mxu0 0.0
    %543 = vmatprep.subr.mxu0 0.0
    %544 = vmatpush1.xpose.msra.mxu0 0.0
    %545 = vmatprep.subr.mxu0 0.0
    %546 = vmatpush1.xpose.msra.mxu0 0.0
    %547 = vmatprep.subr.mxu0 0.0
    %548 = vmatpush1.xpose.msra.mxu0 0.0
    %549 = vmatprep.subr.mxu0 0.0
    %550 = vmatpush1.xpose.msra.mxu0 0.0
    %551 = vmatprep.subr.mxu0 0.0
    %552 = vmatpush1.xpose.msra.mxu0 0.0
    %553 = vmatprep.subr.mxu0 0.0
    %554 = vmatpush1.xpose.msra.mxu0 0.0
    %555 = vmatprep.subr.mxu0 0.0
    %556 = vmatpush1.xpose.msra.mxu0 0.0
    %557 = vmatprep.subr.mxu0 0.0
    %558 = vmatpush1.xpose.msra.mxu0 0.0
    %559 = vmatprep.subr.mxu0 0.0
    %560 = vmatpush1.xpose.msra.mxu0 0.0
    %561 = vmatprep.subr.mxu0 0.0
    %562 = vmatpush1.xpose.msra.mxu0 0.0
    %563 = vmatprep.subr.mxu0 0.0
    %564 = vmatpush1.xpose.msra.mxu0 0.0
    %565 = vmatprep.subr.mxu0 0.0
    %566 = vmatpush1.xpose.msra.mxu0 0.0
    %567 = vmatprep.subr.mxu0 0.0
    %568 = vmatpush1.xpose.msra.mxu0 0.0
    %569 = vmatprep.subr.mxu0 0.0
    %570 = vmatpush1.xpose.msra.mxu0 0.0
    %571 = vmatprep.subr.mxu0 0.0
    %572 = vmatpush1.xpose.msra.mxu0 0.0
    %573 = vmatprep.subr.mxu0 0.0
    %574 = vmatpush1.xpose.msra.mxu0 0.0
    %575 = vmatprep.subr.mxu0 0.0
    %576 = vmatpush1.xpose.msra.mxu0 0.0
    %577 = vmatprep.subr.mxu0 0.0
    %578 = vmatpush1.xpose.msra.mxu0 0.0
    %579 = vmatprep.subr.mxu0 0.0
    %580 = vmatpush1.xpose.msra.mxu0 0.0
    %581 = vmatprep.subr.mxu0 0.0
    %582 = vmatpush1.xpose.msra.mxu0 0.0
    %583 = vmatprep.subr.mxu0 0.0
    %584 = vmatpush1.xpose.msra.mxu0 0.0
    %585 = vmatprep.subr.mxu0 0.0
    %586 = vmatpush1.xpose.msra.mxu0 0.0
    %587 = vmatprep.mubr.f32.mxu0 0.0
    %588 = vmatmul.mubr.f32.gmra.mrb[0].mxu0 %v519
    %v589 = vpop.f32.mrb[0].mxu0
    %v590 = vadd.f32 0.0, %v589
    %v591 = vpop.f32.mrb[0].mxu0
    %592 = vdwg.mxu0
    %593 = vrot.lane.b32.xlu0 %v207, 96
    %v594 = vpop.permute.xlu0 %593
    %v595 = vsel %vm214, %v207, 0
    %v597 = vsel %vm214, %v594, 0
    %599 = vmatprep.subr.mxu0 0.0
    %600 = vmatpush1.xpose.msra.mxu0 %v597
    %601 = vmatprep.subr.mxu0 0.0
    %602 = vmatpush1.xpose.msra.mxu0 0.0
    %603 = vmatprep.subr.mxu0 0.0
    %604 = vmatpush1.xpose.msra.mxu0 0.0
    %605 = vmatprep.subr.mxu0 0.0
    %606 = vmatpush1.xpose.msra.mxu0 0.0
    %607 = vmatprep.subr.mxu0 0.0
    %608 = vmatpush1.xpose.msra.mxu0 0.0
    %609 = vmatprep.subr.mxu0 0.0
    %610 = vmatpush1.xpose.msra.mxu0 0.0
    %611 = vmatprep.subr.mxu0 0.0
    %612 = vmatpush1.xpose.msra.mxu0 0.0
    %613 = vmatprep.subr.mxu0 0.0
    %614 = vmatpush1.xpose.msra.mxu0 0.0
    %615 = vmatprep.subr.mxu0 0.0
    %616 = vmatpush1.xpose.msra.mxu0 0.0
    %617 = vmatprep.subr.mxu0 0.0
    %618 = vmatpush1.xpose.msra.mxu0 0.0
    %619 = vmatprep.subr.mxu0 0.0
    %620 = vmatpush1.xpose.msra.mxu0 0.0
    %621 = vmatprep.subr.mxu0 0.0
    %622 = vmatpush1.xpose.msra.mxu0 0.0
    %623 = vmatprep.subr.mxu0 0.0
    %624 = vmatpush1.xpose.msra.mxu0 0.0
    %625 = vmatprep.subr.mxu0 0.0
    %626 = vmatpush1.xpose.msra.mxu0 0.0
    %627 = vmatprep.subr.mxu0 0.0
    %628 = vmatpush1.xpose.msra.mxu0 0.0
    %629 = vmatprep.subr.mxu0 0.0
    %630 = vmatpush1.xpose.msra.mxu0 0.0
    %631 = vmatprep.subr.mxu0 0.0
    %632 = vmatpush1.xpose.msra.mxu0 0.0
    %633 = vmatprep.subr.mxu0 0.0
    %634 = vmatpush1.xpose.msra.mxu0 0.0
    %635 = vmatprep.subr.mxu0 0.0
    %636 = vmatpush1.xpose.msra.mxu0 0.0
    %637 = vmatprep.subr.mxu0 0.0
    %638 = vmatpush1.xpose.msra.mxu0 0.0
    %639 = vmatprep.subr.mxu0 0.0
    %640 = vmatpush1.xpose.msra.mxu0 0.0
    %641 = vmatprep.subr.mxu0 0.0
    %642 = vmatpush1.xpose.msra.mxu0 0.0
    %643 = vmatprep.subr.mxu0 0.0
    %644 = vmatpush1.xpose.msra.mxu0 0.0
    %645 = vmatprep.subr.mxu0 0.0
    %646 = vmatpush1.xpose.msra.mxu0 0.0
    %647 = vmatprep.subr.mxu0 0.0
    %648 = vmatpush1.xpose.msra.mxu0 0.0
    %649 = vmatprep.subr.mxu0 0.0
    %650 = vmatpush1.xpose.msra.mxu0 0.0
    %651 = vmatprep.subr.mxu0 0.0
    %652 = vmatpush1.xpose.msra.mxu0 0.0
    %653 = vmatprep.subr.mxu0 0.0
    %654 = vmatpush1.xpose.msra.mxu0 0.0
    %655 = vmatprep.subr.mxu0 0.0
    %656 = vmatpush1.xpose.msra.mxu0 0.0
    %657 = vmatprep.subr.mxu0 0.0
    %658 = vmatpush1.xpose.msra.mxu0 0.0
    %659 = vmatprep.subr.mxu0 0.0
    %660 = vmatpush1.xpose.msra.mxu0 0.0
    %661 = vmatprep.subr.mxu0 0.0
    %662 = vmatpush1.xpose.msra.mxu0 0.0
    %663 = vmatprep.mubr.f32.mxu0 0.0
    %664 = vmatmul.mubr.f32.gmra.mrb[0].mxu0 %v595
    %v665 = vpop.f32.mrb[0].mxu0
    %v666 = vadd.f32 0.0, %v665
    %v667 = vpop.f32.mrb[0].mxu0
    %668 = vdwg.mxu0
    %669 = vrot.lane.b32.xlu0 %v209, 96
    %v670 = vpop.permute.xlu0 %669
    %v671 = vsel %vm214, %v209, 0
    %v673 = vsel %vm214, %v670, 0
    %675 = vmatprep.subr.mxu0 0.0
    %676 = vmatpush1.xpose.msra.mxu0 %v673
    %677 = vmatprep.subr.mxu0 0.0
    %678 = vmatpush1.xpose.msra.mxu0 0.0
    %679 = vmatprep.subr.mxu0 0.0
    %680 = vmatpush1.xpose.msra.mxu0 0.0
    %681 = vmatprep.subr.mxu0 0.0
    %682 = vmatpush1.xpose.msra.mxu0 0.0
    %683 = vmatprep.subr.mxu0 0.0
    %684 = vmatpush1.xpose.msra.mxu0 0.0
    %685 = vmatprep.subr.mxu0 0.0
    %686 = vmatpush1.xpose.msra.mxu0 0.0
    %687 = vmatprep.subr.mxu0 0.0
    %688 = vmatpush1.xpose.msra.mxu0 0.0
    %689 = vmatprep.subr.mxu0 0.0
    %690 = vmatpush1.xpose.msra.mxu0 0.0
    %691 = vmatprep.subr.mxu0 0.0
    %692 = vmatpush1.xpose.msra.mxu0 0.0
    %693 = vmatprep.subr.mxu0 0.0
    %694 = vmatpush1.xpose.msra.mxu0 0.0
    %695 = vmatprep.subr.mxu0 0.0
    %696 = vmatpush1.xpose.msra.mxu0 0.0
    %697 = vmatprep.subr.mxu0 0.0
    %698 = vmatpush1.xpose.msra.mxu0 0.0
    %699 = vmatprep.subr.mxu0 0.0
    %700 = vmatpush1.xpose.msra.mxu0 0.0
    %701 = vmatprep.subr.mxu0 0.0
    %702 = vmatpush1.xpose.msra.mxu0 0.0
    %703 = vmatprep.subr.mxu0 0.0
    %704 = vmatpush1.xpose.msra.mxu0 0.0
    %705 = vmatprep.subr.mxu0 0.0
    %706 = vmatpush1.xpose.msra.mxu0 0.0
    %707 = vmatprep.subr.mxu0 0.0
    %708 = vmatpush1.xpose.msra.mxu0 0.0
    %709 = vmatprep.subr.mxu0 0.0
    %710 = vmatpush1.xpose.msra.mxu0 0.0
    %711 = vmatprep.subr.mxu0 0.0
    %712 = vmatpush1.xpose.msra.mxu0 0.0
    %713 = vmatprep.subr.mxu0 0.0
    %714 = vmatpush1.xpose.msra.mxu0 0.0
    %715 = vmatprep.subr.mxu0 0.0
    %716 = vmatpush1.xpose.msra.mxu0 0.0
    %717 = vmatprep.subr.mxu0 0.0
    %718 = vmatpush1.xpose.msra.mxu0 0.0
    %719 = vmatprep.subr.mxu0 0.0
    %720 = vmatpush1.xpose.msra.mxu0 0.0
    %721 = vmatprep.subr.mxu0 0.0
    %722 = vmatpush1.xpose.msra.mxu0 0.0
    %723 = vmatprep.subr.mxu0 0.0
    %724 = vmatpush1.xpose.msra.mxu0 0.0
    %725 = vmatprep.subr.mxu0 0.0
    %726 = vmatpush1.xpose.msra.mxu0 0.0
    %727 = vmatprep.subr.mxu0 0.0
    %728 = vmatpush1.xpose.msra.mxu0 0.0
    %729 = vmatprep.subr.mxu0 0.0
    %730 = vmatpush1.xpose.msra.mxu0 0.0
    %731 = vmatprep.subr.mxu0 0.0
    %732 = vmatpush1.xpose.msra.mxu0 0.0
    %733 = vmatprep.subr.mxu0 0.0
    %734 = vmatpush1.xpose.msra.mxu0 0.0
    %735 = vmatprep.subr.mxu0 0.0
    %736 = vmatpush1.xpose.msra.mxu0 0.0
    %737 = vmatprep.subr.mxu0 0.0
    %738 = vmatpush1.xpose.msra.mxu0 0.0
    %739 = vmatprep.mubr.f32.mxu0 0.0
    %740 = vmatmul.mubr.f32.gmra.mrb[0].mxu0 %v671
    %v741 = vpop.f32.mrb[0].mxu0
    %v742 = vadd.f32 0.0, %v741
    %v743 = vpop.f32.mrb[0].mxu0
    %744 = vdwg.mxu0
    %745 = vrot.lane.b32.xlu0 %v211, 96
    %v746 = vpop.permute.xlu0 %745
    %v747 = vsel %vm214, %v211, 0
    %v749 = vsel %vm214, %v746, 0
    %751 = vmatprep.subr.mxu0 0.0
    %752 = vmatpush1.xpose.msra.mxu0 %v749
    %753 = vmatprep.subr.mxu0 0.0
    %754 = vmatpush1.xpose.msra.mxu0 0.0
    %755 = vmatprep.subr.mxu0 0.0
    %756 = vmatpush1.xpose.msra.mxu0 0.0
    %757 = vmatprep.subr.mxu0 0.0
    %758 = vmatpush1.xpose.msra.mxu0 0.0
    %759 = vmatprep.subr.mxu0 0.0
    %760 = vmatpush1.xpose.msra.mxu0 0.0
    %761 = vmatprep.subr.mxu0 0.0
    %762 = vmatpush1.xpose.msra.mxu0 0.0
    %763 = vmatprep.subr.mxu0 0.0
    %764 = vmatpush1.xpose.msra.mxu0 0.0
    %765 = vmatprep.subr.mxu0 0.0
    %766 = vmatpush1.xpose.msra.mxu0 0.0
    %767 = vmatprep.subr.mxu0 0.0
    %768 = vmatpush1.xpose.msra.mxu0 0.0
    %769 = vmatprep.subr.mxu0 0.0
    %770 = vmatpush1.xpose.msra.mxu0 0.0
    %771 = vmatprep.subr.mxu0 0.0
    %772 = vmatpush1.xpose.msra.mxu0 0.0
    %773 = vmatprep.subr.mxu0 0.0
    %774 = vmatpush1.xpose.msra.mxu0 0.0
    %775 = vmatprep.subr.mxu0 0.0
    %776 = vmatpush1.xpose.msra.mxu0 0.0
    %777 = vmatprep.subr.mxu0 0.0
    %778 = vmatpush1.xpose.msra.mxu0 0.0
    %779 = vmatprep.subr.mxu0 0.0
    %780 = vmatpush1.xpose.msra.mxu0 0.0
    %781 = vmatprep.subr.mxu0 0.0
    %782 = vmatpush1.xpose.msra.mxu0 0.0
    %783 = vmatprep.subr.mxu0 0.0
    %784 = vmatpush1.xpose.msra.mxu0 0.0
    %785 = vmatprep.subr.mxu0 0.0
    %786 = vmatpush1.xpose.msra.mxu0 0.0
    %787 = vmatprep.subr.mxu0 0.0
    %788 = vmatpush1.xpose.msra.mxu0 0.0
    %789 = vmatprep.subr.mxu0 0.0
    %790 = vmatpush1.xpose.msra.mxu0 0.0
    %791 = vmatprep.subr.mxu0 0.0
    %792 = vmatpush1.xpose.msra.mxu0 0.0
    %793 = vmatprep.subr.mxu0 0.0
    %794 = vmatpush1.xpose.msra.mxu0 0.0
    %795 = vmatprep.subr.mxu0 0.0
    %796 = vmatpush1.xpose.msra.mxu0 0.0
    %797 = vmatprep.subr.mxu0 0.0
    %798 = vmatpush1.xpose.msra.mxu0 0.0
    %799 = vmatprep.subr.mxu0 0.0
    %800 = vmatpush1.xpose.msra.mxu0 0.0
    %801 = vmatprep.subr.mxu0 0.0
    %802 = vmatpush1.xpose.msra.mxu0 0.0
    %803 = vmatprep.subr.mxu0 0.0
    %804 = vmatpush1.xpose.msra.mxu0 0.0
    %805 = vmatprep.subr.mxu0 0.0
    %806 = vmatpush1.xpose.msra.mxu0 0.0
    %807 = vmatprep.subr.mxu0 0.0
    %808 = vmatpush1.xpose.msra.mxu0 0.0
    %809 = vmatprep.subr.mxu0 0.0
    %810 = vmatpush1.xpose.msra.mxu0 0.0
    %811 = vmatprep.subr.mxu0 0.0
    %812 = vmatpush1.xpose.msra.mxu0 0.0
    %813 = vmatprep.subr.mxu0 0.0
    %814 = vmatpush1.xpose.msra.mxu0 0.0
    %815 = vmatprep.mubr.f32.mxu0 0.0
    %816 = vmatmul.mubr.f32.gmra.mrb[0].mxu0 %v747
    %v817 = vpop.f32.mrb[0].mxu0
    %v818 = vadd.f32 0.0, %v817
    %v819 = vpop.f32.mrb[0].mxu0
    %820 = vdwg.mxu0
    %v821 = vmul.f32 %v286, 0.35355338
    %v822 = vmul.f32 %v362, 0.35355338
    %v823 = vmul.f32 %v438, 0.35355338
    %v824 = vmul.f32 %v514, 0.35355338
    %v825 = vmul.f32 %v590, 0.35355338
    %v826 = vmul.f32 %v666, 0.35355338
    %v827 = vmul.f32 %v742, 0.35355338
    %v828 = vmul.f32 %v818, 0.35355338
    %v829 = vadd.f32 %v821, %v98
    %v830 = vadd.f32 %v822, %v99
    %v831 = vadd.f32 %v823, %v98
    %v832 = vadd.f32 %v824, %v99
    %v833 = vadd.f32 %v825, %v98
    %v834 = vadd.f32 %v826, %v99
    %v835 = vadd.f32 %v827, %v98
    %v836 = vadd.f32 %v828, %v99
    %v837 = vsel %vm214, %v829, -inf
    %838 = vmax.xlane.f32.xlu0 %v837
    %v839 = vpop.xlane.xlu0 %838
    %v840 = vsel %vm214, %v830, -inf
    %841 = vmax.xlane.f32.xlu0 %v840
    %v842 = vpop.xlane.xlu0 %841
    %v843 = vsel %vm214, %v831, -inf
    %844 = vmax.xlane.f32.xlu0 %v843
    %v845 = vpop.xlane.xlu0 %844
    %v846 = vsel %vm214, %v832, -inf
    %847 = vmax.xlane.f32.xlu0 %v846
    %v848 = vpop.xlane.xlu0 %847
    %v849 = vsel %vm214, %v833, -inf
    %850 = vmax.xlane.f32.xlu0 %v849
    %v851 = vpop.xlane.xlu0 %850
    %v852 = vsel %vm214, %v834, -inf
    %853 = vmax.xlane.f32.xlu0 %v852
    %v854 = vpop.xlane.xlu0 %853
    %v855 = vsel %vm214, %v835, -inf
    %856 = vmax.xlane.f32.xlu0 %v855
    %v857 = vpop.xlane.xlu0 %856
    %v858 = vsel %vm214, %v836, -inf
    %859 = vmax.xlane.f32.xlu0 %v858
    %v860 = vpop.xlane.xlu0 %859
    %v861 = vsub.f32 %v829, %v839
    %v862 = vsub.f32 %v830, %v842
    %v863 = vsub.f32 %v831, %v845
    %v864 = vsub.f32 %v832, %v848
    %v865 = vsub.f32 %v833, %v851
    %v866 = vsub.f32 %v834, %v854
    %v867 = vsub.f32 %v835, %v857
    %v868 = vsub.f32 %v836, %v860
    %v869 = vmul.f32 %v861, 1.442695
    %v870 = vpow.pop %v869
    %v871 = vmul.f32 %v862, 1.442695
    %v872 = vpow.pop %v871
    %v873 = vmul.f32 %v863, 1.442695
    %v874 = vpow.pop %v873
    %v875 = vmul.f32 %v864, 1.442695
    %v876 = vpow.pop %v875
    %v877 = vmul.f32 %v865, 1.442695
    %v878 = vpow.pop %v877
    %v879 = vmul.f32 %v866, 1.442695
    %v880 = vpow.pop %v879
    %v881 = vmul.f32 %v867, 1.442695
    %v882 = vpow.pop %v881
    %v883 = vmul.f32 %v868, 1.442695
    %v884 = vpow.pop %v883
    %v885 = vsel %vm214, %v870, 0.0
    %886 = vadd.xlane.f32.xlu0 %v885
    %v887 = vpop.xlane.xlu0 %886
    %v888 = vsel %vm214, %v872, 0.0
    %889 = vadd.xlane.f32.xlu0 %v888
    %v890 = vpop.xlane.xlu0 %889
    %v891 = vsel %vm214, %v874, 0.0
    %892 = vadd.xlane.f32.xlu0 %v891
    %v893 = vpop.xlane.xlu0 %892
    %v894 = vsel %vm214, %v876, 0.0
    %895 = vadd.xlane.f32.xlu0 %v894
    %v896 = vpop.xlane.xlu0 %895
    %v897 = vsel %vm214, %v878, 0.0
    %898 = vadd.xlane.f32.xlu0 %v897
    %v899 = vpop.xlane.xlu0 %898
    %v900 = vsel %vm214, %v880, 0.0
    %901 = vadd.xlane.f32.xlu0 %v900
    %v902 = vpop.xlane.xlu0 %901
    %v903 = vsel %vm214, %v882, 0.0
    %904 = vadd.xlane.f32.xlu0 %v903
    %v905 = vpop.xlane.xlu0 %904
    %v906 = vsel %vm214, %v884, 0.0
    %907 = vadd.xlane.f32.xlu0 %v906
    %v908 = vpop.xlane.xlu0 %907
    %v909 = vrcp.pop %v887
    %v910 = vrcp.pop %v890
    %v911 = vrcp.pop %v893
    %v912 = vrcp.pop %v896
    %v913 = vrcp.pop %v899
    %v914 = vrcp.pop %v902
    %v915 = vrcp.pop %v905
    %v916 = vrcp.pop %v908
    %v917 = vmul.f32 %v870, %v909
    %v918 = vmul.f32 %v872, %v910
    %v919 = vmul.f32 %v874, %v911
    %v920 = vmul.f32 %v876, %v912
    %v921 = vmul.f32 %v878, %v913
    %v922 = vmul.f32 %v880, %v914
    %v923 = vmul.f32 %v882, %v915
    %v924 = vmul.f32 %v884, %v916
    %925 = vrot.lane.b32.xlu0 %v185, 64
    %v926 = vpop.permute.xlu0 %925
    %v929 = vsel %vm214, %v917, 0
    %931 = vmatprep.subr.mxu0 0.0
    %932 = vmatpush1.msra.mxu0 %v926
    %933 = vmatprep.subr.mxu0 0.0
    %934 = vmatpush1.msra.mxu0 0.0
    %935 = vmatprep.subr.mxu0 0.0
    %936 = vmatpush1.msra.mxu0 0.0
    %937 = vmatprep.subr.mxu0 0.0
    %938 = vmatpush1.msra.mxu0 0.0
    %939 = vmatprep.subr.mxu0 0.0
    %940 = vmatpush1.msra.mxu0 0.0
    %941 = vmatprep.subr.mxu0 0.0
    %942 = vmatpush1.msra.mxu0 0.0
    %943 = vmatprep.subr.mxu0 0.0
    %944 = vmatpush1.msra.mxu0 0.0
    %945 = vmatprep.subr.mxu0 0.0
    %946 = vmatpush1.msra.mxu0 0.0
    %947 = vmatprep.subr.mxu0 0.0
    %948 = vmatpush1.msra.mxu0 0.0
    %949 = vmatprep.subr.mxu0 0.0
    %950 = vmatpush1.msra.mxu0 0.0
    %951 = vmatprep.subr.mxu0 0.0
    %952 = vmatpush1.msra.mxu0 0.0
    %953 = vmatprep.subr.mxu0 0.0
    %954 = vmatpush1.msra.mxu0 0.0
    %955 = vmatprep.subr.mxu0 0.0
    %956 = vmatpush1.msra.mxu0 0.0
    %957 = vmatprep.subr.mxu0 0.0
    %958 = vmatpush1.msra.mxu0 0.0
    %959 = vmatprep.subr.mxu0 0.0
    %960 = vmatpush1.msra.mxu0 0.0
    %961 = vmatprep.subr.mxu0 0.0
    %962 = vmatpush1.msra.mxu0 0.0
    %963 = vmatprep.subr.mxu0 0.0
    %964 = vmatpush1.msra.mxu0 0.0
    %965 = vmatprep.subr.mxu0 0.0
    %966 = vmatpush1.msra.mxu0 0.0
    %967 = vmatprep.subr.mxu0 0.0
    %968 = vmatpush1.msra.mxu0 0.0
    %969 = vmatprep.subr.mxu0 0.0
    %970 = vmatpush1.msra.mxu0 0.0
    %971 = vmatprep.subr.mxu0 0.0
    %972 = vmatpush1.msra.mxu0 0.0
    %973 = vmatprep.subr.mxu0 0.0
    %974 = vmatpush1.msra.mxu0 0.0
    %975 = vmatprep.subr.mxu0 0.0
    %976 = vmatpush1.msra.mxu0 0.0
    %977 = vmatprep.subr.mxu0 0.0
    %978 = vmatpush1.msra.mxu0 0.0
    %979 = vmatprep.subr.mxu0 0.0
    %980 = vmatpush1.msra.mxu0 0.0
    %981 = vmatprep.subr.mxu0 0.0
    %982 = vmatpush1.msra.mxu0 0.0
    %983 = vmatprep.subr.mxu0 0.0
    %984 = vmatpush1.msra.mxu0 0.0
    %985 = vmatprep.subr.mxu0 0.0
    %986 = vmatpush1.msra.mxu0 0.0
    %987 = vmatprep.subr.mxu0 0.0
    %988 = vmatpush1.msra.mxu0 0.0
    %989 = vmatprep.subr.mxu0 0.0
    %990 = vmatpush1.msra.mxu0 0.0
    %991 = vmatprep.subr.mxu0 0.0
    %992 = vmatpush1.msra.mxu0 0.0
    %993 = vmatprep.subr.mxu0 0.0
    %994 = vmatpush1.msra.mxu0 0.0
    %995 = vmatprep.mubr.f32.mxu0 0.0
    %996 = vmatmul.mubr.f32.gmra.mrb[0].mxu0 %v929
    %v997 = vpop.f32.mrb[0].mxu0
    %v998 = vadd.f32 0.0, %v997
    %v999 = vpop.f32.mrb[0].mxu0
    %1000 = vdwg.mxu0
    %1001 = vrot.lane.b32.xlu0 %v190, 64
    %v1002 = vpop.permute.xlu0 %1001
    %v1005 = vsel %vm214, %v918, 0
    %1007 = vmatprep.subr.mxu0 0.0
    %1008 = vmatpush1.msra.mxu0 %v1002
    %1009 = vmatprep.subr.mxu0 0.0
    %1010 = vmatpush1.msra.mxu0 0.0
    %1011 = vmatprep.subr.mxu0 0.0
    %1012 = vmatpush1.msra.mxu0 0.0
    %1013 = vmatprep.subr.mxu0 0.0
    %1014 = vmatpush1.msra.mxu0 0.0
    %1015 = vmatprep.subr.mxu0 0.0
    %1016 = vmatpush1.msra.mxu0 0.0
    %1017 = vmatprep.subr.mxu0 0.0
    %1018 = vmatpush1.msra.mxu0 0.0
    %1019 = vmatprep.subr.mxu0 0.0
    %1020 = vmatpush1.msra.mxu0 0.0
    %1021 = vmatprep.subr.mxu0 0.0
    %1022 = vmatpush1.msra.mxu0 0.0
    %1023 = vmatprep.subr.mxu0 0.0
    %1024 = vmatpush1.msra.mxu0 0.0
    %1025 = vmatprep.subr.mxu0 0.0
    %1026 = vmatpush1.msra.mxu0 0.0
    %1027 = vmatprep.subr.mxu0 0.0
    %1028 = vmatpush1.msra.mxu0 0.0
    %1029 = vmatprep.subr.mxu0 0.0
    %1030 = vmatpush1.msra.mxu0 0.0
    %1031 = vmatprep.subr.mxu0 0.0
    %1032 = vmatpush1.msra.mxu0 0.0
    %1033 = vmatprep.subr.mxu0 0.0
    %1034 = vmatpush1.msra.mxu0 0.0
    %1035 = vmatprep.subr.mxu0 0.0
    %1036 = vmatpush1.msra.mxu0 0.0
    %1037 = vmatprep.subr.mxu0 0.0
    %1038 = vmatpush1.msra.mxu0 0.0
    %1039 = vmatprep.subr.mxu0 0.0
    %1040 = vmatpush1.msra.mxu0 0.0
    %1041 = vmatprep.subr.mxu0 0.0
    %1042 = vmatpush1.msra.mxu0 0.0
    %1043 = vmatprep.subr.mxu0 0.0
    %1044 = vmatpush1.msra.mxu0 0.0
    %1045 = vmatprep.subr.mxu0 0.0
    %1046 = vmatpush1.msra.mxu0 0.0
    %1047 = vmatprep.subr.mxu0 0.0
    %1048 = vmatpush1.msra.mxu0 0.0
    %1049 = vmatprep.subr.mxu0 0.0
    %1050 = vmatpush1.msra.mxu0 0.0
    %1051 = vmatprep.subr.mxu0 0.0
    %1052 = vmatpush1.msra.mxu0 0.0
    %1053 = vmatprep.subr.mxu0 0.0
    %1054 = vmatpush1.msra.mxu0 0.0
    %1055 = vmatprep.subr.mxu0 0.0
    %1056 = vmatpush1.msra.mxu0 0.0
    %1057 = vmatprep.subr.mxu0 0.0
    %1058 = vmatpush1.msra.mxu0 0.0
    %1059 = vmatprep.subr.mxu0 0.0
    %1060 = vmatpush1.msra.mxu0 0.0
    %1061 = vmatprep.subr.mxu0 0.0
    %1062 = vmatpush1.msra.mxu0 0.0
    %1063 = vmatprep.subr.mxu0 0.0
    %1064 = vmatpush1.msra.mxu0 0.0
    %1065 = vmatprep.subr.mxu0 0.0
    %1066 = vmatpush1.msra.mxu0 0.0
    %1067 = vmatprep.subr.mxu0 0.0
    %1068 = vmatpush1.msra.mxu0 0.0
    %1069 = vmatprep.subr.mxu0 0.0
    %1070 = vmatpush1.msra.mxu0 0.0
    %1071 = vmatprep.mubr.f32.mxu0 0.0
    %1072 = vmatmul.mubr.f32.gmra.mrb[0].mxu0 %v1005
    %v1073 = vpop.f32.mrb[0].mxu0
    %v1074 = vadd.f32 0.0, %v1073
    %v1075 = vpop.f32.mrb[0].mxu0
    %1076 = vdwg.mxu0
    %1077 = vrot.lane.b32.xlu0 %v201, 64
    %v1078 = vpop.permute.xlu0 %1077
    %v1081 = vsel %vm214, %v919, 0
    %1083 = vmatprep.subr.mxu0 0.0
    %1084 = vmatpush1.msra.mxu0 %v1078
    %1085 = vmatprep.subr.mxu0 0.0
    %1086 = vmatpush1.msra.mxu0 0.0
    %1087 = vmatprep.subr.mxu0 0.0
    %1088 = vmatpush1.msra.mxu0 0.0
    %1089 = vmatprep.subr.mxu0 0.0
    %1090 = vmatpush1.msra.mxu0 0.0
    %1091 = vmatprep.subr.mxu0 0.0
    %1092 = vmatpush1.msra.mxu0 0.0
    %1093 = vmatprep.subr.mxu0 0.0
    %1094 = vmatpush1.msra.mxu0 0.0
    %1095 = vmatprep.subr.mxu0 0.0
    %1096 = vmatpush1.msra.mxu0 0.0
    %1097 = vmatprep.subr.mxu0 0.0
    %1098 = vmatpush1.msra.mxu0 0.0
    %1099 = vmatprep.subr.mxu0 0.0
    %1100 = vmatpush1.msra.mxu0 0.0
    %1101 = vmatprep.subr.mxu0 0.0
    %1102 = vmatpush1.msra.mxu0 0.0
    %1103 = vmatprep.subr.mxu0 0.0
    %1104 = vmatpush1.msra.mxu0 0.0
    %1105 = vmatprep.subr.mxu0 0.0
    %1106 = vmatpush1.msra.mxu0 0.0
    %1107 = vmatprep.subr.mxu0 0.0
    %1108 = vmatpush1.msra.mxu0 0.0
    %1109 = vmatprep.subr.mxu0 0.0
    %1110 = vmatpush1.msra.mxu0 0.0
    %1111 = vmatprep.subr.mxu0 0.0
    %1112 = vmatpush1.msra.mxu0 0.0
    %1113 = vmatprep.subr.mxu0 0.0
    %1114 = vmatpush1.msra.mxu0 0.0
    %1115 = vmatprep.subr.mxu0 0.0
    %1116 = vmatpush1.msra.mxu0 0.0
    %1117 = vmatprep.subr.mxu0 0.0
    %1118 = vmatpush1.msra.mxu0 0.0
    %1119 = vmatprep.subr.mxu0 0.0
    %1120 = vmatpush1.msra.mxu0 0.0
    %1121 = vmatprep.subr.mxu0 0.0
    %1122 = vmatpush1.msra.mxu0 0.0
    %1123 = vmatprep.subr.mxu0 0.0
    %1124 = vmatpush1.msra.mxu0 0.0
    %1125 = vmatprep.subr.mxu0 0.0
    %1126 = vmatpush1.msra.mxu0 0.0
    %1127 = vmatprep.subr.mxu0 0.0
    %1128 = vmatpush1.msra.mxu0 0.0
    %1129 = vmatprep.subr.mxu0 0.0
    %1130 = vmatpush1.msra.mxu0 0.0
    %1131 = vmatprep.subr.mxu0 0.0
    %1132 = vmatpush1.msra.mxu0 0.0
    %1133 = vmatprep.subr.mxu0 0.0
    %1134 = vmatpush1.msra.mxu0 0.0
    %1135 = vmatprep.subr.mxu0 0.0
    %1136 = vmatpush1.msra.mxu0 0.0
    %1137 = vmatprep.subr.mxu0 0.0
    %1138 = vmatpush1.msra.mxu0 0.0
    %1139 = vmatprep.subr.mxu0 0.0
    %1140 = vmatpush1.msra.mxu0 0.0
    %1141 = vmatprep.subr.mxu0 0.0
    %1142 = vmatpush1.msra.mxu0 0.0
    %1143 = vmatprep.subr.mxu0 0.0
    %1144 = vmatpush1.msra.mxu0 0.0
    %1145 = vmatprep.subr.mxu0 0.0
    %1146 = vmatpush1.msra.mxu0 0.0
    %1147 = vmatprep.mubr.f32.mxu0 0.0
    %1148 = vmatmul.mubr.f32.gmra.mrb[0].mxu0 %v1081
    %v1149 = vpop.f32.mrb[0].mxu0
    %v1150 = vadd.f32 0.0, %v1149
    %v1151 = vpop.f32.mrb[0].mxu0
    %1152 = vdwg.mxu0
    %1153 = vrot.lane.b32.xlu0 %v203, 64
    %v1154 = vpop.permute.xlu0 %1153
    %v1157 = vsel %vm214, %v920, 0
    %1159 = vmatprep.subr.mxu0 0.0
    %1160 = vmatpush1.msra.mxu0 %v1154
    %1161 = vmatprep.subr.mxu0 0.0
    %1162 = vmatpush1.msra.mxu0 0.0
    %1163 = vmatprep.subr.mxu0 0.0
    %1164 = vmatpush1.msra.mxu0 0.0
    %1165 = vmatprep.subr.mxu0 0.0
    %1166 = vmatpush1.msra.mxu0 0.0
    %1167 = vmatprep.subr.mxu0 0.0
    %1168 = vmatpush1.msra.mxu0 0.0
    %1169 = vmatprep.subr.mxu0 0.0
    %1170 = vmatpush1.msra.mxu0 0.0
    %1171 = vmatprep.subr.mxu0 0.0
    %1172 = vmatpush1.msra.mxu0 0.0
    %1173 = vmatprep.subr.mxu0 0.0
    %1174 = vmatpush1.msra.mxu0 0.0
    %1175 = vmatprep.subr.mxu0 0.0
    %1176 = vmatpush1.msra.mxu0 0.0
    %1177 = vmatprep.subr.mxu0 0.0
    %1178 = vmatpush1.msra.mxu0 0.0
    %1179 = vmatprep.subr.mxu0 0.0
    %1180 = vmatpush1.msra.mxu0 0.0
    %1181 = vmatprep.subr.mxu0 0.0
    %1182 = vmatpush1.msra.mxu0 0.0
    %1183 = vmatprep.subr.mxu0 0.0
    %1184 = vmatpush1.msra.mxu0 0.0
    %1185 = vmatprep.subr.mxu0 0.0
    %1186 = vmatpush1.msra.mxu0 0.0
    %1187 = vmatprep.subr.mxu0 0.0
    %1188 = vmatpush1.msra.mxu0 0.0
    %1189 = vmatprep.subr.mxu0 0.0
    %1190 = vmatpush1.msra.mxu0 0.0
    %1191 = vmatprep.subr.mxu0 0.0
    %1192 = vmatpush1.msra.mxu0 0.0
    %1193 = vmatprep.subr.mxu0 0.0
    %1194 = vmatpush1.msra.mxu0 0.0
    %1195 = vmatprep.subr.mxu0 0.0
    %1196 = vmatpush1.msra.mxu0 0.0
    %1197 = vmatprep.subr.mxu0 0.0
    %1198 = vmatpush1.msra.mxu0 0.0
    %1199 = vmatprep.subr.mxu0 0.0
    %1200 = vmatpush1.msra.mxu0 0.0
    %1201 = vmatprep.subr.mxu0 0.0
    %1202 = vmatpush1.msra.mxu0 0.0
    %1203 = vmatprep.subr.mxu0 0.0
    %1204 = vmatpush1.msra.mxu0 0.0
    %1205 = vmatprep.subr.mxu0 0.0
    %1206 = vmatpush1.msra.mxu0 0.0
    %1207 = vmatprep.subr.mxu0 0.0
    %1208 = vmatpush1.msra.mxu0 0.0
    %1209 = vmatprep.subr.mxu0 0.0
    %1210 = vmatpush1.msra.mxu0 0.0
    %1211 = vmatprep.subr.mxu0 0.0
    %1212 = vmatpush1.msra.mxu0 0.0
    %1213 = vmatprep.subr.mxu0 0.0
    %1214 = vmatpush1.msra.mxu0 0.0
    %1215 = vmatprep.subr.mxu0 0.0
    %1216 = vmatpush1.msra.mxu0 0.0
    %1217 = vmatprep.subr.mxu0 0.0
    %1218 = vmatpush1.msra.mxu0 0.0
    %1219 = vmatprep.subr.mxu0 0.0
    %1220 = vmatpush1.msra.mxu0 0.0
    %1221 = vmatprep.subr.mxu0 0.0
    %1222 = vmatpush1.msra.mxu0 0.0
    %1223 = vmatprep.mubr.f32.mxu0 0.0
    %1224 = vmatmul.mubr.f32.gmra.mrb[0].mxu0 %v1157
    %v1225 = vpop.f32.mrb[0].mxu0
    %v1226 = vadd.f32 0.0, %v1225
    %v1227 = vpop.f32.mrb[0].mxu0
    %1228 = vdwg.mxu0
    %1229 = vrot.lane.b32.xlu0 %v205, 64
    %v1230 = vpop.permute.xlu0 %1229
    %v1233 = vsel %vm214, %v921, 0
    %1235 = vmatprep.subr.mxu0 0.0
    %1236 = vmatpush1.msra.mxu0 %v1230
    %1237 = vmatprep.subr.mxu0 0.0
    %1238 = vmatpush1.msra.mxu0 0.0
    %1239 = vmatprep.subr.mxu0 0.0
    %1240 = vmatpush1.msra.mxu0 0.0
    %1241 = vmatprep.subr.mxu0 0.0
    %1242 = vmatpush1.msra.mxu0 0.0
    %1243 = vmatprep.subr.mxu0 0.0
    %1244 = vmatpush1.msra.mxu0 0.0
    %1245 = vmatprep.subr.mxu0 0.0
    %1246 = vmatpush1.msra.mxu0 0.0
    %1247 = vmatprep.subr.mxu0 0.0
    %1248 = vmatpush1.msra.mxu0 0.0
    %1249 = vmatprep.subr.mxu0 0.0
    %1250 = vmatpush1.msra.mxu0 0.0
    %1251 = vmatprep.subr.mxu0 0.0
    %1252 = vmatpush1.msra.mxu0 0.0
    %1253 = vmatprep.subr.mxu0 0.0
    %1254 = vmatpush1.msra.mxu0 0.0
    %1255 = vmatprep.subr.mxu0 0.0
    %1256 = vmatpush1.msra.mxu0 0.0
    %1257 = vmatprep.subr.mxu0 0.0
    %1258 = vmatpush1.msra.mxu0 0.0
    %1259 = vmatprep.subr.mxu0 0.0
    %1260 = vmatpush1.msra.mxu0 0.0
    %1261 = vmatprep.subr.mxu0 0.0
    %1262 = vmatpush1.msra.mxu0 0.0
    %1263 = vmatprep.subr.mxu0 0.0
    %1264 = vmatpush1.msra.mxu0 0.0
    %1265 = vmatprep.subr.mxu0 0.0
    %1266 = vmatpush1.msra.mxu0 0.0
    %1267 = vmatprep.subr.mxu0 0.0
    %1268 = vmatpush1.msra.mxu0 0.0
    %1269 = vmatprep.subr.mxu0 0.0
    %1270 = vmatpush1.msra.mxu0 0.0
    %1271 = vmatprep.subr.mxu0 0.0
    %1272 = vmatpush1.msra.mxu0 0.0
    %1273 = vmatprep.subr.mxu0 0.0
    %1274 = vmatpush1.msra.mxu0 0.0
    %1275 = vmatprep.subr.mxu0 0.0
    %1276 = vmatpush1.msra.mxu0 0.0
    %1277 = vmatprep.subr.mxu0 0.0
    %1278 = vmatpush1.msra.mxu0 0.0
    %1279 = vmatprep.subr.mxu0 0.0
    %1280 = vmatpush1.msra.mxu0 0.0
    %1281 = vmatprep.subr.mxu0 0.0
    %1282 = vmatpush1.msra.mxu0 0.0
    %1283 = vmatprep.subr.mxu0 0.0
    %1284 = vmatpush1.msra.mxu0 0.0
    %1285 = vmatprep.subr.mxu0 0.0
    %1286 = vmatpush1.msra.mxu0 0.0
    %1287 = vmatprep.subr.mxu0 0.0
    %1288 = vmatpush1.msra.mxu0 0.0
    %1289 = vmatprep.subr.mxu0 0.0
    %1290 = vmatpush1.msra.mxu0 0.0
    %1291 = vmatprep.subr.mxu0 0.0
    %1292 = vmatpush1.msra.mxu0 0.0
    %1293 = vmatprep.subr.mxu0 0.0
    %1294 = vmatpush1.msra.mxu0 0.0
    %1295 = vmatprep.subr.mxu0 0.0
    %1296 = vmatpush1.msra.mxu0 0.0
    %1297 = vmatprep.subr.mxu0 0.0
    %1298 = vmatpush1.msra.mxu0 0.0
    %1299 = vmatprep.mubr.f32.mxu0 0.0
    %1300 = vmatmul.mubr.f32.gmra.mrb[0].mxu0 %v1233
    %v1301 = vpop.f32.mrb[0].mxu0
    %v1302 = vadd.f32 0.0, %v1301
    %v1303 = vpop.f32.mrb[0].mxu0
    %1304 = vdwg.mxu0
    %1305 = vrot.lane.b32.xlu0 %v207, 64
    %v1306 = vpop.permute.xlu0 %1305
    %v1309 = vsel %vm214, %v922, 0
    %1311 = vmatprep.subr.mxu0 0.0
    %1312 = vmatpush1.msra.mxu0 %v1306
    %1313 = vmatprep.subr.mxu0 0.0
    %1314 = vmatpush1.msra.mxu0 0.0
    %1315 = vmatprep.subr.mxu0 0.0
    %1316 = vmatpush1.msra.mxu0 0.0
    %1317 = vmatprep.subr.mxu0 0.0
    %1318 = vmatpush1.msra.mxu0 0.0
    %1319 = vmatprep.subr.mxu0 0.0
    %1320 = vmatpush1.msra.mxu0 0.0
    %1321 = vmatprep.subr.mxu0 0.0
    %1322 = vmatpush1.msra.mxu0 0.0
    %1323 = vmatprep.subr.mxu0 0.0
    %1324 = vmatpush1.msra.mxu0 0.0
    %1325 = vmatprep.subr.mxu0 0.0
    %1326 = vmatpush1.msra.mxu0 0.0
    %1327 = vmatprep.subr.mxu0 0.0
    %1328 = vmatpush1.msra.mxu0 0.0
    %1329 = vmatprep.subr.mxu0 0.0
    %1330 = vmatpush1.msra.mxu0 0.0
    %1331 = vmatprep.subr.mxu0 0.0
    %1332 = vmatpush1.msra.mxu0 0.0
    %1333 = vmatprep.subr.mxu0 0.0
    %1334 = vmatpush1.msra.mxu0 0.0
    %1335 = vmatprep.subr.mxu0 0.0
    %1336 = vmatpush1.msra.mxu0 0.0
    %1337 = vmatprep.subr.mxu0 0.0
    %1338 = vmatpush1.msra.mxu0 0.0
    %1339 = vmatprep.subr.mxu0 0.0
    %1340 = vmatpush1.msra.mxu0 0.0
    %1341 = vmatprep.subr.mxu0 0.0
    %1342 = vmatpush1.msra.mxu0 0.0
    %1343 = vmatprep.subr.mxu0 0.0
    %1344 = vmatpush1.msra.mxu0 0.0
    %1345 = vmatprep.subr.mxu0 0.0
    %1346 = vmatpush1.msra.mxu0 0.0
    %1347 = vmatprep.subr.mxu0 0.0
    %1348 = vmatpush1.msra.mxu0 0.0
    %1349 = vmatprep.subr.mxu0 0.0
    %1350 = vmatpush1.msra.mxu0 0.0
    %1351 = vmatprep.subr.mxu0 0.0
    %1352 = vmatpush1.msra.mxu0 0.0
    %1353 = vmatprep.subr.mxu0 0.0
    %1354 = vmatpush1.msra.mxu0 0.0
    %1355 = vmatprep.subr.mxu0 0.0
    %1356 = vmatpush1.msra.mxu0 0.0
    %1357 = vmatprep.subr.mxu0 0.0
    %1358 = vmatpush1.msra.mxu0 0.0
    %1359 = vmatprep.subr.mxu0 0.0
    %1360 = vmatpush1.msra.mxu0 0.0
    %1361 = vmatprep.subr.mxu0 0.0
    %1362 = vmatpush1.msra.mxu0 0.0
    %1363 = vmatprep.subr.mxu0 0.0
    %1364 = vmatpush1.msra.mxu0 0.0
    %1365 = vmatprep.subr.mxu0 0.0
    %1366 = vmatpush1.msra.mxu0 0.0
    %1367 = vmatprep.subr.mxu0 0.0
    %1368 = vmatpush1.msra.mxu0 0.0
    %1369 = vmatprep.subr.mxu0 0.0
    %1370 = vmatpush1.msra.mxu0 0.0
    %1371 = vmatprep.subr.mxu0 0.0
    %1372 = vmatpush1.msra.mxu0 0.0
    %1373 = vmatprep.subr.mxu0 0.0
    %1374 = vmatpush1.msra.mxu0 0.0
    %1375 = vmatprep.mubr.f32.mxu0 0.0
    %1376 = vmatmul.mubr.f32.gmra.mrb[0].mxu0 %v1309
    %v1377 = vpop.f32.mrb[0].mxu0
    %v1378 = vadd.f32 0.0, %v1377
    %v1379 = vpop.f32.mrb[0].mxu0
    %1380 = vdwg.mxu0
    %1381 = vrot.lane.b32.xlu0 %v209, 64
    %v1382 = vpop.permute.xlu0 %1381
    %v1385 = vsel %vm214, %v923, 0
    %1387 = vmatprep.subr.mxu0 0.0
    %1388 = vmatpush1.msra.mxu0 %v1382
    %1389 = vmatprep.subr.mxu0 0.0
    %1390 = vmatpush1.msra.mxu0 0.0
    %1391 = vmatprep.subr.mxu0 0.0
    %1392 = vmatpush1.msra.mxu0 0.0
    %1393 = vmatprep.subr.mxu0 0.0
    %1394 = vmatpush1.msra.mxu0 0.0
    %1395 = vmatprep.subr.mxu0 0.0
    %1396 = vmatpush1.msra.mxu0 0.0
    %1397 = vmatprep.subr.mxu0 0.0
    %1398 = vmatpush1.msra.mxu0 0.0
    %1399 = vmatprep.subr.mxu0 0.0
    %1400 = vmatpush1.msra.mxu0 0.0
    %1401 = vmatprep.subr.mxu0 0.0
    %1402 = vmatpush1.msra.mxu0 0.0
    %1403 = vmatprep.subr.mxu0 0.0
    %1404 = vmatpush1.msra.mxu0 0.0
    %1405 = vmatprep.subr.mxu0 0.0
    %1406 = vmatpush1.msra.mxu0 0.0
    %1407 = vmatprep.subr.mxu0 0.0
    %1408 = vmatpush1.msra.mxu0 0.0
    %1409 = vmatprep.subr.mxu0 0.0
    %1410 = vmatpush1.msra.mxu0 0.0
    %1411 = vmatprep.subr.mxu0 0.0
    %1412 = vmatpush1.msra.mxu0 0.0
    %1413 = vmatprep.subr.mxu0 0.0
    %1414 = vmatpush1.msra.mxu0 0.0
    %1415 = vmatprep.subr.mxu0 0.0
    %1416 = vmatpush1.msra.mxu0 0.0
    %1417 = vmatprep.subr.mxu0 0.0
    %1418 = vmatpush1.msra.mxu0 0.0
    %1419 = vmatprep.subr.mxu0 0.0
    %1420 = vmatpush1.msra.mxu0 0.0
    %1421 = vmatprep.subr.mxu0 0.0
    %1422 = vmatpush1.msra.mxu0 0.0
    %1423 = vmatprep.subr.mxu0 0.0
    %1424 = vmatpush1.msra.mxu0 0.0
    %1425 = vmatprep.subr.mxu0 0.0
    %1426 = vmatpush1.msra.mxu0 0.0
    %1427 = vmatprep.subr.mxu0 0.0
    %1428 = vmatpush1.msra.mxu0 0.0
    %1429 = vmatprep.subr.mxu0 0.0
    %1430 = vmatpush1.msra.mxu0 0.0
    %1431 = vmatprep.subr.mxu0 0.0
    %1432 = vmatpush1.msra.mxu0 0.0
    %1433 = vmatprep.subr.mxu0 0.0
    %1434 = vmatpush1.msra.mxu0 0.0
    %1435 = vmatprep.subr.mxu0 0.0
    %1436 = vmatpush1.msra.mxu0 0.0
    %1437 = vmatprep.subr.mxu0 0.0
    %1438 = vmatpush1.msra.mxu0 0.0
    %1439 = vmatprep.subr.mxu0 0.0
    %1440 = vmatpush1.msra.mxu0 0.0
    %1441 = vmatprep.subr.mxu0 0.0
    %1442 = vmatpush1.msra.mxu0 0.0
    %1443 = vmatprep.subr.mxu0 0.0
    %1444 = vmatpush1.msra.mxu0 0.0
    %1445 = vmatprep.subr.mxu0 0.0
    %1446 = vmatpush1.msra.mxu0 0.0
    %1447 = vmatprep.subr.mxu0 0.0
    %1448 = vmatpush1.msra.mxu0 0.0
    %1449 = vmatprep.subr.mxu0 0.0
    %1450 = vmatpush1.msra.mxu0 0.0
    %1451 = vmatprep.mubr.f32.mxu0 0.0
    %1452 = vmatmul.mubr.f32.gmra.mrb[0].mxu0 %v1385
    %v1453 = vpop.f32.mrb[0].mxu0
    %v1454 = vadd.f32 0.0, %v1453
    %v1455 = vpop.f32.mrb[0].mxu0
    %1456 = vdwg.mxu0
    %1457 = vrot.lane.b32.xlu0 %v211, 64
    %v1458 = vpop.permute.xlu0 %1457
    %v1461 = vsel %vm214, %v924, 0
    %1463 = vmatprep.subr.mxu0 0.0
    %1464 = vmatpush1.msra.mxu0 %v1458
    %1465 = vmatprep.subr.mxu0 0.0
    %1466 = vmatpush1.msra.mxu0 0.0
    %1467 = vmatprep.subr.mxu0 0.0
    %1468 = vmatpush1.msra.mxu0 0.0
    %1469 = vmatprep.subr.mxu0 0.0
    %1470 = vmatpush1.msra.mxu0 0.0
    %1471 = vmatprep.subr.mxu0 0.0
    %1472 = vmatpush1.msra.mxu0 0.0
    %1473 = vmatprep.subr.mxu0 0.0
    %1474 = vmatpush1.msra.mxu0 0.0
    %1475 = vmatprep.subr.mxu0 0.0
    %1476 = vmatpush1.msra.mxu0 0.0
    %1477 = vmatprep.subr.mxu0 0.0
    %1478 = vmatpush1.msra.mxu0 0.0
    %1479 = vmatprep.subr.mxu0 0.0
    %1480 = vmatpush1.msra.mxu0 0.0
    %1481 = vmatprep.subr.mxu0 0.0
    %1482 = vmatpush1.msra.mxu0 0.0
    %1483 = vmatprep.subr.mxu0 0.0
    %1484 = vmatpush1.msra.mxu0 0.0
    %1485 = vmatprep.subr.mxu0 0.0
    %1486 = vmatpush1.msra.mxu0 0.0
    %1487 = vmatprep.subr.mxu0 0.0
    %1488 = vmatpush1.msra.mxu0 0.0
    %1489 = vmatprep.subr.mxu0 0.0
    %1490 = vmatpush1.msra.mxu0 0.0
    %1491 = vmatprep.subr.mxu0 0.0
    %1492 = vmatpush1.msra.mxu0 0.0
    %1493 = vmatprep.subr.mxu0 0.0
    %1494 = vmatpush1.msra.mxu0 0.0
    %1495 = vmatprep.subr.mxu0 0.0
    %1496 = vmatpush1.msra.mxu0 0.0
    %1497 = vmatprep.subr.mxu0 0.0
    %1498 = vmatpush1.msra.mxu0 0.0
    %1499 = vmatprep.subr.mxu0 0.0
    %1500 = vmatpush1.msra.mxu0 0.0
    %1501 = vmatprep.subr.mxu0 0.0
    %1502 = vmatpush1.msra.mxu0 0.0
    %1503 = vmatprep.subr.mxu0 0.0
    %1504 = vmatpush1.msra.mxu0 0.0
    %1505 = vmatprep.subr.mxu0 0.0
    %1506 = vmatpush1.msra.mxu0 0.0
    %1507 = vmatprep.subr.mxu0 0.0
    %1508 = vmatpush1.msra.mxu0 0.0
    %1509 = vmatprep.subr.mxu0 0.0
    %1510 = vmatpush1.msra.mxu0 0.0
    %1511 = vmatprep.subr.mxu0 0.0
    %1512 = vmatpush1.msra.mxu0 0.0
    %1513 = vmatprep.subr.mxu0 0.0
    %1514 = vmatpush1.msra.mxu0 0.0
    %1515 = vmatprep.subr.mxu0 0.0
    %1516 = vmatpush1.msra.mxu0 0.0
    %1517 = vmatprep.subr.mxu0 0.0
    %1518 = vmatpush1.msra.mxu0 0.0
    %1519 = vmatprep.subr.mxu0 0.0
    %1520 = vmatpush1.msra.mxu0 0.0
    %1521 = vmatprep.subr.mxu0 0.0
    %1522 = vmatpush1.msra.mxu0 0.0
    %1523 = vmatprep.subr.mxu0 0.0
    %1524 = vmatpush1.msra.mxu0 0.0
    %1525 = vmatprep.subr.mxu0 0.0
    %1526 = vmatpush1.msra.mxu0 0.0
    %1527 = vmatprep.mubr.f32.mxu0 0.0
    %1528 = vmatmul.mubr.f32.gmra.mrb[0].mxu0 %v1461
    %v1529 = vpop.f32.mrb[0].mxu0
    %v1530 = vadd.f32 0.0, %v1529
    %v1531 = vpop.f32.mrb[0].mxu0
    %1532 = vdwg.mxu0
    %v1534 = vsel %vm214, %v998, 0
    %v1537 = vsel %vm214, %v1074, 0
    %1539 = vmatprep.subr.mxu0 0.0
    %1540 = vmatpush1.msra.mxu0 %v193
    %1541 = vmatprep.subr.mxu0 0.0
    %1542 = vmatpush1.msra.mxu0 0.0
    %1543 = vmatprep.subr.mxu0 0.0
    %1544 = vmatpush1.msra.mxu0 0.0
    %1545 = vmatprep.subr.mxu0 0.0
    %1546 = vmatpush1.msra.mxu0 0.0
    %1547 = vmatprep.subr.mxu0 0.0
    %1548 = vmatpush1.msra.mxu0 0.0
    %1549 = vmatprep.subr.mxu0 0.0
    %1550 = vmatpush1.msra.mxu0 0.0
    %1551 = vmatprep.subr.mxu0 0.0
    %1552 = vmatpush1.msra.mxu0 0.0
    %1553 = vmatprep.subr.mxu0 0.0
    %1554 = vmatpush1.msra.mxu0 0.0
    %1555 = vmatprep.subr.mxu0 0.0
    %1556 = vmatpush1.msra.mxu0 0.0
    %1557 = vmatprep.subr.mxu0 0.0
    %1558 = vmatpush1.msra.mxu0 0.0
    %1559 = vmatprep.subr.mxu0 0.0
    %1560 = vmatpush1.msra.mxu0 0.0
    %1561 = vmatprep.subr.mxu0 0.0
    %1562 = vmatpush1.msra.mxu0 0.0
    %1563 = vmatprep.subr.mxu0 0.0
    %1564 = vmatpush1.msra.mxu0 0.0
    %1565 = vmatprep.subr.mxu0 0.0
    %1566 = vmatpush1.msra.mxu0 0.0
    %1567 = vmatprep.subr.mxu0 0.0
    %1568 = vmatpush1.msra.mxu0 0.0
    %1569 = vmatprep.subr.mxu0 0.0
    %1570 = vmatpush1.msra.mxu0 0.0
    %1571 = vmatprep.subr.mxu0 0.0
    %1572 = vmatpush1.msra.mxu0 0.0
    %1573 = vmatprep.subr.mxu0 0.0
    %1574 = vmatpush1.msra.mxu0 0.0
    %1575 = vmatprep.subr.mxu0 0.0
    %1576 = vmatpush1.msra.mxu0 0.0
    %1577 = vmatprep.subr.mxu0 0.0
    %1578 = vmatpush1.msra.mxu0 0.0
    %1579 = vmatprep.subr.mxu0 0.0
    %1580 = vmatpush1.msra.mxu0 0.0
    %1581 = vmatprep.subr.mxu0 0.0
    %1582 = vmatpush1.msra.mxu0 0.0
    %1583 = vmatprep.subr.mxu0 0.0
    %1584 = vmatpush1.msra.mxu0 0.0
    %1585 = vmatprep.subr.mxu0 0.0
    %1586 = vmatpush1.msra.mxu0 0.0
    %1587 = vmatprep.subr.mxu0 0.0
    %1588 = vmatpush1.msra.mxu0 0.0
    %1589 = vmatprep.subr.mxu0 0.0
    %1590 = vmatpush1.msra.mxu0 0.0
    %1591 = vmatprep.subr.mxu0 0.0
    %1592 = vmatpush1.msra.mxu0 0.0
    %1593 = vmatprep.subr.mxu0 0.0
    %1594 = vmatpush1.msra.mxu0 0.0
    %1595 = vmatprep.subr.mxu0 0.0
    %1596 = vmatpush1.msra.mxu0 0.0
    %1597 = vmatprep.subr.mxu0 0.0
    %1598 = vmatpush1.msra.mxu0 0.0
    %1599 = vmatprep.subr.mxu0 0.0
    %1600 = vmatpush1.msra.mxu0 0.0
    %1601 = vmatprep.subr.mxu0 0.0
    %1602 = vmatpush1.msra.mxu0 0.0
    %1603 = vmatprep.mubr.f32.mxu0 0.0
    %1604 = vmatmul.mubr.f32.gmra.mrb[0].mxu0 %v1534
    %v1605 = vpop.f32.mrb[0].mxu0
    %v1606 = vadd.f32 0.0, %v1605
    %v1607 = vpop.f32.mrb[0].mxu0
    %1608 = vmatprep.mubr.f32.mxu0 0.0
    %1609 = vmatmul.mubr.f32.gmra.mrb[0].mxu0 %v1537
    %v1610 = vpop.f32.mrb[0].mxu0
    %v1611 = vadd.f32 0.0, %v1610
    %v1612 = vpop.f32.mrb[0].mxu0
    %1613 = vdwg.mxu0
    %v1615 = vsel %vm214, %v1150, 0
    %v1618 = vsel %vm214, %v1226, 0
    %1620 = vmatprep.subr.mxu0 0.0
    %1621 = vmatpush1.msra.mxu0 %v194
    %1622 = vmatprep.subr.mxu0 0.0
    %1623 = vmatpush1.msra.mxu0 0.0
    %1624 = vmatprep.subr.mxu0 0.0
    %1625 = vmatpush1.msra.mxu0 0.0
    %1626 = vmatprep.subr.mxu0 0.0
    %1627 = vmatpush1.msra.mxu0 0.0
    %1628 = vmatprep.subr.mxu0 0.0
    %1629 = vmatpush1.msra.mxu0 0.0
    %1630 = vmatprep.subr.mxu0 0.0
    %1631 = vmatpush1.msra.mxu0 0.0
    %1632 = vmatprep.subr.mxu0 0.0
    %1633 = vmatpush1.msra.mxu0 0.0
    %1634 = vmatprep.subr.mxu0 0.0
    %1635 = vmatpush1.msra.mxu0 0.0
    %1636 = vmatprep.subr.mxu0 0.0
    %1637 = vmatpush1.msra.mxu0 0.0
    %1638 = vmatprep.subr.mxu0 0.0
    %1639 = vmatpush1.msra.mxu0 0.0
    %1640 = vmatprep.subr.mxu0 0.0
    %1641 = vmatpush1.msra.mxu0 0.0
    %1642 = vmatprep.subr.mxu0 0.0
    %1643 = vmatpush1.msra.mxu0 0.0
    %1644 = vmatprep.subr.mxu0 0.0
    %1645 = vmatpush1.msra.mxu0 0.0
    %1646 = vmatprep.subr.mxu0 0.0
    %1647 = vmatpush1.msra.mxu0 0.0
    %1648 = vmatprep.subr.mxu0 0.0
    %1649 = vmatpush1.msra.mxu0 0.0
    %1650 = vmatprep.subr.mxu0 0.0
    %1651 = vmatpush1.msra.mxu0 0.0
    %1652 = vmatprep.subr.mxu0 0.0
    %1653 = vmatpush1.msra.mxu0 0.0
    %1654 = vmatprep.subr.mxu0 0.0
    %1655 = vmatpush1.msra.mxu0 0.0
    %1656 = vmatprep.subr.mxu0 0.0
    %1657 = vmatpush1.msra.mxu0 0.0
    %1658 = vmatprep.subr.mxu0 0.0
    %1659 = vmatpush1.msra.mxu0 0.0
    %1660 = vmatprep.subr.mxu0 0.0
    %1661 = vmatpush1.msra.mxu0 0.0
    %1662 = vmatprep.subr.mxu0 0.0
    %1663 = vmatpush1.msra.mxu0 0.0
    %1664 = vmatprep.subr.mxu0 0.0
    %1665 = vmatpush1.msra.mxu0 0.0
    %1666 = vmatprep.subr.mxu0 0.0
    %1667 = vmatpush1.msra.mxu0 0.0
    %1668 = vmatprep.subr.mxu0 0.0
    %1669 = vmatpush1.msra.mxu0 0.0
    %1670 = vmatprep.subr.mxu0 0.0
    %1671 = vmatpush1.msra.mxu0 0.0
    %1672 = vmatprep.subr.mxu0 0.0
    %1673 = vmatpush1.msra.mxu0 0.0
    %1674 = vmatprep.subr.mxu0 0.0
    %1675 = vmatpush1.msra.mxu0 0.0
    %1676 = vmatprep.subr.mxu0 0.0
    %1677 = vmatpush1.msra.mxu0 0.0
    %1678 = vmatprep.subr.mxu0 0.0
    %1679 = vmatpush1.msra.mxu0 0.0
    %1680 = vmatprep.subr.mxu0 0.0
    %1681 = vmatpush1.msra.mxu0 0.0
    %1682 = vmatprep.subr.mxu0 0.0
    %1683 = vmatpush1.msra.mxu0 0.0
    %1684 = vmatprep.mubr.f32.mxu0 0.0
    %1685 = vmatmul.mubr.f32.gmra.mrb[0].mxu0 %v1615
    %v1686 = vpop.f32.mrb[0].mxu0
    %v1687 = vadd.f32 0.0, %v1686
    %v1688 = vpop.f32.mrb[0].mxu0
    %1689 = vmatprep.mubr.f32.mxu0 0.0
    %1690 = vmatmul.mubr.f32.gmra.mrb[0].mxu0 %v1618
    %v1691 = vpop.f32.mrb[0].mxu0
    %v1692 = vadd.f32 0.0, %v1691
    %v1693 = vpop.f32.mrb[0].mxu0
    %1694 = vdwg.mxu0
    %v1696 = vsel %vm214, %v1302, 0
    %v1699 = vsel %vm214, %v1378, 0
    %1701 = vmatprep.subr.mxu0 0.0
    %1702 = vmatpush1.msra.mxu0 %v195
    %1703 = vmatprep.subr.mxu0 0.0
    %1704 = vmatpush1.msra.mxu0 0.0
    %1705 = vmatprep.subr.mxu0 0.0
    %1706 = vmatpush1.msra.mxu0 0.0
    %1707 = vmatprep.subr.mxu0 0.0
    %1708 = vmatpush1.msra.mxu0 0.0
    %1709 = vmatprep.subr.mxu0 0.0
    %1710 = vmatpush1.msra.mxu0 0.0
    %1711 = vmatprep.subr.mxu0 0.0
    %1712 = vmatpush1.msra.mxu0 0.0
    %1713 = vmatprep.subr.mxu0 0.0
    %1714 = vmatpush1.msra.mxu0 0.0
    %1715 = vmatprep.subr.mxu0 0.0
    %1716 = vmatpush1.msra.mxu0 0.0
    %1717 = vmatprep.subr.mxu0 0.0
    %1718 = vmatpush1.msra.mxu0 0.0
    %1719 = vmatprep.subr.mxu0 0.0
    %1720 = vmatpush1.msra.mxu0 0.0
    %1721 = vmatprep.subr.mxu0 0.0
    %1722 = vmatpush1.msra.mxu0 0.0
    %1723 = vmatprep.subr.mxu0 0.0
    %1724 = vmatpush1.msra.mxu0 0.0
    %1725 = vmatprep.subr.mxu0 0.0
    %1726 = vmatpush1.msra.mxu0 0.0
    %1727 = vmatprep.subr.mxu0 0.0
    %1728 = vmatpush1.msra.mxu0 0.0
    %1729 = vmatprep.subr.mxu0 0.0
    %1730 = vmatpush1.msra.mxu0 0.0
    %1731 = vmatprep.subr.mxu0 0.0
    %1732 = vmatpush1.msra.mxu0 0.0
    %1733 = vmatprep.subr.mxu0 0.0
    %1734 = vmatpush1.msra.mxu0 0.0
    %1735 = vmatprep.subr.mxu0 0.0
    %1736 = vmatpush1.msra.mxu0 0.0
    %1737 = vmatprep.subr.mxu0 0.0
    %1738 = vmatpush1.msra.mxu0 0.0
    %1739 = vmatprep.subr.mxu0 0.0
    %1740 = vmatpush1.msra.mxu0 0.0
    %1741 = vmatprep.subr.mxu0 0.0
    %1742 = vmatpush1.msra.mxu0 0.0
    %1743 = vmatprep.subr.mxu0 0.0
    %1744 = vmatpush1.msra.mxu0 0.0
    %1745 = vmatprep.subr.mxu0 0.0
    %1746 = vmatpush1.msra.mxu0 0.0
    %1747 = vmatprep.subr.mxu0 0.0
    %1748 = vmatpush1.msra.mxu0 0.0
    %1749 = vmatprep.subr.mxu0 0.0
    %1750 = vmatpush1.msra.mxu0 0.0
    %1751 = vmatprep.subr.mxu0 0.0
    %1752 = vmatpush1.msra.mxu0 0.0
    %1753 = vmatprep.subr.mxu0 0.0
    %1754 = vmatpush1.msra.mxu0 0.0
    %1755 = vmatprep.subr.mxu0 0.0
    %1756 = vmatpush1.msra.mxu0 0.0
    %1757 = vmatprep.subr.mxu0 0.0
    %1758 = vmatpush1.msra.mxu0 0.0
    %1759 = vmatprep.subr.mxu0 0.0
    %1760 = vmatpush1.msra.mxu0 0.0
    %1761 = vmatprep.subr.mxu0 0.0
    %1762 = vmatpush1.msra.mxu0 0.0
    %1763 = vmatprep.subr.mxu0 0.0
    %1764 = vmatpush1.msra.mxu0 0.0
    %1765 = vmatprep.mubr.f32.mxu0 0.0
    %1766 = vmatmul.mubr.f32.gmra.mrb[0].mxu0 %v1696
    %v1767 = vpop.f32.mrb[0].mxu0
    %v1768 = vadd.f32 0.0, %v1767
    %v1769 = vpop.f32.mrb[0].mxu0
    %1770 = vmatprep.mubr.f32.mxu0 0.0
    %1771 = vmatmul.mubr.f32.gmra.mrb[0].mxu0 %v1699
    %v1772 = vpop.f32.mrb[0].mxu0
    %v1773 = vadd.f32 0.0, %v1772
    %v1774 = vpop.f32.mrb[0].mxu0
    %1775 = vdwg.mxu0
    %v1777 = vsel %vm214, %v1454, 0
    %v1780 = vsel %vm214, %v1530, 0
    %1782 = vmatprep.subr.mxu0 0.0
    %1783 = vmatpush1.msra.mxu0 %v196
    %1784 = vmatprep.subr.mxu0 0.0
    %1785 = vmatpush1.msra.mxu0 0.0
    %1786 = vmatprep.subr.mxu0 0.0
    %1787 = vmatpush1.msra.mxu0 0.0
    %1788 = vmatprep.subr.mxu0 0.0
    %1789 = vmatpush1.msra.mxu0 0.0
    %1790 = vmatprep.subr.mxu0 0.0
    %1791 = vmatpush1.msra.mxu0 0.0
    %1792 = vmatprep.subr.mxu0 0.0
    %1793 = vmatpush1.msra.mxu0 0.0
    %1794 = vmatprep.subr.mxu0 0.0
    %1795 = vmatpush1.msra.mxu0 0.0
    %1796 = vmatprep.subr.mxu0 0.0
    %1797 = vmatpush1.msra.mxu0 0.0
    %1798 = vmatprep.subr.mxu0 0.0
    %1799 = vmatpush1.msra.mxu0 0.0
    %1800 = vmatprep.subr.mxu0 0.0
    %1801 = vmatpush1.msra.mxu0 0.0
    %1802 = vmatprep.subr.mxu0 0.0
    %1803 = vmatpush1.msra.mxu0 0.0
    %1804 = vmatprep.subr.mxu0 0.0
    %1805 = vmatpush1.msra.mxu0 0.0
    %1806 = vmatprep.subr.mxu0 0.0
    %1807 = vmatpush1.msra.mxu0 0.0
    %1808 = vmatprep.subr.mxu0 0.0
    %1809 = vmatpush1.msra.mxu0 0.0
    %1810 = vmatprep.subr.mxu0 0.0
    %1811 = vmatpush1.msra.mxu0 0.0
    %1812 = vmatprep.subr.mxu0 0.0
    %1813 = vmatpush1.msra.mxu0 0.0
    %1814 = vmatprep.subr.mxu0 0.0
    %1815 = vmatpush1.msra.mxu0 0.0
    %1816 = vmatprep.subr.mxu0 0.0
    %1817 = vmatpush1.msra.mxu0 0.0
    %1818 = vmatprep.subr.mxu0 0.0
    %1819 = vmatpush1.msra.mxu0 0.0
    %1820 = vmatprep.subr.mxu0 0.0
    %1821 = vmatpush1.msra.mxu0 0.0
    %1822 = vmatprep.subr.mxu0 0.0
    %1823 = vmatpush1.msra.mxu0 0.0
    %1824 = vmatprep.subr.mxu0 0.0
    %1825 = vmatpush1.msra.mxu0 0.0
    %1826 = vmatprep.subr.mxu0 0.0
    %1827 = vmatpush1.msra.mxu0 0.0
    %1828 = vmatprep.subr.mxu0 0.0
    %1829 = vmatpush1.msra.mxu0 0.0
    %1830 = vmatprep.subr.mxu0 0.0
    %1831 = vmatpush1.msra.mxu0 0.0
    %1832 = vmatprep.subr.mxu0 0.0
    %1833 = vmatpush1.msra.mxu0 0.0
    %1834 = vmatprep.subr.mxu0 0.0
    %1835 = vmatpush1.msra.mxu0 0.0
    %1836 = vmatprep.subr.mxu0 0.0
    %1837 = vmatpush1.msra.mxu0 0.0
    %1838 = vmatprep.subr.mxu0 0.0
    %1839 = vmatpush1.msra.mxu0 0.0
    %1840 = vmatprep.subr.mxu0 0.0
    %1841 = vmatpush1.msra.mxu0 0.0
    %1842 = vmatprep.subr.mxu0 0.0
    %1843 = vmatpush1.msra.mxu0 0.0
    %1844 = vmatprep.subr.mxu0 0.0
    %1845 = vmatpush1.msra.mxu0 0.0
    %1846 = vmatprep.mubr.f32.mxu0 0.0
    %1847 = vmatmul.mubr.f32.gmra.mrb[0].mxu0 %v1777
    %v1848 = vpop.f32.mrb[0].mxu0
    %v1849 = vadd.f32 0.0, %v1848
    %v1850 = vpop.f32.mrb[0].mxu0
    %1851 = vmatprep.mubr.f32.mxu0 0.0
    %1852 = vmatmul.mubr.f32.gmra.mrb[0].mxu0 %v1780
    %v1853 = vpop.f32.mrb[0].mxu0
    %v1854 = vadd.f32 0.0, %v1853
    %v1855 = vpop.f32.mrb[0].mxu0
    %1856 = vdwg.mxu0
    %v1857 = vsel %vm111, %v1606, 0.0
    %v1858 = vsel %vm111, %v1687, 0.0
    %v1859 = vadd.f32 %v1857, %v1858
    %v1860 = vsel %vm111, %v1768, 0.0
    %v1861 = vadd.f32 %v1859, %v1860
    %v1862 = vsel %vm111, %v1849, 0.0
    %v1863 = vadd.f32 %v1861, %v1862
    %v1864 = vsel %vm111, %v1611, 0.0
    %v1865 = vsel %vm111, %v1692, 0.0
    %v1866 = vadd.f32 %v1864, %v1865
    %v1867 = vsel %vm111, %v1773, 0.0
    %v1868 = vadd.f32 %v1866, %v1867
    %v1869 = vsel %vm111, %v1854, 0.0
    %v1870 = vadd.f32 %v1868, %v1869
    %v1871 = vlaneseq
    %v1872 = vshrl.u32 %v1871, 7
    %v1873 = vsub.s32 0, %v1872
    %v1874 = vrot.slane %v197, %v1873
    %v1875 = vadd.f32 %v1863, %v1874
    %v1876 = vadd.f32 %v1870, %v1874
    %v1877 = vadd.f32 %v92, %v1875
    %v1878 = vadd.f32 %v93, %v1876
    %v1879 = vld [vmem:[%s5 + $0x6] sm:$0x1]
    %v1880 = vld [vmem:[%s5 + $0x7] sm:$0x1]
    %v1881 = vsel %vm111, %v1877, 0.0
    %1882 = vadd.xlane.f32.xlu0 %v1881
    %v1883 = vpop.xlane.xlu0 %1882
    %v1884 = vsel %vm111, %v1878, 0.0
    %1885 = vadd.xlane.f32.xlu0 %v1884
    %v1886 = vpop.xlane.xlu0 %1885
    %v1887 = vrcp.pop 32.0
    %v1888 = vmul.f32 %v1883, %v1887
    %v1889 = vmul.f32 %v1886, %v1887
    %v1890 = vsub.f32 %v1877, %v1888
    %v1891 = vsub.f32 %v1878, %v1889
    %v1892 = vmul.f32 %v1890, %v1890
    %v1893 = vmul.f32 %v1891, %v1891
    %v1894 = vsel %vm111, %v1892, 0.0
    %1895 = vadd.xlane.f32.xlu0 %v1894
    %v1896 = vpop.xlane.xlu0 %1895
    %v1897 = vsel %vm111, %v1893, 0.0
    %1898 = vadd.xlane.f32.xlu0 %v1897
    %v1899 = vpop.xlane.xlu0 %1898
    %v1900 = vmul.f32 %v1896, %v1887
    %v1901 = vmul.f32 %v1899, %v1887
    %v1902 = vlaneseq
    %v1903 = vshrl.u32 %v1902, 7
    %v1904 = vsub.s32 0, %v1903
    %v1905 = vrot.slane %v1879, %v1904
    %v1906 = vmul.f32 %v1905, %v1890
    %v1907 = vmul.f32 %v1905, %v1891
    %v1908 = vadd.f32 %v1900, 1e-06
    %v1909 = vadd.f32 %v1901, 1e-06
    %v1910 = vrsqrt.pop %v1908
    %v1911 = vrsqrt.pop %v1909
    %v1912 = vmul.f32 %v1906, %v1910
    %v1913 = vmul.f32 %v1907, %v1911
    %v1914 = vlaneseq
    %v1915 = vshrl.u32 %v1914, 7
    %v1916 = vsub.s32 0, %v1915
    %v1917 = vrot.slane %v1880, %v1916
    %v1918 = vadd.f32 %v1912, %v1917
    %v1919 = vadd.f32 %v1913, %v1917
    %v1920 = vld [vmem:[#allocation10 + $0x40] sm:$0xff]
    %v1921 = vld [vmem:[#allocation10 + $0x48] sm:$0xff]
    %v1922 = vld [vmem:[#allocation10 + $0x50] sm:$0xff]
    %v1923 = vld [vmem:[#allocation10 + $0x58] sm:$0xff]
    %v1924 = vld [vmem:[%s5 + $0x2] sm:$0x1]
    %v1925 = vlaneseq
    %v1926 = vshrl.u32 %v1925, 7
    %v1927 = vsub.s32 0, %v1926
    %v1928 = vrot.slane %v1924, %v1927
    %v1930 = vsel %vm111, %v1918, 0
    %v1933 = vsel %vm111, %v1919, 0
    %1935 = vmatprep.subr.mxu0 0.0
    %1936 = vmatpush1.msra.mxu0 %v1920
    %1937 = vmatprep.subr.mxu0 0.0
    %1938 = vmatpush1.msra.mxu0 %v1921
    %1939 = vmatprep.subr.mxu0 0.0
    %1940 = vmatpush1.msra.mxu0 %v1922
    %1941 = vmatprep.subr.mxu0 0.0
    %1942 = vmatpush1.msra.mxu0 %v1923
    %1943 = vmatprep.subr.mxu0 0.0
    %1944 = vmatpush1.msra.mxu0 0.0
    %1945 = vmatprep.subr.mxu0 0.0
    %1946 = vmatpush1.msra.mxu0 0.0
    %1947 = vmatprep.subr.mxu0 0.0
    %1948 = vmatpush1.msra.mxu0 0.0
    %1949 = vmatprep.subr.mxu0 0.0
    %1950 = vmatpush1.msra.mxu0 0.0
    %1951 = vmatprep.subr.mxu0 0.0
    %1952 = vmatpush1.msra.mxu0 0.0
    %1953 = vmatprep.subr.mxu0 0.0
    %1954 = vmatpush1.msra.mxu0 0.0
    %1955 = vmatprep.subr.mxu0 0.0
    %1956 = vmatpush1.msra.mxu0 0.0
    %1957 = vmatprep.subr.mxu0 0.0
    %1958 = vmatpush1.msra.mxu0 0.0
    %1959 = vmatprep.subr.mxu0 0.0
    %1960 = vmatpush1.msra.mxu0 0.0
    %1961 = vmatprep.subr.mxu0 0.0
    %1962 = vmatpush1.msra.mxu0 0.0
    %1963 = vmatprep.subr.mxu0 0.0
    %1964 = vmatpush1.msra.mxu0 0.0
    %1965 = vmatprep.subr.mxu0 0.0
    %1966 = vmatpush1.msra.mxu0 0.0
    %1967 = vmatprep.subr.mxu0 0.0
    %1968 = vmatpush1.msra.mxu0 0.0
    %1969 = vmatprep.subr.mxu0 0.0
    %1970 = vmatpush1.msra.mxu0 0.0
    %1971 = vmatprep.subr.mxu0 0.0
    %1972 = vmatpush1.msra.mxu0 0.0
    %1973 = vmatprep.subr.mxu0 0.0
    %1974 = vmatpush1.msra.mxu0 0.0
    %1975 = vmatprep.subr.mxu0 0.0
    %1976 = vmatpush1.msra.mxu0 0.0
    %1977 = vmatprep.subr.mxu0 0.0
    %1978 = vmatpush1.msra.mxu0 0.0
    %1979 = vmatprep.subr.mxu0 0.0
    %1980 = vmatpush1.msra.mxu0 0.0
    %1981 = vmatprep.subr.mxu0 0.0
    %1982 = vmatpush1.msra.mxu0 0.0
    %1983 = vmatprep.subr.mxu0 0.0
    %1984 = vmatpush1.msra.mxu0 0.0
    %1985 = vmatprep.subr.mxu0 0.0
    %1986 = vmatpush1.msra.mxu0 0.0
    %1987 = vmatprep.subr.mxu0 0.0
    %1988 = vmatpush1.msra.mxu0 0.0
    %1989 = vmatprep.subr.mxu0 0.0
    %1990 = vmatpush1.msra.mxu0 0.0
    %1991 = vmatprep.subr.mxu0 0.0
    %1992 = vmatpush1.msra.mxu0 0.0
    %1993 = vmatprep.subr.mxu0 0.0
    %1994 = vmatpush1.msra.mxu0 0.0
    %1995 = vmatprep.subr.mxu0 0.0
    %1996 = vmatpush1.msra.mxu0 0.0
    %1997 = vmatprep.subr.mxu0 0.0
    %1998 = vmatpush1.msra.mxu0 0.0
    %1999 = vmatprep.mubr.f32.mxu0 0.0
    %2000 = vmatmul.mubr.f32.gmra.mrb[0].mxu0 %v1930
    %v2001 = vpop.f32.mrb[0].mxu0
    %v2002 = vadd.f32 %v1928, %v2001
    %v2003 = vpop.f32.mrb[0].mxu0
    %2004 = vmatprep.mubr.f32.mxu0 0.0
    %2005 = vmatmul.mubr.f32.gmra.mrb[0].mxu0 %v1933
    %v2006 = vpop.f32.mrb[0].mxu0
    %v2007 = vadd.f32 %v1928, %v2006
    %v2008 = vpop.f32.mrb[0].mxu0
    %2009 = vdwg.mxu0
    %2014 = vrot.lane.b32.xlu0 %v1920, 96
    %v2015 = vpop.permute.xlu0 %2014
    %2016 = vrot.lane.b32.xlu0 %v1921, 96
    %v2017 = vpop.permute.xlu0 %2016
    %2018 = vrot.lane.b32.xlu0 %v1922, 96
    %v2019 = vpop.permute.xlu0 %2018
    %2020 = vrot.lane.b32.xlu0 %v1923, 96
    %v2021 = vpop.permute.xlu0 %2020
    %2027 = vrot.lane.b32.xlu0 %v1928, 96
    %v2028 = vpop.permute.xlu0 %2027
    %v2031 = vsel %vm111, %v94, 0
    %v2034 = vsel %vm111, %v95, 0
    %v2037 = vsel %vm111, %v96, 0
    %v2040 = vsel %vm111, %v97, 0
    %2042 = vmatprep.subr.mxu0 0.0
    %2043 = vmatpush1.msra.mxu0 %v2015
    %2044 = vmatprep.subr.mxu0 0.0
    %2045 = vmatpush1.msra.mxu0 %v2017
    %2046 = vmatprep.subr.mxu0 0.0
    %2047 = vmatpush1.msra.mxu0 %v2019
    %2048 = vmatprep.subr.mxu0 0.0
    %2049 = vmatpush1.msra.mxu0 %v2021
    %2050 = vmatprep.subr.mxu0 0.0
    %2051 = vmatpush1.msra.mxu0 0.0
    %2052 = vmatprep.subr.mxu0 0.0
    %2053 = vmatpush1.msra.mxu0 0.0
    %2054 = vmatprep.subr.mxu0 0.0
    %2055 = vmatpush1.msra.mxu0 0.0
    %2056 = vmatprep.subr.mxu0 0.0
    %2057 = vmatpush1.msra.mxu0 0.0
    %2058 = vmatprep.subr.mxu0 0.0
    %2059 = vmatpush1.msra.mxu0 0.0
    %2060 = vmatprep.subr.mxu0 0.0
    %2061 = vmatpush1.msra.mxu0 0.0
    %2062 = vmatprep.subr.mxu0 0.0
    %2063 = vmatpush1.msra.mxu0 0.0
    %2064 = vmatprep.subr.mxu0 0.0
    %2065 = vmatpush1.msra.mxu0 0.0
    %2066 = vmatprep.subr.mxu0 0.0
    %2067 = vmatpush1.msra.mxu0 0.0
    %2068 = vmatprep.subr.mxu0 0.0
    %2069 = vmatpush1.msra.mxu0 0.0
    %2070 = vmatprep.subr.mxu0 0.0
    %2071 = vmatpush1.msra.mxu0 0.0
    %2072 = vmatprep.subr.mxu0 0.0
    %2073 = vmatpush1.msra.mxu0 0.0
    %2074 = vmatprep.subr.mxu0 0.0
    %2075 = vmatpush1.msra.mxu0 0.0
    %2076 = vmatprep.subr.mxu0 0.0
    %2077 = vmatpush1.msra.mxu0 0.0
    %2078 = vmatprep.subr.mxu0 0.0
    %2079 = vmatpush1.msra.mxu0 0.0
    %2080 = vmatprep.subr.mxu0 0.0
    %2081 = vmatpush1.msra.mxu0 0.0
    %2082 = vmatprep.subr.mxu0 0.0
    %2083 = vmatpush1.msra.mxu0 0.0
    %2084 = vmatprep.subr.mxu0 0.0
    %2085 = vmatpush1.msra.mxu0 0.0
    %2086 = vmatprep.subr.mxu0 0.0
    %2087 = vmatpush1.msra.mxu0 0.0
    %2088 = vmatprep.subr.mxu0 0.0
    %2089 = vmatpush1.msra.mxu0 0.0
    %2090 = vmatprep.subr.mxu0 0.0
    %2091 = vmatpush1.msra.mxu0 0.0
    %2092 = vmatprep.subr.mxu0 0.0
    %2093 = vmatpush1.msra.mxu0 0.0
    %2094 = vmatprep.subr.mxu0 0.0
    %2095 = vmatpush1.msra.mxu0 0.0
    %2096 = vmatprep.subr.mxu0 0.0
    %2097 = vmatpush1.msra.mxu0 0.0
    %2098 = vmatprep.subr.mxu0 0.0
    %2099 = vmatpush1.msra.mxu0 0.0
    %2100 = vmatprep.subr.mxu0 0.0
    %2101 = vmatpush1.msra.mxu0 0.0
    %2102 = vmatprep.subr.mxu0 0.0
    %2103 = vmatpush1.msra.mxu0 0.0
    %2104 = vmatprep.subr.mxu0 0.0
    %2105 = vmatpush1.msra.mxu0 0.0
    %2106 = vmatprep.mubr.f32.mxu0 0.0
    %2107 = vmatmul.mubr.f32.gmra.mrb[0].mxu0 %v2031
    %v2108 = vpop.f32.mrb[0].mxu0
    %v2109 = vadd.f32 %v2028, %v2108
    %v2110 = vpop.f32.mrb[0].mxu0
    %2111 = vmatprep.mubr.f32.mxu0 0.0
    %2112 = vmatmul.mubr.f32.gmra.mrb[0].mxu0 %v2034
    %v2113 = vpop.f32.mrb[0].mxu0
    %v2114 = vadd.f32 %v2028, %v2113
    %v2115 = vpop.f32.mrb[0].mxu0
    %2116 = vmatprep.mubr.f32.mxu0 0.0
    %2117 = vmatmul.mubr.f32.gmra.mrb[0].mxu0 %v2037
    %v2118 = vpop.f32.mrb[0].mxu0
    %v2119 = vadd.f32 %v2028, %v2118
    %v2120 = vpop.f32.mrb[0].mxu0
    %2121 = vmatprep.mubr.f32.mxu0 0.0
    %2122 = vmatmul.mubr.f32.gmra.mrb[0].mxu0 %v2040
    %v2123 = vpop.f32.mrb[0].mxu0
    %v2124 = vadd.f32 %v2028, %v2123
    %v2125 = vpop.f32.mrb[0].mxu0
    %2126 = vdwg.mxu0
    %v2127 = vld [vmem:[#allocation10 + $0x60] sm:$0xff]
    %v2128 = vld [vmem:[#allocation10 + $0x68] sm:$0xff]
    %v2129 = vld [vmem:[#allocation10 + $0x70] sm:$0xff]
    %v2130 = vld [vmem:[#allocation10 + $0x78] sm:$0xff]
    %v2131 = vld [vmem:[%s5 + $0x3] sm:$0x1]
    %2134 = vrot.lane.b32.xlu0 %v2002, 120
    %v2135 = vpop.permute.xlu0 %2134
    %2136 = vrot.lane.b32.xlu0 %v2007, 120
    %v2137 = vpop.permute.xlu0 %2136
    %2138 = vrot.lane.b32.xlu0 %v2002, 112
    %v2139 = vpop.permute.xlu0 %2138
    %2140 = vrot.lane.b32.xlu0 %v2007, 112
    %v2141 = vpop.permute.xlu0 %2140
    %2142 = vrot.lane.b32.xlu0 %v2002, 104
    %v2143 = vpop.permute.xlu0 %2142
    %2144 = vrot.lane.b32.xlu0 %v2007, 104
    %v2145 = vpop.permute.xlu0 %2144
    %2150 = vrot.lane.b32.xlu0 %v2109, 120
    %v2151 = vpop.permute.xlu0 %2150
    %2152 = vrot.lane.b32.xlu0 %v2114, 120
    %v2153 = vpop.permute.xlu0 %2152
    %2154 = vrot.lane.b32.xlu0 %v2119, 120
    %v2155 = vpop.permute.xlu0 %2154
    %2156 = vrot.lane.b32.xlu0 %v2124, 120
    %v2157 = vpop.permute.xlu0 %2156
    %2158 = vrot.lane.b32.xlu0 %v2109, 112
    %v2159 = vpop.permute.xlu0 %2158
    %2160 = vrot.lane.b32.xlu0 %v2114, 112
    %v2161 = vpop.permute.xlu0 %2160
    %2162 = vrot.lane.b32.xlu0 %v2119, 112
    %v2163 = vpop.permute.xlu0 %2162
    %2164 = vrot.lane.b32.xlu0 %v2124, 112
    %v2165 = vpop.permute.xlu0 %2164
    %2166 = vrot.lane.b32.xlu0 %v2109, 104
    %v2167 = vpop.permute.xlu0 %2166
    %2168 = vrot.lane.b32.xlu0 %v2114, 104
    %v2169 = vpop.permute.xlu0 %2168
    %2170 = vrot.lane.b32.xlu0 %v2119, 104
    %v2171 = vpop.permute.xlu0 %2170
    %2172 = vrot.lane.b32.xlu0 %v2124, 104
    %v2173 = vpop.permute.xlu0 %2172
    %v2174 = vsel %vm214, %v2002, 0
    %v2176 = vsel %vm214, %v2109, 0
    %v2178 = vsel %vm214, %v2114, 0
    %2180 = vmatprep.subr.mxu0 0.0
    %2181 = vmatpush1.xpose.msra.mxu0 %v2176
    %2182 = vmatprep.subr.mxu0 0.0
    %2183 = vmatpush1.xpose.msra.mxu0 %v2178
    %2184 = vmatprep.subr.mxu0 0.0
    %2185 = vmatpush1.xpose.msra.mxu0 0.0
    %2186 = vmatprep.subr.mxu0 0.0
    %2187 = vmatpush1.xpose.msra.mxu0 0.0
    %2188 = vmatprep.subr.mxu0 0.0
    %2189 = vmatpush1.xpose.msra.mxu0 0.0
    %2190 = vmatprep.subr.mxu0 0.0
    %2191 = vmatpush1.xpose.msra.mxu0 0.0
    %2192 = vmatprep.subr.mxu0 0.0
    %2193 = vmatpush1.xpose.msra.mxu0 0.0
    %2194 = vmatprep.subr.mxu0 0.0
    %2195 = vmatpush1.xpose.msra.mxu0 0.0
    %2196 = vmatprep.subr.mxu0 0.0
    %2197 = vmatpush1.xpose.msra.mxu0 0.0
    %2198 = vmatprep.subr.mxu0 0.0
    %2199 = vmatpush1.xpose.msra.mxu0 0.0
    %2200 = vmatprep.subr.mxu0 0.0
    %2201 = vmatpush1.xpose.msra.mxu0 0.0
    %2202 = vmatprep.subr.mxu0 0.0
    %2203 = vmatpush1.xpose.msra.mxu0 0.0
    %2204 = vmatprep.subr.mxu0 0.0
    %2205 = vmatpush1.xpose.msra.mxu0 0.0
    %2206 = vmatprep.subr.mxu0 0.0
    %2207 = vmatpush1.xpose.msra.mxu0 0.0
    %2208 = vmatprep.subr.mxu0 0.0
    %2209 = vmatpush1.xpose.msra.mxu0 0.0
    %2210 = vmatprep.subr.mxu0 0.0
    %2211 = vmatpush1.xpose.msra.mxu0 0.0
    %2212 = vmatprep.subr.mxu0 0.0
    %2213 = vmatpush1.xpose.msra.mxu0 0.0
    %2214 = vmatprep.subr.mxu0 0.0
    %2215 = vmatpush1.xpose.msra.mxu0 0.0
    %2216 = vmatprep.subr.mxu0 0.0
    %2217 = vmatpush1.xpose.msra.mxu0 0.0
    %2218 = vmatprep.subr.mxu0 0.0
    %2219 = vmatpush1.xpose.msra.mxu0 0.0
    %2220 = vmatprep.subr.mxu0 0.0
    %2221 = vmatpush1.xpose.msra.mxu0 0.0
    %2222 = vmatprep.subr.mxu0 0.0
    %2223 = vmatpush1.xpose.msra.mxu0 0.0
    %2224 = vmatprep.subr.mxu0 0.0
    %2225 = vmatpush1.xpose.msra.mxu0 0.0
    %2226 = vmatprep.subr.mxu0 0.0
    %2227 = vmatpush1.xpose.msra.mxu0 0.0
    %2228 = vmatprep.subr.mxu0 0.0
    %2229 = vmatpush1.xpose.msra.mxu0 0.0
    %2230 = vmatprep.subr.mxu0 0.0
    %2231 = vmatpush1.xpose.msra.mxu0 0.0
    %2232 = vmatprep.subr.mxu0 0.0
    %2233 = vmatpush1.xpose.msra.mxu0 0.0
    %2234 = vmatprep.subr.mxu0 0.0
    %2235 = vmatpush1.xpose.msra.mxu0 0.0
    %2236 = vmatprep.subr.mxu0 0.0
    %2237 = vmatpush1.xpose.msra.mxu0 0.0
    %2238 = vmatprep.subr.mxu0 0.0
    %2239 = vmatpush1.xpose.msra.mxu0 0.0
    %2240 = vmatprep.subr.mxu0 0.0
    %2241 = vmatpush1.xpose.msra.mxu0 0.0
    %2242 = vmatprep.subr.mxu0 0.0
    %2243 = vmatpush1.xpose.msra.mxu0 0.0
    %2244 = vmatprep.mubr.f32.mxu0 0.0
    %2245 = vmatmul.mubr.f32.gmra.mrb[0].mxu0 %v2174
    %v2246 = vpop.f32.mrb[0].mxu0
    %v2247 = vadd.f32 0.0, %v2246
    %v2248 = vpop.f32.mrb[0].mxu0
    %2249 = vdwg.mxu0
    %v2250 = vsel %vm214, %v2007, 0
    %v2252 = vsel %vm214, %v2119, 0
    %v2254 = vsel %vm214, %v2124, 0
    %2256 = vmatprep.subr.mxu0 0.0
    %2257 = vmatpush1.xpose.msra.mxu0 %v2252
    %2258 = vmatprep.subr.mxu0 0.0
    %2259 = vmatpush1.xpose.msra.mxu0 %v2254
    %2260 = vmatprep.subr.mxu0 0.0
    %2261 = vmatpush1.xpose.msra.mxu0 0.0
    %2262 = vmatprep.subr.mxu0 0.0
    %2263 = vmatpush1.xpose.msra.mxu0 0.0
    %2264 = vmatprep.subr.mxu0 0.0
    %2265 = vmatpush1.xpose.msra.mxu0 0.0
    %2266 = vmatprep.subr.mxu0 0.0
    %2267 = vmatpush1.xpose.msra.mxu0 0.0
    %2268 = vmatprep.subr.mxu0 0.0
    %2269 = vmatpush1.xpose.msra.mxu0 0.0
    %2270 = vmatprep.subr.mxu0 0.0
    %2271 = vmatpush1.xpose.msra.mxu0 0.0
    %2272 = vmatprep.subr.mxu0 0.0
    %2273 = vmatpush1.xpose.msra.mxu0 0.0
    %2274 = vmatprep.subr.mxu0 0.0
    %2275 = vmatpush1.xpose.msra.mxu0 0.0
    %2276 = vmatprep.subr.mxu0 0.0
    %2277 = vmatpush1.xpose.msra.mxu0 0.0
    %2278 = vmatprep.subr.mxu0 0.0
    %2279 = vmatpush1.xpose.msra.mxu0 0.0
    %2280 = vmatprep.subr.mxu0 0.0
    %2281 = vmatpush1.xpose.msra.mxu0 0.0
    %2282 = vmatprep.subr.mxu0 0.0
    %2283 = vmatpush1.xpose.msra.mxu0 0.0
    %2284 = vmatprep.subr.mxu0 0.0
    %2285 = vmatpush1.xpose.msra.mxu0 0.0
    %2286 = vmatprep.subr.mxu0 0.0
    %2287 = vmatpush1.xpose.msra.mxu0 0.0
    %2288 = vmatprep.subr.mxu0 0.0
    %2289 = vmatpush1.xpose.msra.mxu0 0.0
    %2290 = vmatprep.subr.mxu0 0.0
    %2291 = vmatpush1.xpose.msra.mxu0 0.0
    %2292 = vmatprep.subr.mxu0 0.0
    %2293 = vmatpush1.xpose.msra.mxu0 0.0
    %2294 = vmatprep.subr.mxu0 0.0
    %2295 = vmatpush1.xpose.msra.mxu0 0.0
    %2296 = vmatprep.subr.mxu0 0.0
    %2297 = vmatpush1.xpose.msra.mxu0 0.0
    %2298 = vmatprep.subr.mxu0 0.0
    %2299 = vmatpush1.xpose.msra.mxu0 0.0
    %2300 = vmatprep.subr.mxu0 0.0
    %2301 = vmatpush1.xpose.msra.mxu0 0.0
    %2302 = vmatprep.subr.mxu0 0.0
    %2303 = vmatpush1.xpose.msra.mxu0 0.0
    %2304 = vmatprep.subr.mxu0 0.0
    %2305 = vmatpush1.xpose.msra.mxu0 0.0
    %2306 = vmatprep.subr.mxu0 0.0
    %2307 = vmatpush1.xpose.msra.mxu0 0.0
    %2308 = vmatprep.subr.mxu0 0.0
    %2309 = vmatpush1.xpose.msra.mxu0 0.0
    %2310 = vmatprep.subr.mxu0 0.0
    %2311 = vmatpush1.xpose.msra.mxu0 0.0
    %2312 = vmatprep.subr.mxu0 0.0
    %2313 = vmatpush1.xpose.msra.mxu0 0.0
    %2314 = vmatprep.subr.mxu0 0.0
    %2315 = vmatpush1.xpose.msra.mxu0 0.0
    %2316 = vmatprep.subr.mxu0 0.0
    %2317 = vmatpush1.xpose.msra.mxu0 0.0
    %2318 = vmatprep.subr.mxu0 0.0
    %2319 = vmatpush1.xpose.msra.mxu0 0.0
    %2320 = vmatprep.mubr.f32.mxu0 0.0
    %2321 = vmatmul.mubr.f32.gmra.mrb[0].mxu0 %v2250
    %v2322 = vpop.f32.mrb[0].mxu0
    %v2323 = vadd.f32 0.0, %v2322
    %v2324 = vpop.f32.mrb[0].mxu0
    %2325 = vdwg.mxu0
    %v2326 = vsel %vm214, %v2135, 0
    %v2328 = vsel %vm214, %v2151, 0
    %v2330 = vsel %vm214, %v2153, 0
    %2332 = vmatprep.subr.mxu0 0.0
    %2333 = vmatpush1.xpose.msra.mxu0 %v2328
    %2334 = vmatprep.subr.mxu0 0.0
    %2335 = vmatpush1.xpose.msra.mxu0 %v2330
    %2336 = vmatprep.subr.mxu0 0.0
    %2337 = vmatpush1.xpose.msra.mxu0 0.0
    %2338 = vmatprep.subr.mxu0 0.0
    %2339 = vmatpush1.xpose.msra.mxu0 0.0
    %2340 = vmatprep.subr.mxu0 0.0
    %2341 = vmatpush1.xpose.msra.mxu0 0.0
    %2342 = vmatprep.subr.mxu0 0.0
    %2343 = vmatpush1.xpose.msra.mxu0 0.0
    %2344 = vmatprep.subr.mxu0 0.0
    %2345 = vmatpush1.xpose.msra.mxu0 0.0
    %2346 = vmatprep.subr.mxu0 0.0
    %2347 = vmatpush1.xpose.msra.mxu0 0.0
    %2348 = vmatprep.subr.mxu0 0.0
    %2349 = vmatpush1.xpose.msra.mxu0 0.0
    %2350 = vmatprep.subr.mxu0 0.0
    %2351 = vmatpush1.xpose.msra.mxu0 0.0
    %2352 = vmatprep.subr.mxu0 0.0
    %2353 = vmatpush1.xpose.msra.mxu0 0.0
    %2354 = vmatprep.subr.mxu0 0.0
    %2355 = vmatpush1.xpose.msra.mxu0 0.0
    %2356 = vmatprep.subr.mxu0 0.0
    %2357 = vmatpush1.xpose.msra.mxu0 0.0
    %2358 = vmatprep.subr.mxu0 0.0
    %2359 = vmatpush1.xpose.msra.mxu0 0.0
    %2360 = vmatprep.subr.mxu0 0.0
    %2361 = vmatpush1.xpose.msra.mxu0 0.0
    %2362 = vmatprep.subr.mxu0 0.0
    %2363 = vmatpush1.xpose.msra.mxu0 0.0
    %2364 = vmatprep.subr.mxu0 0.0
    %2365 = vmatpush1.xpose.msra.mxu0 0.0
    %2366 = vmatprep.subr.mxu0 0.0
    %2367 = vmatpush1.xpose.msra.mxu0 0.0
    %2368 = vmatprep.subr.mxu0 0.0
    %2369 = vmatpush1.xpose.msra.mxu0 0.0
    %2370 = vmatprep.subr.mxu0 0.0
    %2371 = vmatpush1.xpose.msra.mxu0 0.0
    %2372 = vmatprep.subr.mxu0 0.0
    %2373 = vmatpush1.xpose.msra.mxu0 0.0
    %2374 = vmatprep.subr.mxu0 0.0
    %2375 = vmatpush1.xpose.msra.mxu0 0.0
    %2376 = vmatprep.subr.mxu0 0.0
    %2377 = vmatpush1.xpose.msra.mxu0 0.0
    %2378 = vmatprep.subr.mxu0 0.0
    %2379 = vmatpush1.xpose.msra.mxu0 0.0
    %2380 = vmatprep.subr.mxu0 0.0
    %2381 = vmatpush1.xpose.msra.mxu0 0.0
    %2382 = vmatprep.subr.mxu0 0.0
    %2383 = vmatpush1.xpose.msra.mxu0 0.0
    %2384 = vmatprep.subr.mxu0 0.0
    %2385 = vmatpush1.xpose.msra.mxu0 0.0
    %2386 = vmatprep.subr.mxu0 0.0
    %2387 = vmatpush1.xpose.msra.mxu0 0.0
    %2388 = vmatprep.subr.mxu0 0.0
    %2389 = vmatpush1.xpose.msra.mxu0 0.0
    %2390 = vmatprep.subr.mxu0 0.0
    %2391 = vmatpush1.xpose.msra.mxu0 0.0
    %2392 = vmatprep.subr.mxu0 0.0
    %2393 = vmatpush1.xpose.msra.mxu0 0.0
    %2394 = vmatprep.subr.mxu0 0.0
    %2395 = vmatpush1.xpose.msra.mxu0 0.0
    %2396 = vmatprep.mubr.f32.mxu0 0.0
    %2397 = vmatmul.mubr.f32.gmra.mrb[0].mxu0 %v2326
    %v2398 = vpop.f32.mrb[0].mxu0
    %v2399 = vadd.f32 0.0, %v2398
    %v2400 = vpop.f32.mrb[0].mxu0
    %2401 = vdwg.mxu0
    %v2402 = vsel %vm214, %v2137, 0
    %v2404 = vsel %vm214, %v2155, 0
    %v2406 = vsel %vm214, %v2157, 0
    %2408 = vmatprep.subr.mxu0 0.0
    %2409 = vmatpush1.xpose.msra.mxu0 %v2404
    %2410 = vmatprep.subr.mxu0 0.0
    %2411 = vmatpush1.xpose.msra.mxu0 %v2406
    %2412 = vmatprep.subr.mxu0 0.0
    %2413 = vmatpush1.xpose.msra.mxu0 0.0
    %2414 = vmatprep.subr.mxu0 0.0
    %2415 = vmatpush1.xpose.msra.mxu0 0.0
    %2416 = vmatprep.subr.mxu0 0.0
    %2417 = vmatpush1.xpose.msra.mxu0 0.0
    %2418 = vmatprep.subr.mxu0 0.0
    %2419 = vmatpush1.xpose.msra.mxu0 0.0
    %2420 = vmatprep.subr.mxu0 0.0
    %2421 = vmatpush1.xpose.msra.mxu0 0.0
    %2422 = vmatprep.subr.mxu0 0.0
    %2423 = vmatpush1.xpose.msra.mxu0 0.0
    %2424 = vmatprep.subr.mxu0 0.0
    %2425 = vmatpush1.xpose.msra.mxu0 0.0
    %2426 = vmatprep.subr.mxu0 0.0
    %2427 = vmatpush1.xpose.msra.mxu0 0.0
    %2428 = vmatprep.subr.mxu0 0.0
    %2429 = vmatpush1.xpose.msra.mxu0 0.0
    %2430 = vmatprep.subr.mxu0 0.0
    %2431 = vmatpush1.xpose.msra.mxu0 0.0
    %2432 = vmatprep.subr.mxu0 0.0
    %2433 = vmatpush1.xpose.msra.mxu0 0.0
    %2434 = vmatprep.subr.mxu0 0.0
    %2435 = vmatpush1.xpose.msra.mxu0 0.0
    %2436 = vmatprep.subr.mxu0 0.0
    %2437 = vmatpush1.xpose.msra.mxu0 0.0
    %2438 = vmatprep.subr.mxu0 0.0
    %2439 = vmatpush1.xpose.msra.mxu0 0.0
    %2440 = vmatprep.subr.mxu0 0.0
    %2441 = vmatpush1.xpose.msra.mxu0 0.0
    %2442 = vmatprep.subr.mxu0 0.0
    %2443 = vmatpush1.xpose.msra.mxu0 0.0
    %2444 = vmatprep.subr.mxu0 0.0
    %2445 = vmatpush1.xpose.msra.mxu0 0.0
    %2446 = vmatprep.subr.mxu0 0.0
    %2447 = vmatpush1.xpose.msra.mxu0 0.0
    %2448 = vmatprep.subr.mxu0 0.0
    %2449 = vmatpush1.xpose.msra.mxu0 0.0
    %2450 = vmatprep.subr.mxu0 0.0
    %2451 = vmatpush1.xpose.msra.mxu0 0.0
    %2452 = vmatprep.subr.mxu0 0.0
    %2453 = vmatpush1.xpose.msra.mxu0 0.0
    %2454 = vmatprep.subr.mxu0 0.0
    %2455 = vmatpush1.xpose.msra.mxu0 0.0
    %2456 = vmatprep.subr.mxu0 0.0
    %2457 = vmatpush1.xpose.msra.mxu0 0.0
    %2458 = vmatprep.subr.mxu0 0.0
    %2459 = vmatpush1.xpose.msra.mxu0 0.0
    %2460 = vmatprep.subr.mxu0 0.0
    %2461 = vmatpush1.xpose.msra.mxu0 0.0
    %2462 = vmatprep.subr.mxu0 0.0
    %2463 = vmatpush1.xpose.msra.mxu0 0.0
    %2464 = vmatprep.subr.mxu0 0.0
    %2465 = vmatpush1.xpose.msra.mxu0 0.0
    %2466 = vmatprep.subr.mxu0 0.0
    %2467 = vmatpush1.xpose.msra.mxu0 0.0
    %2468 = vmatprep.subr.mxu0 0.0
    %2469 = vmatpush1.xpose.msra.mxu0 0.0
    %2470 = vmatprep.subr.mxu0 0.0
    %2471 = vmatpush1.xpose.msra.mxu0 0.0
    %2472 = vmatprep.mubr.f32.mxu0 0.0
    %2473 = vmatmul.mubr.f32.gmra.mrb[0].mxu0 %v2402
    %v2474 = vpop.f32.mrb[0].mxu0
    %v2475 = vadd.f32 0.0, %v2474
    %v2476 = vpop.f32.mrb[0].mxu0
    %2477 = vdwg.mxu0
    %v2478 = vsel %vm214, %v2139, 0
    %v2480 = vsel %vm214, %v2159, 0
    %v2482 = vsel %vm214, %v2161, 0
    %2484 = vmatprep.subr.mxu0 0.0
    %2485 = vmatpush1.xpose.msra.mxu0 %v2480
    %2486 = vmatprep.subr.mxu0 0.0
    %2487 = vmatpush1.xpose.msra.mxu0 %v2482
    %2488 = vmatprep.subr.mxu0 0.0
    %2489 = vmatpush1.xpose.msra.mxu0 0.0
    %2490 = vmatprep.subr.mxu0 0.0
    %2491 = vmatpush1.xpose.msra.mxu0 0.0
    %2492 = vmatprep.subr.mxu0 0.0
    %2493 = vmatpush1.xpose.msra.mxu0 0.0
    %2494 = vmatprep.subr.mxu0 0.0
    %2495 = vmatpush1.xpose.msra.mxu0 0.0
    %2496 = vmatprep.subr.mxu0 0.0
    %2497 = vmatpush1.xpose.msra.mxu0 0.0
    %2498 = vmatprep.subr.mxu0 0.0
    %2499 = vmatpush1.xpose.msra.mxu0 0.0
    %2500 = vmatprep.subr.mxu0 0.0
    %2501 = vmatpush1.xpose.msra.mxu0 0.0
    %2502 = vmatprep.subr.mxu0 0.0
    %2503 = vmatpush1.xpose.msra.mxu0 0.0
    %2504 = vmatprep.subr.mxu0 0.0
    %2505 = vmatpush1.xpose.msra.mxu0 0.0
    %2506 = vmatprep.subr.mxu0 0.0
    %2507 = vmatpush1.xpose.msra.mxu0 0.0
    %2508 = vmatprep.subr.mxu0 0.0
    %2509 = vmatpush1.xpose.msra.mxu0 0.0
    %2510 = vmatprep.subr.mxu0 0.0
    %2511 = vmatpush1.xpose.msra.mxu0 0.0
    %2512 = vmatprep.subr.mxu0 0.0
    %2513 = vmatpush1.xpose.msra.mxu0 0.0
    %2514 = vmatprep.subr.mxu0 0.0
    %2515 = vmatpush1.xpose.msra.mxu0 0.0
    %2516 = vmatprep.subr.mxu0 0.0
    %2517 = vmatpush1.xpose.msra.mxu0 0.0
    %2518 = vmatprep.subr.mxu0 0.0
    %2519 = vmatpush1.xpose.msra.mxu0 0.0
    %2520 = vmatprep.subr.mxu0 0.0
    %2521 = vmatpush1.xpose.msra.mxu0 0.0
    %2522 = vmatprep.subr.mxu0 0.0
    %2523 = vmatpush1.xpose.msra.mxu0 0.0
    %2524 = vmatprep.subr.mxu0 0.0
    %2525 = vmatpush1.xpose.msra.mxu0 0.0
    %2526 = vmatprep.subr.mxu0 0.0
    %2527 = vmatpush1.xpose.msra.mxu0 0.0
    %2528 = vmatprep.subr.mxu0 0.0
    %2529 = vmatpush1.xpose.msra.mxu0 0.0
    %2530 = vmatprep.subr.mxu0 0.0
    %2531 = vmatpush1.xpose.msra.mxu0 0.0
    %2532 = vmatprep.subr.mxu0 0.0
    %2533 = vmatpush1.xpose.msra.mxu0 0.0
    %2534 = vmatprep.subr.mxu0 0.0
    %2535 = vmatpush1.xpose.msra.mxu0 0.0
    %2536 = vmatprep.subr.mxu0 0.0
    %2537 = vmatpush1.xpose.msra.mxu0 0.0
    %2538 = vmatprep.subr.mxu0 0.0
    %2539 = vmatpush1.xpose.msra.mxu0 0.0
    %2540 = vmatprep.subr.mxu0 0.0
    %2541 = vmatpush1.xpose.msra.mxu0 0.0
    %2542 = vmatprep.subr.mxu0 0.0
    %2543 = vmatpush1.xpose.msra.mxu0 0.0
    %2544 = vmatprep.subr.mxu0 0.0
    %2545 = vmatpush1.xpose.msra.mxu0 0.0
    %2546 = vmatprep.subr.mxu0 0.0
    %2547 = vmatpush1.xpose.msra.mxu0 0.0
    %2548 = vmatprep.mubr.f32.mxu0 0.0
    %2549 = vmatmul.mubr.f32.gmra.mrb[0].mxu0 %v2478
    %v2550 = vpop.f32.mrb[0].mxu0
    %v2551 = vadd.f32 0.0, %v2550
    %v2552 = vpop.f32.mrb[0].mxu0
    %2553 = vdwg.mxu0
    %v2554 = vsel %vm214, %v2141, 0
    %v2556 = vsel %vm214, %v2163, 0
    %v2558 = vsel %vm214, %v2165, 0
    %2560 = vmatprep.subr.mxu0 0.0
    %2561 = vmatpush1.xpose.msra.mxu0 %v2556
    %2562 = vmatprep.subr.mxu0 0.0
    %2563 = vmatpush1.xpose.msra.mxu0 %v2558
    %2564 = vmatprep.subr.mxu0 0.0
    %2565 = vmatpush1.xpose.msra.mxu0 0.0
    %2566 = vmatprep.subr.mxu0 0.0
    %2567 = vmatpush1.xpose.msra.mxu0 0.0
    %2568 = vmatprep.subr.mxu0 0.0
    %2569 = vmatpush1.xpose.msra.mxu0 0.0
    %2570 = vmatprep.subr.mxu0 0.0
    %2571 = vmatpush1.xpose.msra.mxu0 0.0
    %2572 = vmatprep.subr.mxu0 0.0
    %2573 = vmatpush1.xpose.msra.mxu0 0.0
    %2574 = vmatprep.subr.mxu0 0.0
    %2575 = vmatpush1.xpose.msra.mxu0 0.0
    %2576 = vmatprep.subr.mxu0 0.0
    %2577 = vmatpush1.xpose.msra.mxu0 0.0
    %2578 = vmatprep.subr.mxu0 0.0
    %2579 = vmatpush1.xpose.msra.mxu0 0.0
    %2580 = vmatprep.subr.mxu0 0.0
    %2581 = vmatpush1.xpose.msra.mxu0 0.0
    %2582 = vmatprep.subr.mxu0 0.0
    %2583 = vmatpush1.xpose.msra.mxu0 0.0
    %2584 = vmatprep.subr.mxu0 0.0
    %2585 = vmatpush1.xpose.msra.mxu0 0.0
    %2586 = vmatprep.subr.mxu0 0.0
    %2587 = vmatpush1.xpose.msra.mxu0 0.0
    %2588 = vmatprep.subr.mxu0 0.0
    %2589 = vmatpush1.xpose.msra.mxu0 0.0
    %2590 = vmatprep.subr.mxu0 0.0
    %2591 = vmatpush1.xpose.msra.mxu0 0.0
    %2592 = vmatprep.subr.mxu0 0.0
    %2593 = vmatpush1.xpose.msra.mxu0 0.0
    %2594 = vmatprep.subr.mxu0 0.0
    %2595 = vmatpush1.xpose.msra.mxu0 0.0
    %2596 = vmatprep.subr.mxu0 0.0
    %2597 = vmatpush1.xpose.msra.mxu0 0.0
    %2598 = vmatprep.subr.mxu0 0.0
    %2599 = vmatpush1.xpose.msra.mxu0 0.0
    %2600 = vmatprep.subr.mxu0 0.0
    %2601 = vmatpush1.xpose.msra.mxu0 0.0
    %2602 = vmatprep.subr.mxu0 0.0
    %2603 = vmatpush1.xpose.msra.mxu0 0.0
    %2604 = vmatprep.subr.mxu0 0.0
    %2605 = vmatpush1.xpose.msra.mxu0 0.0
    %2606 = vmatprep.subr.mxu0 0.0
    %2607 = vmatpush1.xpose.msra.mxu0 0.0
    %2608 = vmatprep.subr.mxu0 0.0
    %2609 = vmatpush1.xpose.msra.mxu0 0.0
    %2610 = vmatprep.subr.mxu0 0.0
    %2611 = vmatpush1.xpose.msra.mxu0 0.0
    %2612 = vmatprep.subr.mxu0 0.0
    %2613 = vmatpush1.xpose.msra.mxu0 0.0
    %2614 = vmatprep.subr.mxu0 0.0
    %2615 = vmatpush1.xpose.msra.mxu0 0.0
    %2616 = vmatprep.subr.mxu0 0.0
    %2617 = vmatpush1.xpose.msra.mxu0 0.0
    %2618 = vmatprep.subr.mxu0 0.0
    %2619 = vmatpush1.xpose.msra.mxu0 0.0
    %2620 = vmatprep.subr.mxu0 0.0
    %2621 = vmatpush1.xpose.msra.mxu0 0.0
    %2622 = vmatprep.subr.mxu0 0.0
    %2623 = vmatpush1.xpose.msra.mxu0 0.0
    %2624 = vmatprep.mubr.f32.mxu0 0.0
    %2625 = vmatmul.mubr.f32.gmra.mrb[0].mxu0 %v2554
    %v2626 = vpop.f32.mrb[0].mxu0
    %v2627 = vadd.f32 0.0, %v2626
    %v2628 = vpop.f32.mrb[0].mxu0
    %2629 = vdwg.mxu0
    %v2630 = vsel %vm214, %v2143, 0
    %v2632 = vsel %vm214, %v2167, 0
    %v2634 = vsel %vm214, %v2169, 0
    %2636 = vmatprep.subr.mxu0 0.0
    %2637 = vmatpush1.xpose.msra.mxu0 %v2632
    %2638 = vmatprep.subr.mxu0 0.0
    %2639 = vmatpush1.xpose.msra.mxu0 %v2634
    %2640 = vmatprep.subr.mxu0 0.0
    %2641 = vmatpush1.xpose.msra.mxu0 0.0
    %2642 = vmatprep.subr.mxu0 0.0
    %2643 = vmatpush1.xpose.msra.mxu0 0.0
    %2644 = vmatprep.subr.mxu0 0.0
    %2645 = vmatpush1.xpose.msra.mxu0 0.0
    %2646 = vmatprep.subr.mxu0 0.0
    %2647 = vmatpush1.xpose.msra.mxu0 0.0
    %2648 = vmatprep.subr.mxu0 0.0
    %2649 = vmatpush1.xpose.msra.mxu0 0.0
    %2650 = vmatprep.subr.mxu0 0.0
    %2651 = vmatpush1.xpose.msra.mxu0 0.0
    %2652 = vmatprep.subr.mxu0 0.0
    %2653 = vmatpush1.xpose.msra.mxu0 0.0
    %2654 = vmatprep.subr.mxu0 0.0
    %2655 = vmatpush1.xpose.msra.mxu0 0.0
    %2656 = vmatprep.subr.mxu0 0.0
    %2657 = vmatpush1.xpose.msra.mxu0 0.0
    %2658 = vmatprep.subr.mxu0 0.0
    %2659 = vmatpush1.xpose.msra.mxu0 0.0
    %2660 = vmatprep.subr.mxu0 0.0
    %2661 = vmatpush1.xpose.msra.mxu0 0.0
    %2662 = vmatprep.subr.mxu0 0.0
    %2663 = vmatpush1.xpose.msra.mxu0 0.0
    %2664 = vmatprep.subr.mxu0 0.0
    %2665 = vmatpush1.xpose.msra.mxu0 0.0
    %2666 = vmatprep.subr.mxu0 0.0
    %2667 = vmatpush1.xpose.msra.mxu0 0.0
    %2668 = vmatprep.subr.mxu0 0.0
    %2669 = vmatpush1.xpose.msra.mxu0 0.0
    %2670 = vmatprep.subr.mxu0 0.0
    %2671 = vmatpush1.xpose.msra.mxu0 0.0
    %2672 = vmatprep.subr.mxu0 0.0
    %2673 = vmatpush1.xpose.msra.mxu0 0.0
    %2674 = vmatprep.subr.mxu0 0.0
    %2675 = vmatpush1.xpose.msra.mxu0 0.0
    %2676 = vmatprep.subr.mxu0 0.0
    %2677 = vmatpush1.xpose.msra.mxu0 0.0
    %2678 = vmatprep.subr.mxu0 0.0
    %2679 = vmatpush1.xpose.msra.mxu0 0.0
    %2680 = vmatprep.subr.mxu0 0.0
    %2681 = vmatpush1.xpose.msra.mxu0 0.0
    %2682 = vmatprep.subr.mxu0 0.0
    %2683 = vmatpush1.xpose.msra.mxu0 0.0
    %2684 = vmatprep.subr.mxu0 0.0
    %2685 = vmatpush1.xpose.msra.mxu0 0.0
    %2686 = vmatprep.subr.mxu0 0.0
    %2687 = vmatpush1.xpose.msra.mxu0 0.0
    %2688 = vmatprep.subr.mxu0 0.0
    %2689 = vmatpush1.xpose.msra.mxu0 0.0
    %2690 = vmatprep.subr.mxu0 0.0
    %2691 = vmatpush1.xpose.msra.mxu0 0.0
    %2692 = vmatprep.subr.mxu0 0.0
    %2693 = vmatpush1.xpose.msra.mxu0 0.0
    %2694 = vmatprep.subr.mxu0 0.0
    %2695 = vmatpush1.xpose.msra.mxu0 0.0
    %2696 = vmatprep.subr.mxu0 0.0
    %2697 = vmatpush1.xpose.msra.mxu0 0.0
    %2698 = vmatprep.subr.mxu0 0.0
    %2699 = vmatpush1.xpose.msra.mxu0 0.0
    %2700 = vmatprep.mubr.f32.mxu0 0.0
    %2701 = vmatmul.mubr.f32.gmra.mrb[0].mxu0 %v2630
    %v2702 = vpop.f32.mrb[0].mxu0
    %v2703 = vadd.f32 0.0, %v2702
    %v2704 = vpop.f32.mrb[0].mxu0
    %2705 = vdwg.mxu0
    %v2706 = vsel %vm214, %v2145, 0
    %v2708 = vsel %vm214, %v2171, 0
    %v2710 = vsel %vm214, %v2173, 0
    %2712 = vmatprep.subr.mxu0 0.0
    %2713 = vmatpush1.xpose.msra.mxu0 %v2708
    %2714 = vmatprep.subr.mxu0 0.0
    %2715 = vmatpush1.xpose.msra.mxu0 %v2710
    %2716 = vmatprep.subr.mxu0 0.0
    %2717 = vmatpush1.xpose.msra.mxu0 0.0
    %2718 = vmatprep.subr.mxu0 0.0
    %2719 = vmatpush1.xpose.msra.mxu0 0.0
    %2720 = vmatprep.subr.mxu0 0.0
    %2721 = vmatpush1.xpose.msra.mxu0 0.0
    %2722 = vmatprep.subr.mxu0 0.0
    %2723 = vmatpush1.xpose.msra.mxu0 0.0
    %2724 = vmatprep.subr.mxu0 0.0
    %2725 = vmatpush1.xpose.msra.mxu0 0.0
    %2726 = vmatprep.subr.mxu0 0.0
    %2727 = vmatpush1.xpose.msra.mxu0 0.0
    %2728 = vmatprep.subr.mxu0 0.0
    %2729 = vmatpush1.xpose.msra.mxu0 0.0
    %2730 = vmatprep.subr.mxu0 0.0
    %2731 = vmatpush1.xpose.msra.mxu0 0.0
    %2732 = vmatprep.subr.mxu0 0.0
    %2733 = vmatpush1.xpose.msra.mxu0 0.0
    %2734 = vmatprep.subr.mxu0 0.0
    %2735 = vmatpush1.xpose.msra.mxu0 0.0
    %2736 = vmatprep.subr.mxu0 0.0
    %2737 = vmatpush1.xpose.msra.mxu0 0.0
    %2738 = vmatprep.subr.mxu0 0.0
    %2739 = vmatpush1.xpose.msra.mxu0 0.0
    %2740 = vmatprep.subr.mxu0 0.0
    %2741 = vmatpush1.xpose.msra.mxu0 0.0
    %2742 = vmatprep.subr.mxu0 0.0
    %2743 = vmatpush1.xpose.msra.mxu0 0.0
    %2744 = vmatprep.subr.mxu0 0.0
    %2745 = vmatpush1.xpose.msra.mxu0 0.0
    %2746 = vmatprep.subr.mxu0 0.0
    %2747 = vmatpush1.xpose.msra.mxu0 0.0
    %2748 = vmatprep.subr.mxu0 0.0
    %2749 = vmatpush1.xpose.msra.mxu0 0.0
    %2750 = vmatprep.subr.mxu0 0.0
    %2751 = vmatpush1.xpose.msra.mxu0 0.0
    %2752 = vmatprep.subr.mxu0 0.0
    %2753 = vmatpush1.xpose.msra.mxu0 0.0
    %2754 = vmatprep.subr.mxu0 0.0
    %2755 = vmatpush1.xpose.msra.mxu0 0.0
    %2756 = vmatprep.subr.mxu0 0.0
    %2757 = vmatpush1.xpose.msra.mxu0 0.0
    %2758 = vmatprep.subr.mxu0 0.0
    %2759 = vmatpush1.xpose.msra.mxu0 0.0
    %2760 = vmatprep.subr.mxu0 0.0
    %2761 = vmatpush1.xpose.msra.mxu0 0.0
    %2762 = vmatprep.subr.mxu0 0.0
    %2763 = vmatpush1.xpose.msra.mxu0 0.0
    %2764 = vmatprep.subr.mxu0 0.0
    %2765 = vmatpush1.xpose.msra.mxu0 0.0
    %2766 = vmatprep.subr.mxu0 0.0
    %2767 = vmatpush1.xpose.msra.mxu0 0.0
    %2768 = vmatprep.subr.mxu0 0.0
    %2769 = vmatpush1.xpose.msra.mxu0 0.0
    %2770 = vmatprep.subr.mxu0 0.0
    %2771 = vmatpush1.xpose.msra.mxu0 0.0
    %2772 = vmatprep.subr.mxu0 0.0
    %2773 = vmatpush1.xpose.msra.mxu0 0.0
    %2774 = vmatprep.subr.mxu0 0.0
    %2775 = vmatpush1.xpose.msra.mxu0 0.0
    %2776 = vmatprep.mubr.f32.mxu0 0.0
    %2777 = vmatmul.mubr.f32.gmra.mrb[0].mxu0 %v2706
    %v2778 = vpop.f32.mrb[0].mxu0
    %v2779 = vadd.f32 0.0, %v2778
    %v2780 = vpop.f32.mrb[0].mxu0
    %2781 = vdwg.mxu0
    %v2782 = vmul.f32 %v2247, 0.35355338
    %v2783 = vmul.f32 %v2323, 0.35355338
    %v2784 = vmul.f32 %v2399, 0.35355338
    %v2785 = vmul.f32 %v2475, 0.35355338
    %v2786 = vmul.f32 %v2551, 0.35355338
    %v2787 = vmul.f32 %v2627, 0.35355338
    %v2788 = vmul.f32 %v2703, 0.35355338
    %v2789 = vmul.f32 %v2779, 0.35355338
    %v2790 = vadd.f32 %v2782, %v100
    %v2791 = vadd.f32 %v2783, %v101
    %v2792 = vadd.f32 %v2784, %v100
    %v2793 = vadd.f32 %v2785, %v101
    %v2794 = vadd.f32 %v2786, %v100
    %v2795 = vadd.f32 %v2787, %v101
    %v2796 = vadd.f32 %v2788, %v100
    %v2797 = vadd.f32 %v2789, %v101
    %vm2798 = vcmask 130048
    %v2799 = vsel %vm2798, %v2790, -inf
    %2800 = vmax.xlane.f32.xlu0 %v2799
    %v2801 = vpop.xlane.xlu0 %2800
    %v2802 = vsel %vm2798, %v2791, -inf
    %2803 = vmax.xlane.f32.xlu0 %v2802
    %v2804 = vpop.xlane.xlu0 %2803
    %v2805 = vsel %vm2798, %v2792, -inf
    %2806 = vmax.xlane.f32.xlu0 %v2805
    %v2807 = vpop.xlane.xlu0 %2806
    %v2808 = vsel %vm2798, %v2793, -inf
    %2809 = vmax.xlane.f32.xlu0 %v2808
    %v2810 = vpop.xlane.xlu0 %2809
    %v2811 = vsel %vm2798, %v2794, -inf
    %2812 = vmax.xlane.f32.xlu0 %v2811
    %v2813 = vpop.xlane.xlu0 %2812
    %v2814 = vsel %vm2798, %v2795, -inf
    %2815 = vmax.xlane.f32.xlu0 %v2814
    %v2816 = vpop.xlane.xlu0 %2815
    %v2817 = vsel %vm2798, %v2796, -inf
    %2818 = vmax.xlane.f32.xlu0 %v2817
    %v2819 = vpop.xlane.xlu0 %2818
    %v2820 = vsel %vm2798, %v2797, -inf
    %2821 = vmax.xlane.f32.xlu0 %v2820
    %v2822 = vpop.xlane.xlu0 %2821
    %v2823 = vsub.f32 %v2790, %v2801
    %v2824 = vsub.f32 %v2791, %v2804
    %v2825 = vsub.f32 %v2792, %v2807
    %v2826 = vsub.f32 %v2793, %v2810
    %v2827 = vsub.f32 %v2794, %v2813
    %v2828 = vsub.f32 %v2795, %v2816
    %v2829 = vsub.f32 %v2796, %v2819
    %v2830 = vsub.f32 %v2797, %v2822
    %v2831 = vmul.f32 %v2823, 1.442695
    %v2832 = vpow.pop %v2831
    %v2833 = vmul.f32 %v2824, 1.442695
    %v2834 = vpow.pop %v2833
    %v2835 = vmul.f32 %v2825, 1.442695
    %v2836 = vpow.pop %v2835
    %v2837 = vmul.f32 %v2826, 1.442695
    %v2838 = vpow.pop %v2837
    %v2839 = vmul.f32 %v2827, 1.442695
    %v2840 = vpow.pop %v2839
    %v2841 = vmul.f32 %v2828, 1.442695
    %v2842 = vpow.pop %v2841
    %v2843 = vmul.f32 %v2829, 1.442695
    %v2844 = vpow.pop %v2843
    %v2845 = vmul.f32 %v2830, 1.442695
    %v2846 = vpow.pop %v2845
    %v2847 = vsel %vm2798, %v2832, 0.0
    %2848 = vadd.xlane.f32.xlu0 %v2847
    %v2849 = vpop.xlane.xlu0 %2848
    %v2850 = vsel %vm2798, %v2834, 0.0
    %2851 = vadd.xlane.f32.xlu0 %v2850
    %v2852 = vpop.xlane.xlu0 %2851
    %v2853 = vsel %vm2798, %v2836, 0.0
    %2854 = vadd.xlane.f32.xlu0 %v2853
    %v2855 = vpop.xlane.xlu0 %2854
    %v2856 = vsel %vm2798, %v2838, 0.0
    %2857 = vadd.xlane.f32.xlu0 %v2856
    %v2858 = vpop.xlane.xlu0 %2857
    %v2859 = vsel %vm2798, %v2840, 0.0
    %2860 = vadd.xlane.f32.xlu0 %v2859
    %v2861 = vpop.xlane.xlu0 %2860
    %v2862 = vsel %vm2798, %v2842, 0.0
    %2863 = vadd.xlane.f32.xlu0 %v2862
    %v2864 = vpop.xlane.xlu0 %2863
    %v2865 = vsel %vm2798, %v2844, 0.0
    %2866 = vadd.xlane.f32.xlu0 %v2865
    %v2867 = vpop.xlane.xlu0 %2866
    %v2868 = vsel %vm2798, %v2846, 0.0
    %2869 = vadd.xlane.f32.xlu0 %v2868
    %v2870 = vpop.xlane.xlu0 %2869
    %v2871 = vrcp.pop %v2849
    %v2872 = vrcp.pop %v2852
    %v2873 = vrcp.pop %v2855
    %v2874 = vrcp.pop %v2858
    %v2875 = vrcp.pop %v2861
    %v2876 = vrcp.pop %v2864
    %v2877 = vrcp.pop %v2867
    %v2878 = vrcp.pop %v2870
    %v2879 = vmul.f32 %v2832, %v2871
    %v2880 = vmul.f32 %v2834, %v2872
    %v2881 = vmul.f32 %v2836, %v2873
    %v2882 = vmul.f32 %v2838, %v2874
    %v2883 = vmul.f32 %v2840, %v2875
    %v2884 = vmul.f32 %v2842, %v2876
    %v2885 = vmul.f32 %v2844, %v2877
    %v2886 = vmul.f32 %v2846, %v2878
    %2887 = vrot.lane.b32.xlu0 %v2109, 96
    %v2888 = vpop.permute.xlu0 %2887
    %2889 = vrot.lane.b32.xlu0 %v2114, 96
    %v2890 = vpop.permute.xlu0 %2889
    %v2894 = vsel %vm2798, %v2879, 0
    %2896 = vmatprep.subr.mxu0 0.0
    %2897 = vmatpush1.msra.mxu0 %v2888
    %2898 = vmatprep.subr.mxu0 0.0
    %2899 = vmatpush1.msra.mxu0 %v2890
    %2900 = vmatprep.subr.mxu0 0.0
    %2901 = vmatpush1.msra.mxu0 0.0
    %2902 = vmatprep.subr.mxu0 0.0
    %2903 = vmatpush1.msra.mxu0 0.0
    %2904 = vmatprep.subr.mxu0 0.0
    %2905 = vmatpush1.msra.mxu0 0.0
    %2906 = vmatprep.subr.mxu0 0.0
    %2907 = vmatpush1.msra.mxu0 0.0
    %2908 = vmatprep.subr.mxu0 0.0
    %2909 = vmatpush1.msra.mxu0 0.0
    %2910 = vmatprep.subr.mxu0 0.0
    %2911 = vmatpush1.msra.mxu0 0.0
    %2912 = vmatprep.subr.mxu0 0.0
    %2913 = vmatpush1.msra.mxu0 0.0
    %2914 = vmatprep.subr.mxu0 0.0
    %2915 = vmatpush1.msra.mxu0 0.0
    %2916 = vmatprep.subr.mxu0 0.0
    %2917 = vmatpush1.msra.mxu0 0.0
    %2918 = vmatprep.subr.mxu0 0.0
    %2919 = vmatpush1.msra.mxu0 0.0
    %2920 = vmatprep.subr.mxu0 0.0
    %2921 = vmatpush1.msra.mxu0 0.0
    %2922 = vmatprep.subr.mxu0 0.0
    %2923 = vmatpush1.msra.mxu0 0.0
    %2924 = vmatprep.subr.mxu0 0.0
    %2925 = vmatpush1.msra.mxu0 0.0
    %2926 = vmatprep.subr.mxu0 0.0
    %2927 = vmatpush1.msra.mxu0 0.0
    %2928 = vmatprep.subr.mxu0 0.0
    %2929 = vmatpush1.msra.mxu0 0.0
    %2930 = vmatprep.subr.mxu0 0.0
    %2931 = vmatpush1.msra.mxu0 0.0
    %2932 = vmatprep.subr.mxu0 0.0
    %2933 = vmatpush1.msra.mxu0 0.0
    %2934 = vmatprep.subr.mxu0 0.0
    %2935 = vmatpush1.msra.mxu0 0.0
    %2936 = vmatprep.subr.mxu0 0.0
    %2937 = vmatpush1.msra.mxu0 0.0
    %2938 = vmatprep.subr.mxu0 0.0
    %2939 = vmatpush1.msra.mxu0 0.0
    %2940 = vmatprep.subr.mxu0 0.0
    %2941 = vmatpush1.msra.mxu0 0.0
    %2942 = vmatprep.subr.mxu0 0.0
    %2943 = vmatpush1.msra.mxu0 0.0
    %2944 = vmatprep.subr.mxu0 0.0
    %2945 = vmatpush1.msra.mxu0 0.0
    %2946 = vmatprep.subr.mxu0 0.0
    %2947 = vmatpush1.msra.mxu0 0.0
    %2948 = vmatprep.subr.mxu0 0.0
    %2949 = vmatpush1.msra.mxu0 0.0
    %2950 = vmatprep.subr.mxu0 0.0
    %2951 = vmatpush1.msra.mxu0 0.0
    %2952 = vmatprep.subr.mxu0 0.0
    %2953 = vmatpush1.msra.mxu0 0.0
    %2954 = vmatprep.subr.mxu0 0.0
    %2955 = vmatpush1.msra.mxu0 0.0
    %2956 = vmatprep.subr.mxu0 0.0
    %2957 = vmatpush1.msra.mxu0 0.0
    %2958 = vmatprep.subr.mxu0 0.0
    %2959 = vmatpush1.msra.mxu0 0.0
    %2960 = vmatprep.mubr.f32.mxu0 0.0
    %2961 = vmatmul.mubr.f32.gmra.mrb[0].mxu0 %v2894
    %v2962 = vpop.f32.mrb[0].mxu0
    %v2963 = vadd.f32 0.0, %v2962
    %v2964 = vpop.f32.mrb[0].mxu0
    %2965 = vdwg.mxu0
    %2966 = vrot.lane.b32.xlu0 %v2119, 96
    %v2967 = vpop.permute.xlu0 %2966
    %2968 = vrot.lane.b32.xlu0 %v2124, 96
    %v2969 = vpop.permute.xlu0 %2968
    %v2973 = vsel %vm2798, %v2880, 0
    %2975 = vmatprep.subr.mxu0 0.0
    %2976 = vmatpush1.msra.mxu0 %v2967
    %2977 = vmatprep.subr.mxu0 0.0
    %2978 = vmatpush1.msra.mxu0 %v2969
    %2979 = vmatprep.subr.mxu0 0.0
    %2980 = vmatpush1.msra.mxu0 0.0
    %2981 = vmatprep.subr.mxu0 0.0
    %2982 = vmatpush1.msra.mxu0 0.0
    %2983 = vmatprep.subr.mxu0 0.0
    %2984 = vmatpush1.msra.mxu0 0.0
    %2985 = vmatprep.subr.mxu0 0.0
    %2986 = vmatpush1.msra.mxu0 0.0
    %2987 = vmatprep.subr.mxu0 0.0
    %2988 = vmatpush1.msra.mxu0 0.0
    %2989 = vmatprep.subr.mxu0 0.0
    %2990 = vmatpush1.msra.mxu0 0.0
    %2991 = vmatprep.subr.mxu0 0.0
    %2992 = vmatpush1.msra.mxu0 0.0
    %2993 = vmatprep.subr.mxu0 0.0
    %2994 = vmatpush1.msra.mxu0 0.0
    %2995 = vmatprep.subr.mxu0 0.0
    %2996 = vmatpush1.msra.mxu0 0.0
    %2997 = vmatprep.subr.mxu0 0.0
    %2998 = vmatpush1.msra.mxu0 0.0
    %2999 = vmatprep.subr.mxu0 0.0
    %3000 = vmatpush1.msra.mxu0 0.0
    %3001 = vmatprep.subr.mxu0 0.0
    %3002 = vmatpush1.msra.mxu0 0.0
    %3003 = vmatprep.subr.mxu0 0.0
    %3004 = vmatpush1.msra.mxu0 0.0
    %3005 = vmatprep.subr.mxu0 0.0
    %3006 = vmatpush1.msra.mxu0 0.0
    %3007 = vmatprep.subr.mxu0 0.0
    %3008 = vmatpush1.msra.mxu0 0.0
    %3009 = vmatprep.subr.mxu0 0.0
    %3010 = vmatpush1.msra.mxu0 0.0
    %3011 = vmatprep.subr.mxu0 0.0
    %3012 = vmatpush1.msra.mxu0 0.0
    %3013 = vmatprep.subr.mxu0 0.0
    %3014 = vmatpush1.msra.mxu0 0.0
    %3015 = vmatprep.subr.mxu0 0.0
    %3016 = vmatpush1.msra.mxu0 0.0
    %3017 = vmatprep.subr.mxu0 0.0
    %3018 = vmatpush1.msra.mxu0 0.0
    %3019 = vmatprep.subr.mxu0 0.0
    %3020 = vmatpush1.msra.mxu0 0.0
    %3021 = vmatprep.subr.mxu0 0.0
    %3022 = vmatpush1.msra.mxu0 0.0
    %3023 = vmatprep.subr.mxu0 0.0
    %3024 = vmatpush1.msra.mxu0 0.0
    %3025 = vmatprep.subr.mxu0 0.0
    %3026 = vmatpush1.msra.mxu0 0.0
    %3027 = vmatprep.subr.mxu0 0.0
    %3028 = vmatpush1.msra.mxu0 0.0
    %3029 = vmatprep.subr.mxu0 0.0
    %3030 = vmatpush1.msra.mxu0 0.0
    %3031 = vmatprep.subr.mxu0 0.0
    %3032 = vmatpush1.msra.mxu0 0.0
    %3033 = vmatprep.subr.mxu0 0.0
    %3034 = vmatpush1.msra.mxu0 0.0
    %3035 = vmatprep.subr.mxu0 0.0
    %3036 = vmatpush1.msra.mxu0 0.0
    %3037 = vmatprep.subr.mxu0 0.0
    %3038 = vmatpush1.msra.mxu0 0.0
    %3039 = vmatprep.mubr.f32.mxu0 0.0
    %3040 = vmatmul.mubr.f32.gmra.mrb[0].mxu0 %v2973
    %v3041 = vpop.f32.mrb[0].mxu0
    %v3042 = vadd.f32 0.0, %v3041
    %v3043 = vpop.f32.mrb[0].mxu0
    %3044 = vdwg.mxu0
    %3045 = vrot.lane.b32.xlu0 %v2151, 96
    %v3046 = vpop.permute.xlu0 %3045
    %3047 = vrot.lane.b32.xlu0 %v2153, 96
    %v3048 = vpop.permute.xlu0 %3047
    %v3052 = vsel %vm2798, %v2881, 0
    %3054 = vmatprep.subr.mxu0 0.0
    %3055 = vmatpush1.msra.mxu0 %v3046
    %3056 = vmatprep.subr.mxu0 0.0
    %3057 = vmatpush1.msra.mxu0 %v3048
    %3058 = vmatprep.subr.mxu0 0.0
    %3059 = vmatpush1.msra.mxu0 0.0
    %3060 = vmatprep.subr.mxu0 0.0
    %3061 = vmatpush1.msra.mxu0 0.0
    %3062 = vmatprep.subr.mxu0 0.0
    %3063 = vmatpush1.msra.mxu0 0.0
    %3064 = vmatprep.subr.mxu0 0.0
    %3065 = vmatpush1.msra.mxu0 0.0
    %3066 = vmatprep.subr.mxu0 0.0
    %3067 = vmatpush1.msra.mxu0 0.0
    %3068 = vmatprep.subr.mxu0 0.0
    %3069 = vmatpush1.msra.mxu0 0.0
    %3070 = vmatprep.subr.mxu0 0.0
    %3071 = vmatpush1.msra.mxu0 0.0
    %3072 = vmatprep.subr.mxu0 0.0
    %3073 = vmatpush1.msra.mxu0 0.0
    %3074 = vmatprep.subr.mxu0 0.0
    %3075 = vmatpush1.msra.mxu0 0.0
    %3076 = vmatprep.subr.mxu0 0.0
    %3077 = vmatpush1.msra.mxu0 0.0
    %3078 = vmatprep.subr.mxu0 0.0
    %3079 = vmatpush1.msra.mxu0 0.0
    %3080 = vmatprep.subr.mxu0 0.0
    %3081 = vmatpush1.msra.mxu0 0.0
    %3082 = vmatprep.subr.mxu0 0.0
    %3083 = vmatpush1.msra.mxu0 0.0
    %3084 = vmatprep.subr.mxu0 0.0
    %3085 = vmatpush1.msra.mxu0 0.0
    %3086 = vmatprep.subr.mxu0 0.0
    %3087 = vmatpush1.msra.mxu0 0.0
    %3088 = vmatprep.subr.mxu0 0.0
    %3089 = vmatpush1.msra.mxu0 0.0
    %3090 = vmatprep.subr.mxu0 0.0
    %3091 = vmatpush1.msra.mxu0 0.0
    %3092 = vmatprep.subr.mxu0 0.0
    %3093 = vmatpush1.msra.mxu0 0.0
    %3094 = vmatprep.subr.mxu0 0.0
    %3095 = vmatpush1.msra.mxu0 0.0
    %3096 = vmatprep.subr.mxu0 0.0
    %3097 = vmatpush1.msra.mxu0 0.0
    %3098 = vmatprep.subr.mxu0 0.0
    %3099 = vmatpush1.msra.mxu0 0.0
    %3100 = vmatprep.subr.mxu0 0.0
    %3101 = vmatpush1.msra.mxu0 0.0
    %3102 = vmatprep.subr.mxu0 0.0
    %3103 = vmatpush1.msra.mxu0 0.0
    %3104 = vmatprep.subr.mxu0 0.0
    %3105 = vmatpush1.msra.mxu0 0.0
    %3106 = vmatprep.subr.mxu0 0.0
    %3107 = vmatpush1.msra.mxu0 0.0
    %3108 = vmatprep.subr.mxu0 0.0
    %3109 = vmatpush1.msra.mxu0 0.0
    %3110 = vmatprep.subr.mxu0 0.0
    %3111 = vmatpush1.msra.mxu0 0.0
    %3112 = vmatprep.subr.mxu0 0.0
    %3113 = vmatpush1.msra.mxu0 0.0
    %3114 = vmatprep.subr.mxu0 0.0
    %3115 = vmatpush1.msra.mxu0 0.0
    %3116 = vmatprep.subr.mxu0 0.0
    %3117 = vmatpush1.msra.mxu0 0.0
    %3118 = vmatprep.mubr.f32.mxu0 0.0
    %3119 = vmatmul.mubr.f32.gmra.mrb[0].mxu0 %v3052
    %v3120 = vpop.f32.mrb[0].mxu0
    %v3121 = vadd.f32 0.0, %v3120
    %v3122 = vpop.f32.mrb[0].mxu0
    %3123 = vdwg.mxu0
    %3124 = vrot.lane.b32.xlu0 %v2155, 96
    %v3125 = vpop.permute.xlu0 %3124
    %3126 = vrot.lane.b32.xlu0 %v2157, 96
    %v3127 = vpop.permute.xlu0 %3126
    %v3131 = vsel %vm2798, %v2882, 0
    %3133 = vmatprep.subr.mxu0 0.0
    %3134 = vmatpush1.msra.mxu0 %v3125
    %3135 = vmatprep.subr.mxu0 0.0
    %3136 = vmatpush1.msra.mxu0 %v3127
    %3137 = vmatprep.subr.mxu0 0.0
    %3138 = vmatpush1.msra.mxu0 0.0
    %3139 = vmatprep.subr.mxu0 0.0
    %3140 = vmatpush1.msra.mxu0 0.0
    %3141 = vmatprep.subr.mxu0 0.0
    %3142 = vmatpush1.msra.mxu0 0.0
    %3143 = vmatprep.subr.mxu0 0.0
    %3144 = vmatpush1.msra.mxu0 0.0
    %3145 = vmatprep.subr.mxu0 0.0
    %3146 = vmatpush1.msra.mxu0 0.0
    %3147 = vmatprep.subr.mxu0 0.0
    %3148 = vmatpush1.msra.mxu0 0.0
    %3149 = vmatprep.subr.mxu0 0.0
    %3150 = vmatpush1.msra.mxu0 0.0
    %3151 = vmatprep.subr.mxu0 0.0
    %3152 = vmatpush1.msra.mxu0 0.0
    %3153 = vmatprep.subr.mxu0 0.0
    %3154 = vmatpush1.msra.mxu0 0.0
    %3155 = vmatprep.subr.mxu0 0.0
    %3156 = vmatpush1.msra.mxu0 0.0
    %3157 = vmatprep.subr.mxu0 0.0
    %3158 = vmatpush1.msra.mxu0 0.0
    %3159 = vmatprep.subr.mxu0 0.0
    %3160 = vmatpush1.msra.mxu0 0.0
    %3161 = vmatprep.subr.mxu0 0.0
    %3162 = vmatpush1.msra.mxu0 0.0
    %3163 = vmatprep.subr.mxu0 0.0
    %3164 = vmatpush1.msra.mxu0 0.0
    %3165 = vmatprep.subr.mxu0 0.0
    %3166 = vmatpush1.msra.mxu0 0.0
    %3167 = vmatprep.subr.mxu0 0.0
    %3168 = vmatpush1.msra.mxu0 0.0
    %3169 = vmatprep.subr.mxu0 0.0
    %3170 = vmatpush1.msra.mxu0 0.0
    %3171 = vmatprep.subr.mxu0 0.0
    %3172 = vmatpush1.msra.mxu0 0.0
    %3173 = vmatprep.subr.mxu0 0.0
    %3174 = vmatpush1.msra.mxu0 0.0
    %3175 = vmatprep.subr.mxu0 0.0
    %3176 = vmatpush1.msra.mxu0 0.0
    %3177 = vmatprep.subr.mxu0 0.0
    %3178 = vmatpush1.msra.mxu0 0.0
    %3179 = vmatprep.subr.mxu0 0.0
    %3180 = vmatpush1.msra.mxu0 0.0
    %3181 = vmatprep.subr.mxu0 0.0
    %3182 = vmatpush1.msra.mxu0 0.0
    %3183 = vmatprep.subr.mxu0 0.0
    %3184 = vmatpush1.msra.mxu0 0.0
    %3185 = vmatprep.subr.mxu0 0.0
    %3186 = vmatpush1.msra.mxu0 0.0
    %3187 = vmatprep.subr.mxu0 0.0
    %3188 = vmatpush1.msra.mxu0 0.0
    %3189 = vmatprep.subr.mxu0 0.0
    %3190 = vmatpush1.msra.mxu0 0.0
    %3191 = vmatprep.subr.mxu0 0.0
    %3192 = vmatpush1.msra.mxu0 0.0
    %3193 = vmatprep.subr.mxu0 0.0
    %3194 = vmatpush1.msra.mxu0 0.0
    %3195 = vmatprep.subr.mxu0 0.0
    %3196 = vmatpush1.msra.mxu0 0.0
    %3197 = vmatprep.mubr.f32.mxu0 0.0
    %3198 = vmatmul.mubr.f32.gmra.mrb[0].mxu0 %v3131
    %v3199 = vpop.f32.mrb[0].mxu0
    %v3200 = vadd.f32 0.0, %v3199
    %v3201 = vpop.f32.mrb[0].mxu0
    %3202 = vdwg.mxu0
    %3203 = vrot.lane.b32.xlu0 %v2159, 96
    %v3204 = vpop.permute.xlu0 %3203
    %3205 = vrot.lane.b32.xlu0 %v2161, 96
    %v3206 = vpop.permute.xlu0 %3205
    %v3210 = vsel %vm2798, %v2883, 0
    %3212 = vmatprep.subr.mxu0 0.0
    %3213 = vmatpush1.msra.mxu0 %v3204
    %3214 = vmatprep.subr.mxu0 0.0
    %3215 = vmatpush1.msra.mxu0 %v3206
    %3216 = vmatprep.subr.mxu0 0.0
    %3217 = vmatpush1.msra.mxu0 0.0
    %3218 = vmatprep.subr.mxu0 0.0
    %3219 = vmatpush1.msra.mxu0 0.0
    %3220 = vmatprep.subr.mxu0 0.0
    %3221 = vmatpush1.msra.mxu0 0.0
    %3222 = vmatprep.subr.mxu0 0.0
    %3223 = vmatpush1.msra.mxu0 0.0
    %3224 = vmatprep.subr.mxu0 0.0
    %3225 = vmatpush1.msra.mxu0 0.0
    %3226 = vmatprep.subr.mxu0 0.0
    %3227 = vmatpush1.msra.mxu0 0.0
    %3228 = vmatprep.subr.mxu0 0.0
    %3229 = vmatpush1.msra.mxu0 0.0
    %3230 = vmatprep.subr.mxu0 0.0
    %3231 = vmatpush1.msra.mxu0 0.0
    %3232 = vmatprep.subr.mxu0 0.0
    %3233 = vmatpush1.msra.mxu0 0.0
    %3234 = vmatprep.subr.mxu0 0.0
    %3235 = vmatpush1.msra.mxu0 0.0
    %3236 = vmatprep.subr.mxu0 0.0
    %3237 = vmatpush1.msra.mxu0 0.0
    %3238 = vmatprep.subr.mxu0 0.0
    %3239 = vmatpush1.msra.mxu0 0.0
    %3240 = vmatprep.subr.mxu0 0.0
    %3241 = vmatpush1.msra.mxu0 0.0
    %3242 = vmatprep.subr.mxu0 0.0
    %3243 = vmatpush1.msra.mxu0 0.0
    %3244 = vmatprep.subr.mxu0 0.0
    %3245 = vmatpush1.msra.mxu0 0.0
    %3246 = vmatprep.subr.mxu0 0.0
    %3247 = vmatpush1.msra.mxu0 0.0
    %3248 = vmatprep.subr.mxu0 0.0
    %3249 = vmatpush1.msra.mxu0 0.0
    %3250 = vmatprep.subr.mxu0 0.0
    %3251 = vmatpush1.msra.mxu0 0.0
    %3252 = vmatprep.subr.mxu0 0.0
    %3253 = vmatpush1.msra.mxu0 0.0
    %3254 = vmatprep.subr.mxu0 0.0
    %3255 = vmatpush1.msra.mxu0 0.0
    %3256 = vmatprep.subr.mxu0 0.0
    %3257 = vmatpush1.msra.mxu0 0.0
    %3258 = vmatprep.subr.mxu0 0.0
    %3259 = vmatpush1.msra.mxu0 0.0
    %3260 = vmatprep.subr.mxu0 0.0
    %3261 = vmatpush1.msra.mxu0 0.0
    %3262 = vmatprep.subr.mxu0 0.0
    %3263 = vmatpush1.msra.mxu0 0.0
    %3264 = vmatprep.subr.mxu0 0.0
    %3265 = vmatpush1.msra.mxu0 0.0
    %3266 = vmatprep.subr.mxu0 0.0
    %3267 = vmatpush1.msra.mxu0 0.0
    %3268 = vmatprep.subr.mxu0 0.0
    %3269 = vmatpush1.msra.mxu0 0.0
    %3270 = vmatprep.subr.mxu0 0.0
    %3271 = vmatpush1.msra.mxu0 0.0
    %3272 = vmatprep.subr.mxu0 0.0
    %3273 = vmatpush1.msra.mxu0 0.0
    %3274 = vmatprep.subr.mxu0 0.0
    %3275 = vmatpush1.msra.mxu0 0.0
    %3276 = vmatprep.mubr.f32.mxu0 0.0
    %3277 = vmatmul.mubr.f32.gmra.mrb[0].mxu0 %v3210
    %v3278 = vpop.f32.mrb[0].mxu0
    %v3279 = vadd.f32 0.0, %v3278
    %v3280 = vpop.f32.mrb[0].mxu0
    %3281 = vdwg.mxu0
    %3282 = vrot.lane.b32.xlu0 %v2163, 96
    %v3283 = vpop.permute.xlu0 %3282
    %3284 = vrot.lane.b32.xlu0 %v2165, 96
    %v3285 = vpop.permute.xlu0 %3284
    %v3289 = vsel %vm2798, %v2884, 0
    %3291 = vmatprep.subr.mxu0 0.0
    %3292 = vmatpush1.msra.mxu0 %v3283
    %3293 = vmatprep.subr.mxu0 0.0
    %3294 = vmatpush1.msra.mxu0 %v3285
    %3295 = vmatprep.subr.mxu0 0.0
    %3296 = vmatpush1.msra.mxu0 0.0
    %3297 = vmatprep.subr.mxu0 0.0
    %3298 = vmatpush1.msra.mxu0 0.0
    %3299 = vmatprep.subr.mxu0 0.0
    %3300 = vmatpush1.msra.mxu0 0.0
    %3301 = vmatprep.subr.mxu0 0.0
    %3302 = vmatpush1.msra.mxu0 0.0
    %3303 = vmatprep.subr.mxu0 0.0
    %3304 = vmatpush1.msra.mxu0 0.0
    %3305 = vmatprep.subr.mxu0 0.0
    %3306 = vmatpush1.msra.mxu0 0.0
    %3307 = vmatprep.subr.mxu0 0.0
    %3308 = vmatpush1.msra.mxu0 0.0
    %3309 = vmatprep.subr.mxu0 0.0
    %3310 = vmatpush1.msra.mxu0 0.0
    %3311 = vmatprep.subr.mxu0 0.0
    %3312 = vmatpush1.msra.mxu0 0.0
    %3313 = vmatprep.subr.mxu0 0.0
    %3314 = vmatpush1.msra.mxu0 0.0
    %3315 = vmatprep.subr.mxu0 0.0
    %3316 = vmatpush1.msra.mxu0 0.0
    %3317 = vmatprep.subr.mxu0 0.0
    %3318 = vmatpush1.msra.mxu0 0.0
    %3319 = vmatprep.subr.mxu0 0.0
    %3320 = vmatpush1.msra.mxu0 0.0
    %3321 = vmatprep.subr.mxu0 0.0
    %3322 = vmatpush1.msra.mxu0 0.0
    %3323 = vmatprep.subr.mxu0 0.0
    %3324 = vmatpush1.msra.mxu0 0.0
    %3325 = vmatprep.subr.mxu0 0.0
    %3326 = vmatpush1.msra.mxu0 0.0
    %3327 = vmatprep.subr.mxu0 0.0
    %3328 = vmatpush1.msra.mxu0 0.0
    %3329 = vmatprep.subr.mxu0 0.0
    %3330 = vmatpush1.msra.mxu0 0.0
    %3331 = vmatprep.subr.mxu0 0.0
    %3332 = vmatpush1.msra.mxu0 0.0
    %3333 = vmatprep.subr.mxu0 0.0
    %3334 = vmatpush1.msra.mxu0 0.0
    %3335 = vmatprep.subr.mxu0 0.0
    %3336 = vmatpush1.msra.mxu0 0.0
    %3337 = vmatprep.subr.mxu0 0.0
    %3338 = vmatpush1.msra.mxu0 0.0
    %3339 = vmatprep.subr.mxu0 0.0
    %3340 = vmatpush1.msra.mxu0 0.0
    %3341 = vmatprep.subr.mxu0 0.0
    %3342 = vmatpush1.msra.mxu0 0.0
    %3343 = vmatprep.subr.mxu0 0.0
    %3344 = vmatpush1.msra.mxu0 0.0
    %3345 = vmatprep.subr.mxu0 0.0
    %3346 = vmatpush1.msra.mxu0 0.0
    %3347 = vmatprep.subr.mxu0 0.0
    %3348 = vmatpush1.msra.mxu0 0.0
    %3349 = vmatprep.subr.mxu0 0.0
    %3350 = vmatpush1.msra.mxu0 0.0
    %3351 = vmatprep.subr.mxu0 0.0
    %3352 = vmatpush1.msra.mxu0 0.0
    %3353 = vmatprep.subr.mxu0 0.0
    %3354 = vmatpush1.msra.mxu0 0.0
    %3355 = vmatprep.mubr.f32.mxu0 0.0
    %3356 = vmatmul.mubr.f32.gmra.mrb[0].mxu0 %v3289
    %v3357 = vpop.f32.mrb[0].mxu0
    %v3358 = vadd.f32 0.0, %v3357
    %v3359 = vpop.f32.mrb[0].mxu0
    %3360 = vdwg.mxu0
    %3361 = vrot.lane.b32.xlu0 %v2167, 96
    %v3362 = vpop.permute.xlu0 %3361
    %3363 = vrot.lane.b32.xlu0 %v2169, 96
    %v3364 = vpop.permute.xlu0 %3363
    %v3368 = vsel %vm2798, %v2885, 0
    %3370 = vmatprep.subr.mxu0 0.0
    %3371 = vmatpush1.msra.mxu0 %v3362
    %3372 = vmatprep.subr.mxu0 0.0
    %3373 = vmatpush1.msra.mxu0 %v3364
    %3374 = vmatprep.subr.mxu0 0.0
    %3375 = vmatpush1.msra.mxu0 0.0
    %3376 = vmatprep.subr.mxu0 0.0
    %3377 = vmatpush1.msra.mxu0 0.0
    %3378 = vmatprep.subr.mxu0 0.0
    %3379 = vmatpush1.msra.mxu0 0.0
    %3380 = vmatprep.subr.mxu0 0.0
    %3381 = vmatpush1.msra.mxu0 0.0
    %3382 = vmatprep.subr.mxu0 0.0
    %3383 = vmatpush1.msra.mxu0 0.0
    %3384 = vmatprep.subr.mxu0 0.0
    %3385 = vmatpush1.msra.mxu0 0.0
    %3386 = vmatprep.subr.mxu0 0.0
    %3387 = vmatpush1.msra.mxu0 0.0
    %3388 = vmatprep.subr.mxu0 0.0
    %3389 = vmatpush1.msra.mxu0 0.0
    %3390 = vmatprep.subr.mxu0 0.0
    %3391 = vmatpush1.msra.mxu0 0.0
    %3392 = vmatprep.subr.mxu0 0.0
    %3393 = vmatpush1.msra.mxu0 0.0
    %3394 = vmatprep.subr.mxu0 0.0
    %3395 = vmatpush1.msra.mxu0 0.0
    %3396 = vmatprep.subr.mxu0 0.0
    %3397 = vmatpush1.msra.mxu0 0.0
    %3398 = vmatprep.subr.mxu0 0.0
    %3399 = vmatpush1.msra.mxu0 0.0
    %3400 = vmatprep.subr.mxu0 0.0
    %3401 = vmatpush1.msra.mxu0 0.0
    %3402 = vmatprep.subr.mxu0 0.0
    %3403 = vmatpush1.msra.mxu0 0.0
    %3404 = vmatprep.subr.mxu0 0.0
    %3405 = vmatpush1.msra.mxu0 0.0
    %3406 = vmatprep.subr.mxu0 0.0
    %3407 = vmatpush1.msra.mxu0 0.0
    %3408 = vmatprep.subr.mxu0 0.0
    %3409 = vmatpush1.msra.mxu0 0.0
    %3410 = vmatprep.subr.mxu0 0.0
    %3411 = vmatpush1.msra.mxu0 0.0
    %3412 = vmatprep.subr.mxu0 0.0
    %3413 = vmatpush1.msra.mxu0 0.0
    %3414 = vmatprep.subr.mxu0 0.0
    %3415 = vmatpush1.msra.mxu0 0.0
    %3416 = vmatprep.subr.mxu0 0.0
    %3417 = vmatpush1.msra.mxu0 0.0
    %3418 = vmatprep.subr.mxu0 0.0
    %3419 = vmatpush1.msra.mxu0 0.0
    %3420 = vmatprep.subr.mxu0 0.0
    %3421 = vmatpush1.msra.mxu0 0.0
    %3422 = vmatprep.subr.mxu0 0.0
    %3423 = vmatpush1.msra.mxu0 0.0
    %3424 = vmatprep.subr.mxu0 0.0
    %3425 = vmatpush1.msra.mxu0 0.0
    %3426 = vmatprep.subr.mxu0 0.0
    %3427 = vmatpush1.msra.mxu0 0.0
    %3428 = vmatprep.subr.mxu0 0.0
    %3429 = vmatpush1.msra.mxu0 0.0
    %3430 = vmatprep.subr.mxu0 0.0
    %3431 = vmatpush1.msra.mxu0 0.0
    %3432 = vmatprep.subr.mxu0 0.0
    %3433 = vmatpush1.msra.mxu0 0.0
    %3434 = vmatprep.mubr.f32.mxu0 0.0
    %3435 = vmatmul.mubr.f32.gmra.mrb[0].mxu0 %v3368
    %v3436 = vpop.f32.mrb[0].mxu0
    %v3437 = vadd.f32 0.0, %v3436
    %v3438 = vpop.f32.mrb[0].mxu0
    %3439 = vdwg.mxu0
    %3440 = vrot.lane.b32.xlu0 %v2171, 96
    %v3441 = vpop.permute.xlu0 %3440
    %3442 = vrot.lane.b32.xlu0 %v2173, 96
    %v3443 = vpop.permute.xlu0 %3442
    %v3447 = vsel %vm2798, %v2886, 0
    %3449 = vmatprep.subr.mxu0 0.0
    %3450 = vmatpush1.msra.mxu0 %v3441
    %3451 = vmatprep.subr.mxu0 0.0
    %3452 = vmatpush1.msra.mxu0 %v3443
    %3453 = vmatprep.subr.mxu0 0.0
    %3454 = vmatpush1.msra.mxu0 0.0
    %3455 = vmatprep.subr.mxu0 0.0
    %3456 = vmatpush1.msra.mxu0 0.0
    %3457 = vmatprep.subr.mxu0 0.0
    %3458 = vmatpush1.msra.mxu0 0.0
    %3459 = vmatprep.subr.mxu0 0.0
    %3460 = vmatpush1.msra.mxu0 0.0
    %3461 = vmatprep.subr.mxu0 0.0
    %3462 = vmatpush1.msra.mxu0 0.0
    %3463 = vmatprep.subr.mxu0 0.0
    %3464 = vmatpush1.msra.mxu0 0.0
    %3465 = vmatprep.subr.mxu0 0.0
    %3466 = vmatpush1.msra.mxu0 0.0
    %3467 = vmatprep.subr.mxu0 0.0
    %3468 = vmatpush1.msra.mxu0 0.0
    %3469 = vmatprep.subr.mxu0 0.0
    %3470 = vmatpush1.msra.mxu0 0.0
    %3471 = vmatprep.subr.mxu0 0.0
    %3472 = vmatpush1.msra.mxu0 0.0
    %3473 = vmatprep.subr.mxu0 0.0
    %3474 = vmatpush1.msra.mxu0 0.0
    %3475 = vmatprep.subr.mxu0 0.0
    %3476 = vmatpush1.msra.mxu0 0.0
    %3477 = vmatprep.subr.mxu0 0.0
    %3478 = vmatpush1.msra.mxu0 0.0
    %3479 = vmatprep.subr.mxu0 0.0
    %3480 = vmatpush1.msra.mxu0 0.0
    %3481 = vmatprep.subr.mxu0 0.0
    %3482 = vmatpush1.msra.mxu0 0.0
    %3483 = vmatprep.subr.mxu0 0.0
    %3484 = vmatpush1.msra.mxu0 0.0
    %3485 = vmatprep.subr.mxu0 0.0
    %3486 = vmatpush1.msra.mxu0 0.0
    %3487 = vmatprep.subr.mxu0 0.0
    %3488 = vmatpush1.msra.mxu0 0.0
    %3489 = vmatprep.subr.mxu0 0.0
    %3490 = vmatpush1.msra.mxu0 0.0
    %3491 = vmatprep.subr.mxu0 0.0
    %3492 = vmatpush1.msra.mxu0 0.0
    %3493 = vmatprep.subr.mxu0 0.0
    %3494 = vmatpush1.msra.mxu0 0.0
    %3495 = vmatprep.subr.mxu0 0.0
    %3496 = vmatpush1.msra.mxu0 0.0
    %3497 = vmatprep.subr.mxu0 0.0
    %3498 = vmatpush1.msra.mxu0 0.0
    %3499 = vmatprep.subr.mxu0 0.0
    %3500 = vmatpush1.msra.mxu0 0.0
    %3501 = vmatprep.subr.mxu0 0.0
    %3502 = vmatpush1.msra.mxu0 0.0
    %3503 = vmatprep.subr.mxu0 0.0
    %3504 = vmatpush1.msra.mxu0 0.0
    %3505 = vmatprep.subr.mxu0 0.0
    %3506 = vmatpush1.msra.mxu0 0.0
    %3507 = vmatprep.subr.mxu0 0.0
    %3508 = vmatpush1.msra.mxu0 0.0
    %3509 = vmatprep.subr.mxu0 0.0
    %3510 = vmatpush1.msra.mxu0 0.0
    %3511 = vmatprep.subr.mxu0 0.0
    %3512 = vmatpush1.msra.mxu0 0.0
    %3513 = vmatprep.mubr.f32.mxu0 0.0
    %3514 = vmatmul.mubr.f32.gmra.mrb[0].mxu0 %v3447
    %v3515 = vpop.f32.mrb[0].mxu0
    %v3516 = vadd.f32 0.0, %v3515
    %v3517 = vpop.f32.mrb[0].mxu0
    %3518 = vdwg.mxu0
    %v3520 = vsel %vm214, %v2963, 0
    %v3523 = vsel %vm214, %v3042, 0
    %3525 = vmatprep.subr.mxu0 0.0
    %3526 = vmatpush1.msra.mxu0 %v2127
    %3527 = vmatprep.subr.mxu0 0.0
    %3528 = vmatpush1.msra.mxu0 0.0
    %3529 = vmatprep.subr.mxu0 0.0
    %3530 = vmatpush1.msra.mxu0 0.0
    %3531 = vmatprep.subr.mxu0 0.0
    %3532 = vmatpush1.msra.mxu0 0.0
    %3533 = vmatprep.subr.mxu0 0.0
    %3534 = vmatpush1.msra.mxu0 0.0
    %3535 = vmatprep.subr.mxu0 0.0
    %3536 = vmatpush1.msra.mxu0 0.0
    %3537 = vmatprep.subr.mxu0 0.0
    %3538 = vmatpush1.msra.mxu0 0.0
    %3539 = vmatprep.subr.mxu0 0.0
    %3540 = vmatpush1.msra.mxu0 0.0
    %3541 = vmatprep.subr.mxu0 0.0
    %3542 = vmatpush1.msra.mxu0 0.0
    %3543 = vmatprep.subr.mxu0 0.0
    %3544 = vmatpush1.msra.mxu0 0.0
    %3545 = vmatprep.subr.mxu0 0.0
    %3546 = vmatpush1.msra.mxu0 0.0
    %3547 = vmatprep.subr.mxu0 0.0
    %3548 = vmatpush1.msra.mxu0 0.0
    %3549 = vmatprep.subr.mxu0 0.0
    %3550 = vmatpush1.msra.mxu0 0.0
    %3551 = vmatprep.subr.mxu0 0.0
    %3552 = vmatpush1.msra.mxu0 0.0
    %3553 = vmatprep.subr.mxu0 0.0
    %3554 = vmatpush1.msra.mxu0 0.0
    %3555 = vmatprep.subr.mxu0 0.0
    %3556 = vmatpush1.msra.mxu0 0.0
    %3557 = vmatprep.subr.mxu0 0.0
    %3558 = vmatpush1.msra.mxu0 0.0
    %3559 = vmatprep.subr.mxu0 0.0
    %3560 = vmatpush1.msra.mxu0 0.0
    %3561 = vmatprep.subr.mxu0 0.0
    %3562 = vmatpush1.msra.mxu0 0.0
    %3563 = vmatprep.subr.mxu0 0.0
    %3564 = vmatpush1.msra.mxu0 0.0
    %3565 = vmatprep.subr.mxu0 0.0
    %3566 = vmatpush1.msra.mxu0 0.0
    %3567 = vmatprep.subr.mxu0 0.0
    %3568 = vmatpush1.msra.mxu0 0.0
    %3569 = vmatprep.subr.mxu0 0.0
    %3570 = vmatpush1.msra.mxu0 0.0
    %3571 = vmatprep.subr.mxu0 0.0
    %3572 = vmatpush1.msra.mxu0 0.0
    %3573 = vmatprep.subr.mxu0 0.0
    %3574 = vmatpush1.msra.mxu0 0.0
    %3575 = vmatprep.subr.mxu0 0.0
    %3576 = vmatpush1.msra.mxu0 0.0
    %3577 = vmatprep.subr.mxu0 0.0
    %3578 = vmatpush1.msra.mxu0 0.0
    %3579 = vmatprep.subr.mxu0 0.0
    %3580 = vmatpush1.msra.mxu0 0.0
    %3581 = vmatprep.subr.mxu0 0.0
    %3582 = vmatpush1.msra.mxu0 0.0
    %3583 = vmatprep.subr.mxu0 0.0
    %3584 = vmatpush1.msra.mxu0 0.0
    %3585 = vmatprep.subr.mxu0 0.0
    %3586 = vmatpush1.msra.mxu0 0.0
    %3587 = vmatprep.subr.mxu0 0.0
    %3588 = vmatpush1.msra.mxu0 0.0
    %3589 = vmatprep.mubr.f32.mxu0 0.0
    %3590 = vmatmul.mubr.f32.gmra.mrb[0].mxu0 %v3520
    %v3591 = vpop.f32.mrb[0].mxu0
    %v3592 = vadd.f32 0.0, %v3591
    %v3593 = vpop.f32.mrb[0].mxu0
    %3594 = vmatprep.mubr.f32.mxu0 0.0
    %3595 = vmatmul.mubr.f32.gmra.mrb[0].mxu0 %v3523
    %v3596 = vpop.f32.mrb[0].mxu0
    %v3597 = vadd.f32 0.0, %v3596
    %v3598 = vpop.f32.mrb[0].mxu0
    %3599 = vdwg.mxu0
    %v3601 = vsel %vm214, %v3121, 0
    %v3604 = vsel %vm214, %v3200, 0
    %3606 = vmatprep.subr.mxu0 0.0
    %3607 = vmatpush1.msra.mxu0 %v2128
    %3608 = vmatprep.subr.mxu0 0.0
    %3609 = vmatpush1.msra.mxu0 0.0
    %3610 = vmatprep.subr.mxu0 0.0
    %3611 = vmatpush1.msra.mxu0 0.0
    %3612 = vmatprep.subr.mxu0 0.0
    %3613 = vmatpush1.msra.mxu0 0.0
    %3614 = vmatprep.subr.mxu0 0.0
    %3615 = vmatpush1.msra.mxu0 0.0
    %3616 = vmatprep.subr.mxu0 0.0
    %3617 = vmatpush1.msra.mxu0 0.0
    %3618 = vmatprep.subr.mxu0 0.0
    %3619 = vmatpush1.msra.mxu0 0.0
    %3620 = vmatprep.subr.mxu0 0.0
    %3621 = vmatpush1.msra.mxu0 0.0
    %3622 = vmatprep.subr.mxu0 0.0
    %3623 = vmatpush1.msra.mxu0 0.0
    %3624 = vmatprep.subr.mxu0 0.0
    %3625 = vmatpush1.msra.mxu0 0.0
    %3626 = vmatprep.subr.mxu0 0.0
    %3627 = vmatpush1.msra.mxu0 0.0
    %3628 = vmatprep.subr.mxu0 0.0
    %3629 = vmatpush1.msra.mxu0 0.0
    %3630 = vmatprep.subr.mxu0 0.0
    %3631 = vmatpush1.msra.mxu0 0.0
    %3632 = vmatprep.subr.mxu0 0.0
    %3633 = vmatpush1.msra.mxu0 0.0
    %3634 = vmatprep.subr.mxu0 0.0
    %3635 = vmatpush1.msra.mxu0 0.0
    %3636 = vmatprep.subr.mxu0 0.0
    %3637 = vmatpush1.msra.mxu0 0.0
    %3638 = vmatprep.subr.mxu0 0.0
    %3639 = vmatpush1.msra.mxu0 0.0
    %3640 = vmatprep.subr.mxu0 0.0
    %3641 = vmatpush1.msra.mxu0 0.0
    %3642 = vmatprep.subr.mxu0 0.0
    %3643 = vmatpush1.msra.mxu0 0.0
    %3644 = vmatprep.subr.mxu0 0.0
    %3645 = vmatpush1.msra.mxu0 0.0
    %3646 = vmatprep.subr.mxu0 0.0
    %3647 = vmatpush1.msra.mxu0 0.0
    %3648 = vmatprep.subr.mxu0 0.0
    %3649 = vmatpush1.msra.mxu0 0.0
    %3650 = vmatprep.subr.mxu0 0.0
    %3651 = vmatpush1.msra.mxu0 0.0
    %3652 = vmatprep.subr.mxu0 0.0
    %3653 = vmatpush1.msra.mxu0 0.0
    %3654 = vmatprep.subr.mxu0 0.0
    %3655 = vmatpush1.msra.mxu0 0.0
    %3656 = vmatprep.subr.mxu0 0.0
    %3657 = vmatpush1.msra.mxu0 0.0
    %3658 = vmatprep.subr.mxu0 0.0
    %3659 = vmatpush1.msra.mxu0 0.0
    %3660 = vmatprep.subr.mxu0 0.0
    %3661 = vmatpush1.msra.mxu0 0.0
    %3662 = vmatprep.subr.mxu0 0.0
    %3663 = vmatpush1.msra.mxu0 0.0
    %3664 = vmatprep.subr.mxu0 0.0
    %3665 = vmatpush1.msra.mxu0 0.0
    %3666 = vmatprep.subr.mxu0 0.0
    %3667 = vmatpush1.msra.mxu0 0.0
    %3668 = vmatprep.subr.mxu0 0.0
    %3669 = vmatpush1.msra.mxu0 0.0
    %3670 = vmatprep.mubr.f32.mxu0 0.0
    %3671 = vmatmul.mubr.f32.gmra.mrb[0].mxu0 %v3601
    %v3672 = vpop.f32.mrb[0].mxu0
    %v3673 = vadd.f32 0.0, %v3672
    %v3674 = vpop.f32.mrb[0].mxu0
    %3675 = vmatprep.mubr.f32.mxu0 0.0
    %3676 = vmatmul.mubr.f32.gmra.mrb[0].mxu0 %v3604
    %v3677 = vpop.f32.mrb[0].mxu0
    %v3678 = vadd.f32 0.0, %v3677
    %v3679 = vpop.f32.mrb[0].mxu0
    %3680 = vdwg.mxu0
    %v3682 = vsel %vm214, %v3279, 0
    %v3685 = vsel %vm214, %v3358, 0
    %3687 = vmatprep.subr.mxu0 0.0
    %3688 = vmatpush1.msra.mxu0 %v2129
    %3689 = vmatprep.subr.mxu0 0.0
    %3690 = vmatpush1.msra.mxu0 0.0
    %3691 = vmatprep.subr.mxu0 0.0
    %3692 = vmatpush1.msra.mxu0 0.0
    %3693 = vmatprep.subr.mxu0 0.0
    %3694 = vmatpush1.msra.mxu0 0.0
    %3695 = vmatprep.subr.mxu0 0.0
    %3696 = vmatpush1.msra.mxu0 0.0
    %3697 = vmatprep.subr.mxu0 0.0
    %3698 = vmatpush1.msra.mxu0 0.0
    %3699 = vmatprep.subr.mxu0 0.0
    %3700 = vmatpush1.msra.mxu0 0.0
    %3701 = vmatprep.subr.mxu0 0.0
    %3702 = vmatpush1.msra.mxu0 0.0
    %3703 = vmatprep.subr.mxu0 0.0
    %3704 = vmatpush1.msra.mxu0 0.0
    %3705 = vmatprep.subr.mxu0 0.0
    %3706 = vmatpush1.msra.mxu0 0.0
    %3707 = vmatprep.subr.mxu0 0.0
    %3708 = vmatpush1.msra.mxu0 0.0
    %3709 = vmatprep.subr.mxu0 0.0
    %3710 = vmatpush1.msra.mxu0 0.0
    %3711 = vmatprep.subr.mxu0 0.0
    %3712 = vmatpush1.msra.mxu0 0.0
    %3713 = vmatprep.subr.mxu0 0.0
    %3714 = vmatpush1.msra.mxu0 0.0
    %3715 = vmatprep.subr.mxu0 0.0
    %3716 = vmatpush1.msra.mxu0 0.0
    %3717 = vmatprep.subr.mxu0 0.0
    %3718 = vmatpush1.msra.mxu0 0.0
    %3719 = vmatprep.subr.mxu0 0.0
    %3720 = vmatpush1.msra.mxu0 0.0
    %3721 = vmatprep.subr.mxu0 0.0
    %3722 = vmatpush1.msra.mxu0 0.0
    %3723 = vmatprep.subr.mxu0 0.0
    %3724 = vmatpush1.msra.mxu0 0.0
    %3725 = vmatprep.subr.mxu0 0.0
    %3726 = vmatpush1.msra.mxu0 0.0
    %3727 = vmatprep.subr.mxu0 0.0
    %3728 = vmatpush1.msra.mxu0 0.0
    %3729 = vmatprep.subr.mxu0 0.0
    %3730 = vmatpush1.msra.mxu0 0.0
    %3731 = vmatprep.subr.mxu0 0.0
    %3732 = vmatpush1.msra.mxu0 0.0
    %3733 = vmatprep.subr.mxu0 0.0
    %3734 = vmatpush1.msra.mxu0 0.0
    %3735 = vmatprep.subr.mxu0 0.0
    %3736 = vmatpush1.msra.mxu0 0.0
    %3737 = vmatprep.subr.mxu0 0.0
    %3738 = vmatpush1.msra.mxu0 0.0
    %3739 = vmatprep.subr.mxu0 0.0
    %3740 = vmatpush1.msra.mxu0 0.0
    %3741 = vmatprep.subr.mxu0 0.0
    %3742 = vmatpush1.msra.mxu0 0.0
    %3743 = vmatprep.subr.mxu0 0.0
    %3744 = vmatpush1.msra.mxu0 0.0
    %3745 = vmatprep.subr.mxu0 0.0
    %3746 = vmatpush1.msra.mxu0 0.0
    %3747 = vmatprep.subr.mxu0 0.0
    %3748 = vmatpush1.msra.mxu0 0.0
    %3749 = vmatprep.subr.mxu0 0.0
    %3750 = vmatpush1.msra.mxu0 0.0
    %3751 = vmatprep.mubr.f32.mxu0 0.0
    %3752 = vmatmul.mubr.f32.gmra.mrb[0].mxu0 %v3682
    %v3753 = vpop.f32.mrb[0].mxu0
    %v3754 = vadd.f32 0.0, %v3753
    %v3755 = vpop.f32.mrb[0].mxu0
    %3756 = vmatprep.mubr.f32.mxu0 0.0
    %3757 = vmatmul.mubr.f32.gmra.mrb[0].mxu0 %v3685
    %v3758 = vpop.f32.mrb[0].mxu0
    %v3759 = vadd.f32 0.0, %v3758
    %v3760 = vpop.f32.mrb[0].mxu0
    %3761 = vdwg.mxu0
    %v3763 = vsel %vm214, %v3437, 0
    %v3766 = vsel %vm214, %v3516, 0
    %3768 = vmatprep.subr.mxu0 0.0
    %3769 = vmatpush1.msra.mxu0 %v2130
    %3770 = vmatprep.subr.mxu0 0.0
    %3771 = vmatpush1.msra.mxu0 0.0
    %3772 = vmatprep.subr.mxu0 0.0
    %3773 = vmatpush1.msra.mxu0 0.0
    %3774 = vmatprep.subr.mxu0 0.0
    %3775 = vmatpush1.msra.mxu0 0.0
    %3776 = vmatprep.subr.mxu0 0.0
    %3777 = vmatpush1.msra.mxu0 0.0
    %3778 = vmatprep.subr.mxu0 0.0
    %3779 = vmatpush1.msra.mxu0 0.0
    %3780 = vmatprep.subr.mxu0 0.0
    %3781 = vmatpush1.msra.mxu0 0.0
    %3782 = vmatprep.subr.mxu0 0.0
    %3783 = vmatpush1.msra.mxu0 0.0
    %3784 = vmatprep.subr.mxu0 0.0
    %3785 = vmatpush1.msra.mxu0 0.0
    %3786 = vmatprep.subr.mxu0 0.0
    %3787 = vmatpush1.msra.mxu0 0.0
    %3788 = vmatprep.subr.mxu0 0.0
    %3789 = vmatpush1.msra.mxu0 0.0
    %3790 = vmatprep.subr.mxu0 0.0
    %3791 = vmatpush1.msra.mxu0 0.0
    %3792 = vmatprep.subr.mxu0 0.0
    %3793 = vmatpush1.msra.mxu0 0.0
    %3794 = vmatprep.subr.mxu0 0.0
    %3795 = vmatpush1.msra.mxu0 0.0
    %3796 = vmatprep.subr.mxu0 0.0
    %3797 = vmatpush1.msra.mxu0 0.0
    %3798 = vmatprep.subr.mxu0 0.0
    %3799 = vmatpush1.msra.mxu0 0.0
    %3800 = vmatprep.subr.mxu0 0.0
    %3801 = vmatpush1.msra.mxu0 0.0
    %3802 = vmatprep.subr.mxu0 0.0
    %3803 = vmatpush1.msra.mxu0 0.0
    %3804 = vmatprep.subr.mxu0 0.0
    %3805 = vmatpush1.msra.mxu0 0.0
    %3806 = vmatprep.subr.mxu0 0.0
    %3807 = vmatpush1.msra.mxu0 0.0
    %3808 = vmatprep.subr.mxu0 0.0
    %3809 = vmatpush1.msra.mxu0 0.0
    %3810 = vmatprep.subr.mxu0 0.0
    %3811 = vmatpush1.msra.mxu0 0.0
    %3812 = vmatprep.subr.mxu0 0.0
    %3813 = vmatpush1.msra.mxu0 0.0
    %3814 = vmatprep.subr.mxu0 0.0
    %3815 = vmatpush1.msra.mxu0 0.0
    %3816 = vmatprep.subr.mxu0 0.0
    %3817 = vmatpush1.msra.mxu0 0.0
    %3818 = vmatprep.subr.mxu0 0.0
    %3819 = vmatpush1.msra.mxu0 0.0
    %3820 = vmatprep.subr.mxu0 0.0
    %3821 = vmatpush1.msra.mxu0 0.0
    %3822 = vmatprep.subr.mxu0 0.0
    %3823 = vmatpush1.msra.mxu0 0.0
    %3824 = vmatprep.subr.mxu0 0.0
    %3825 = vmatpush1.msra.mxu0 0.0
    %3826 = vmatprep.subr.mxu0 0.0
    %3827 = vmatpush1.msra.mxu0 0.0
    %3828 = vmatprep.subr.mxu0 0.0
    %3829 = vmatpush1.msra.mxu0 0.0
    %3830 = vmatprep.subr.mxu0 0.0
    %3831 = vmatpush1.msra.mxu0 0.0
    %3832 = vmatprep.mubr.f32.mxu0 0.0
    %3833 = vmatmul.mubr.f32.gmra.mrb[0].mxu0 %v3763
    %v3834 = vpop.f32.mrb[0].mxu0
    %v3835 = vadd.f32 0.0, %v3834
    %v3836 = vpop.f32.mrb[0].mxu0
    %3837 = vmatprep.mubr.f32.mxu0 0.0
    %3838 = vmatmul.mubr.f32.gmra.mrb[0].mxu0 %v3766
    %v3839 = vpop.f32.mrb[0].mxu0
    %v3840 = vadd.f32 0.0, %v3839
    %v3841 = vpop.f32.mrb[0].mxu0
    %3842 = vdwg.mxu0
    %v3843 = vsel %vm111, %v3592, 0.0
    %v3844 = vsel %vm111, %v3673, 0.0
    %v3845 = vadd.f32 %v3843, %v3844
    %v3846 = vsel %vm111, %v3754, 0.0
    %v3847 = vadd.f32 %v3845, %v3846
    %v3848 = vsel %vm111, %v3835, 0.0
    %v3849 = vadd.f32 %v3847, %v3848
    %v3850 = vsel %vm111, %v3597, 0.0
    %v3851 = vsel %vm111, %v3678, 0.0
    %v3852 = vadd.f32 %v3850, %v3851
    %v3853 = vsel %vm111, %v3759, 0.0
    %v3854 = vadd.f32 %v3852, %v3853
    %v3855 = vsel %vm111, %v3840, 0.0
    %v3856 = vadd.f32 %v3854, %v3855
    %v3857 = vlaneseq
    %v3858 = vshrl.u32 %v3857, 7
    %v3859 = vsub.s32 0, %v3858
    %v3860 = vrot.slane %v2131, %v3859
    %v3861 = vadd.f32 %v3849, %v3860
    %v3862 = vadd.f32 %v3856, %v3860
    %v3863 = vadd.f32 %v1918, %v3861
    %v3864 = vadd.f32 %v1919, %v3862
    %v3865 = vld [vmem:[%s5 + $0x8] sm:$0x1]
    %v3866 = vld [vmem:[%s5 + $0x9] sm:$0x1]
    %v3867 = vsel %vm111, %v3863, 0.0
    %3868 = vadd.xlane.f32.xlu0 %v3867
    %v3869 = vpop.xlane.xlu0 %3868
    %v3870 = vsel %vm111, %v3864, 0.0
    %3871 = vadd.xlane.f32.xlu0 %v3870
    %v3872 = vpop.xlane.xlu0 %3871
    %v3873 = vmul.f32 %v3869, %v1887
    %v3874 = vmul.f32 %v3872, %v1887
    %v3875 = vsub.f32 %v3863, %v3873
    %v3876 = vsub.f32 %v3864, %v3874
    %v3877 = vmul.f32 %v3875, %v3875
    %v3878 = vmul.f32 %v3876, %v3876
    %v3879 = vsel %vm111, %v3877, 0.0
    %3880 = vadd.xlane.f32.xlu0 %v3879
    %v3881 = vpop.xlane.xlu0 %3880
    %v3882 = vsel %vm111, %v3878, 0.0
    %3883 = vadd.xlane.f32.xlu0 %v3882
    %v3884 = vpop.xlane.xlu0 %3883
    %v3885 = vmul.f32 %v3881, %v1887
    %v3886 = vmul.f32 %v3884, %v1887
    %v3887 = vlaneseq
    %v3888 = vshrl.u32 %v3887, 7
    %v3889 = vsub.s32 0, %v3888
    %v3890 = vrot.slane %v3865, %v3889
    %v3891 = vmul.f32 %v3890, %v3875
    %v3892 = vmul.f32 %v3890, %v3876
    %v3893 = vadd.f32 %v3885, 1e-06
    %v3894 = vadd.f32 %v3886, 1e-06
    %v3895 = vrsqrt.pop %v3893
    %v3896 = vrsqrt.pop %v3894
    %v3897 = vmul.f32 %v3891, %v3895
    %v3898 = vmul.f32 %v3892, %v3896
    %v3899 = vlaneseq
    %v3900 = vshrl.u32 %v3899, 7
    %v3901 = vsub.s32 0, %v3900
    %v3902 = vrot.slane %v3866, %v3901
    %v3903 = vadd.f32 %v3897, %v3902
    %v3904 = vadd.f32 %v3898, %v3902
    %v3905 = vld [vmem:[#allocation10 + $0x80] sm:$0xff]
    %v3906 = vld [vmem:[#allocation10 + $0x88] sm:$0xff]
    %v3907 = vld [vmem:[#allocation10 + $0x90] sm:$0xff]
    %v3908 = vld [vmem:[#allocation10 + $0x98] sm:$0xff]
    %v3909 = vld [vmem:[%s5 + $0x4] sm:$0x1]
    %v3910 = vlaneseq
    %v3911 = vshrl.u32 %v3910, 7
    %v3912 = vsub.s32 0, %v3911
    %v3913 = vrot.slane %v3909, %v3912
    %v3915 = vsel %vm111, %v3903, 0
    %v3918 = vsel %vm111, %v3904, 0
    %3920 = vmatprep.subr.mxu0 0.0
    %3921 = vmatpush1.msra.mxu0 %v3905
    %3922 = vmatprep.subr.mxu0 0.0
    %3923 = vmatpush1.msra.mxu0 %v3906
    %3924 = vmatprep.subr.mxu0 0.0
    %3925 = vmatpush1.msra.mxu0 %v3907
    %3926 = vmatprep.subr.mxu0 0.0
    %3927 = vmatpush1.msra.mxu0 %v3908
    %3928 = vmatprep.subr.mxu0 0.0
    %3929 = vmatpush1.msra.mxu0 0.0
    %3930 = vmatprep.subr.mxu0 0.0
    %3931 = vmatpush1.msra.mxu0 0.0
    %3932 = vmatprep.subr.mxu0 0.0
    %3933 = vmatpush1.msra.mxu0 0.0
    %3934 = vmatprep.subr.mxu0 0.0
    %3935 = vmatpush1.msra.mxu0 0.0
    %3936 = vmatprep.subr.mxu0 0.0
    %3937 = vmatpush1.msra.mxu0 0.0
    %3938 = vmatprep.subr.mxu0 0.0
    %3939 = vmatpush1.msra.mxu0 0.0
    %3940 = vmatprep.subr.mxu0 0.0
    %3941 = vmatpush1.msra.mxu0 0.0
    %3942 = vmatprep.subr.mxu0 0.0
    %3943 = vmatpush1.msra.mxu0 0.0
    %3944 = vmatprep.subr.mxu0 0.0
    %3945 = vmatpush1.msra.mxu0 0.0
    %3946 = vmatprep.subr.mxu0 0.0
    %3947 = vmatpush1.msra.mxu0 0.0
    %3948 = vmatprep.subr.mxu0 0.0
    %3949 = vmatpush1.msra.mxu0 0.0
    %3950 = vmatprep.subr.mxu0 0.0
    %3951 = vmatpush1.msra.mxu0 0.0
    %3952 = vmatprep.subr.mxu0 0.0
    %3953 = vmatpush1.msra.mxu0 0.0
    %3954 = vmatprep.subr.mxu0 0.0
    %3955 = vmatpush1.msra.mxu0 0.0
    %3956 = vmatprep.subr.mxu0 0.0
    %3957 = vmatpush1.msra.mxu0 0.0
    %3958 = vmatprep.subr.mxu0 0.0
    %3959 = vmatpush1.msra.mxu0 0.0
    %3960 = vmatprep.subr.mxu0 0.0
    %3961 = vmatpush1.msra.mxu0 0.0
    %3962 = vmatprep.subr.mxu0 0.0
    %3963 = vmatpush1.msra.mxu0 0.0
    %3964 = vmatprep.subr.mxu0 0.0
    %3965 = vmatpush1.msra.mxu0 0.0
    %3966 = vmatprep.subr.mxu0 0.0
    %3967 = vmatpush1.msra.mxu0 0.0
    %3968 = vmatprep.subr.mxu0 0.0
    %3969 = vmatpush1.msra.mxu0 0.0
    %3970 = vmatprep.subr.mxu0 0.0
    %3971 = vmatpush1.msra.mxu0 0.0
    %3972 = vmatprep.subr.mxu0 0.0
    %3973 = vmatpush1.msra.mxu0 0.0
    %3974 = vmatprep.subr.mxu0 0.0
    %3975 = vmatpush1.msra.mxu0 0.0
    %3976 = vmatprep.subr.mxu0 0.0
    %3977 = vmatpush1.msra.mxu0 0.0
    %3978 = vmatprep.subr.mxu0 0.0
    %3979 = vmatpush1.msra.mxu0 0.0
    %3980 = vmatprep.subr.mxu0 0.0
    %3981 = vmatpush1.msra.mxu0 0.0
    %3982 = vmatprep.subr.mxu0 0.0
    %3983 = vmatpush1.msra.mxu0 0.0
    %3984 = vmatprep.mubr.f32.mxu0 0.0
    %3985 = vmatmul.mubr.f32.gmra.mrb[0].mxu0 %v3915
    %v3986 = vpop.f32.mrb[0].mxu0
    %v3987 = vadd.f32 %v3913, %v3986
    %v3988 = vpop.f32.mrb[0].mxu0
    %3989 = vmatprep.mubr.f32.mxu0 0.0
    %3990 = vmatmul.mubr.f32.gmra.mrb[0].mxu0 %v3918
    %v3991 = vpop.f32.mrb[0].mxu0
    %v3992 = vadd.f32 %v3913, %v3991
    %v3993 = vpop.f32.mrb[0].mxu0
    %3994 = vdwg.mxu0
    %v3995 = vmax.f32 %v3987, 0.0
    %v3996 = vmax.f32 %v3992, 0.0
    %v3997 = vld [vmem:[#allocation10 + $0xa0] sm:$0xff]
    %v3998 = vld [vmem:[#allocation10 + $0xa8] sm:$0xff]
    %v3999 = vld [vmem:[#allocation10 + $0xb0] sm:$0xff]
    %v4000 = vld [vmem:[#allocation10 + $0xb8] sm:$0xff]
    %v4001 = vld [vmem:[#allocation10 + $0xc0] sm:$0xff]
    %v4002 = vld [vmem:[#allocation10 + $0xc8] sm:$0xff]
    %v4003 = vld [vmem:[#allocation10 + $0xd0] sm:$0xff]
    %v4004 = vld [vmem:[#allocation10 + $0xd8] sm:$0xff]
    %v4005 = vld [vmem:[%s5 + $0x5] sm:$0x1]
    %v4006 = vlaneseq
    %v4007 = vshrl.u32 %v4006, 7
    %v4008 = vsub.s32 0, %v4007
    %v4009 = vrot.slane %v4005, %v4008
    %vm4010 = vcmask 523264
    %v4012 = vsel %vm4010, %v3995, 0
    %v4015 = vsel %vm4010, %v3996, 0
    %4017 = vmatprep.subr.mxu0 0.0
    %4018 = vmatpush1.msra.mxu0 %v3997
    %4019 = vmatprep.subr.mxu0 0.0
    %4020 = vmatpush1.msra.mxu0 %v3998
    %4021 = vmatprep.subr.mxu0 0.0
    %4022 = vmatpush1.msra.mxu0 %v3999
    %4023 = vmatprep.subr.mxu0 0.0
    %4024 = vmatpush1.msra.mxu0 %v4000
    %4025 = vmatprep.subr.mxu0 0.0
    %4026 = vmatpush1.msra.mxu0 %v4001
    %4027 = vmatprep.subr.mxu0 0.0
    %4028 = vmatpush1.msra.mxu0 %v4002
    %4029 = vmatprep.subr.mxu0 0.0
    %4030 = vmatpush1.msra.mxu0 %v4003
    %4031 = vmatprep.subr.mxu0 0.0
    %4032 = vmatpush1.msra.mxu0 %v4004
    %4033 = vmatprep.subr.mxu0 0.0
    %4034 = vmatpush1.msra.mxu0 0.0
    %4035 = vmatprep.subr.mxu0 0.0
    %4036 = vmatpush1.msra.mxu0 0.0
    %4037 = vmatprep.subr.mxu0 0.0
    %4038 = vmatpush1.msra.mxu0 0.0
    %4039 = vmatprep.subr.mxu0 0.0
    %4040 = vmatpush1.msra.mxu0 0.0
    %4041 = vmatprep.subr.mxu0 0.0
    %4042 = vmatpush1.msra.mxu0 0.0
    %4043 = vmatprep.subr.mxu0 0.0
    %4044 = vmatpush1.msra.mxu0 0.0
    %4045 = vmatprep.subr.mxu0 0.0
    %4046 = vmatpush1.msra.mxu0 0.0
    %4047 = vmatprep.subr.mxu0 0.0
    %4048 = vmatpush1.msra.mxu0 0.0
    %4049 = vmatprep.subr.mxu0 0.0
    %4050 = vmatpush1.msra.mxu0 0.0
    %4051 = vmatprep.subr.mxu0 0.0
    %4052 = vmatpush1.msra.mxu0 0.0
    %4053 = vmatprep.subr.mxu0 0.0
    %4054 = vmatpush1.msra.mxu0 0.0
    %4055 = vmatprep.subr.mxu0 0.0
    %4056 = vmatpush1.msra.mxu0 0.0
    %4057 = vmatprep.subr.mxu0 0.0
    %4058 = vmatpush1.msra.mxu0 0.0
    %4059 = vmatprep.subr.mxu0 0.0
    %4060 = vmatpush1.msra.mxu0 0.0
    %4061 = vmatprep.subr.mxu0 0.0
    %4062 = vmatpush1.msra.mxu0 0.0
    %4063 = vmatprep.subr.mxu0 0.0
    %4064 = vmatpush1.msra.mxu0 0.0
    %4065 = vmatprep.subr.mxu0 0.0
    %4066 = vmatpush1.msra.mxu0 0.0
    %4067 = vmatprep.subr.mxu0 0.0
    %4068 = vmatpush1.msra.mxu0 0.0
    %4069 = vmatprep.subr.mxu0 0.0
    %4070 = vmatpush1.msra.mxu0 0.0
    %4071 = vmatprep.subr.mxu0 0.0
    %4072 = vmatpush1.msra.mxu0 0.0
    %4073 = vmatprep.subr.mxu0 0.0
    %4074 = vmatpush1.msra.mxu0 0.0
    %4075 = vmatprep.subr.mxu0 0.0
    %4076 = vmatpush1.msra.mxu0 0.0
    %4077 = vmatprep.subr.mxu0 0.0
    %4078 = vmatpush1.msra.mxu0 0.0
    %4079 = vmatprep.subr.mxu0 0.0
    %4080 = vmatpush1.msra.mxu0 0.0
    %4081 = vmatprep.mubr.f32.mxu0 0.0
    %4082 = vmatmul.mubr.f32.gmra.mrb[0].mxu0 %v4012
    %v4083 = vpop.f32.mrb[0].mxu0
    %v4084 = vadd.f32 %v4009, %v4083
    %v4085 = vpop.f32.mrb[0].mxu0
    %4086 = vmatprep.mubr.f32.mxu0 0.0
    %4087 = vmatmul.mubr.f32.gmra.mrb[0].mxu0 %v4015
    %v4088 = vpop.f32.mrb[0].mxu0
    %v4089 = vadd.f32 %v4009, %v4088
    %v4090 = vpop.f32.mrb[0].mxu0
    %4091 = vdwg.mxu0
    %v4092 = vadd.f32 %v3903, %v4084
    %v4093 = vadd.f32 %v3904, %v4089
    %v4094 = vld [vmem:[%s5 + $0xa] sm:$0x1]
    %v4095 = vld [vmem:[%s5 + $0xb] sm:$0x1]
    %v4096 = vsel %vm111, %v4092, 0.0
    %4097 = vadd.xlane.f32.xlu0 %v4096
    %v4098 = vpop.xlane.xlu0 %4097
    %v4099 = vsel %vm111, %v4093, 0.0
    %4100 = vadd.xlane.f32.xlu0 %v4099
    %v4101 = vpop.xlane.xlu0 %4100
    %v4102 = vmul.f32 %v4098, %v1887
    %v4103 = vmul.f32 %v4101, %v1887
    %v4104 = vsub.f32 %v4092, %v4102
    %v4105 = vsub.f32 %v4093, %v4103
    %v4106 = vmul.f32 %v4104, %v4104
    %v4107 = vmul.f32 %v4105, %v4105
    %v4108 = vsel %vm111, %v4106, 0.0
    %4109 = vadd.xlane.f32.xlu0 %v4108
    %v4110 = vpop.xlane.xlu0 %4109
    %v4111 = vsel %vm111, %v4107, 0.0
    %4112 = vadd.xlane.f32.xlu0 %v4111
    %v4113 = vpop.xlane.xlu0 %4112
    %v4114 = vmul.f32 %v4110, %v1887
    %v4115 = vmul.f32 %v4113, %v1887
    %v4116 = vlaneseq
    %v4117 = vshrl.u32 %v4116, 7
    %v4118 = vsub.s32 0, %v4117
    %v4119 = vrot.slane %v4094, %v4118
    %v4120 = vmul.f32 %v4119, %v4104
    %v4121 = vmul.f32 %v4119, %v4105
    %v4122 = vadd.f32 %v4114, 1e-06
    %v4123 = vadd.f32 %v4115, 1e-06
    %v4124 = vrsqrt.pop %v4122
    %v4125 = vrsqrt.pop %v4123
    %v4126 = vmul.f32 %v4120, %v4124
    %v4127 = vmul.f32 %v4121, %v4125
    %v4128 = vlaneseq
    %v4129 = vshrl.u32 %v4128, 7
    %v4130 = vsub.s32 0, %v4129
    %v4131 = vrot.slane %v4095, %v4130
    %v4132 = vadd.f32 %v4126, %v4131
    %v4133 = vadd.f32 %v4127, %v4131
    %4134 = vst.msk [vmem:[#allocation11] sm:$0xff] %vm111, %v4132
    %4135 = vst.msk [vmem:[#allocation11 + $0x8] sm:$0xff] %vm111, %v4133
    // Predicated region
    $region46: #{tpu_custom_call.1} parent=1 // pred_check
      _
    $region47: #{tpu_custom_call.1} parent=1 // pred_check_branch
      %4137 = sbr.rel (0) target = $region49
    $region48: #{tpu_custom_call.1} parent=1 // pred_region
      %s4139 = ssub.s32 256, 256
      %4140 = vsyncadd [#allocation4], %s4139
      %s4141 = sshll.u32 [#allocation11], 4
      %s4142 = int_to_ptr.vmem [resolvable:$true] %s4141
      %4147 = dma.vmem_to_hbm [thread:$0]  %s4142, 256, %s6, [#allocation4], 128, 128, 8
    $region49: #{tpu_custom_call.1} parent=1 // pred_fallthru
      _
    // Predicated region
    $region50: #{tpu_custom_call.1} parent=1 // pred_check
      _
    $region51: #{tpu_custom_call.1} parent=1 // pred_check_branch
      %4149 = sbr.rel (0) target = $region53
    $region52: #{tpu_custom_call.1} parent=1 // pred_region
      %4150 = dma.done [#allocation4], 256
    $region53: #{tpu_custom_call.1} parent=1 // pred_fallthru
      _
    %4151 = vsyncpa [#allocation3], 1
    %4152 = vsyncpa [#allocation6], 1
    %4153 = vsyncpa [#allocation9], 1
    %4154 = vsyncpa [#allocation4], 1

</llo_original>
